<compile_context>
chip_gen: v5e
topology: v5e:2x2
jax: 0.10.0
libtpu: 0.0.40
codegen_flags: <defaults>
</compile_context>

<pallas_src>
import jax
import jax.numpy as jnp
import numpy as np
from jax.experimental import pallas as pl
from jax.experimental.pallas import tpu as pltpu

P_IN = 26
HIDDEN_1 = 100
HIDDEN_2 = 50
HP = 128                 # lane-padded per-gate width
K2 = 2 * HP              # packed state width  [h1 | h2]
GATES = 8 * HP           # packed gate width   [i1 i2 f1 f2 g1 g2 o1 o2]
P_PAD = 32               # input features padded 26 -> 32 (MXU feed alignment)
BP = 8                   # batch rows padded to one sublane tile
W_ROWS = K2 + P_PAD + 8  # 296-row packed weight slab (last tile: bias + head)


# ----------------------------------------------------------------------------
# Fused kernel: skewed, interleaved 2-layer LSTM recurrence + Linear head.
# Gate column blocks (each HP wide): [i1, i2, f1, f2, g1, g2, o1, o2];
# packed state columns: [h1 (128) | h2 (128)].
# ----------------------------------------------------------------------------
def fused_lstm_kernel(x_ref, w_ref, out_ref):
    TB = x_ref.shape[0]
    T = TB // BP

    # Static, tile-aligned views into the packed weight slab (hoisted).
    w_step = w_ref[0:K2, :]                                    # (256, 1024)
    w_in = w_ref[K2:K2 + P_PAD, :]                             # (32, 1024)
    b_row = w_ref[K2 + P_PAD:K2 + P_PAD + 1, :]                # (1, 1024)
    w_head = w_ref[K2 + P_PAD + 1:K2 + P_PAD + 2, 0:K2]        # (1, 256)
    b_head = w_ref[K2 + P_PAD + 1:K2 + P_PAD + 2, K2:K2 + 1]   # (1, 1)

    # Hoisted layer-1 input projection for ALL timesteps (+ both layers'
    # biases): one (T*BP, 32) x (32, 1024) matmul off the serial path.
    xpadd = (jnp.dot(x_ref[...], w_in, preferred_element_type=jnp.float32)
             + b_row)                                          # (T*BP, 1024)

    def combined_cell(gates, c12):
        # One EUP push for all 8 gate blocks: the g-gate columns/biases were
        # pre-scaled by 2, so tanh(0.5*gates) is tanh for g and 2*sigmoid-1
        # for i/f/o.
        t = jnp.tanh(0.5 * gates)
        i = 0.5 * t[:, 0 * K2:1 * K2] + 0.5       # [i1 | i2]
        f = 0.5 * t[:, 1 * K2:2 * K2] + 0.5       # [f1 | f2]
        g = t[:, 2 * K2:3 * K2]                   # [g1 | g2]
        o = 0.5 * t[:, 3 * K2:4 * K2] + 0.5       # [o1 | o2]
        c = f * c12 + i * g
        h = o * jnp.tanh(c)
        return h, c

    # Mask selecting the layer-1 half of the packed state.
    l1_mask = (jax.lax.broadcasted_iota(jnp.int32, (1, K2), 1) < HP
               ).astype(jnp.float32)

    # --- step 0: layer-1 timestep 0 only (h1_-1 = h2_-1 = 0 -> no matmul).
    h12, c12 = combined_cell(xpadd[0:BP, :], jnp.zeros((BP, K2), jnp.float32))
    h12 = h12 * l1_mask          # layer-2 half of step 0 is meaningless -> 0
    c12 = c12 * l1_mask

    # --- skewed combined steps s = 1..T-1 (statically unrolled, T small):
    #     layer-1 timestep s  +  layer-2 timestep s-1, ONE matmul each.
    for s in range(1, T):
        rec = jnp.dot(h12, w_step, preferred_element_type=jnp.float32)
        h12, c12 = combined_cell(rec + xpadd[s * BP:(s + 1) * BP, :], c12)

    # --- drain step: layer-2 timestep T-1 (layer-1 half of result unused).
    rec = jnp.dot(h12, w_step, preferred_element_type=jnp.float32)
    h12, _ = combined_cell(rec + b_row, c12)

    # dropout (eval mode) -> identity
    # Linear head, N=1: VPU multiply + lane reduction over the layer-2 half.
    out_ref[...] = jnp.sum(h12 * w_head, axis=-1, keepdims=True) + b_head


# ----------------------------------------------------------------------------
# Host-side packing: torch-layout weights -> one lane-dense VMEM slab.
# Rows 0..255   : W_step = [[W_hh1 | W_ih2], [0 | W_hh2]]   (gate cols padded)
# Rows 256..287 : W_ih1 (layer-1 input projection, layer-2 blocks zero)
# Row  288      : fused biases  b1 | b2  per gate block
# Row  289      : linear head (w_lin over layer-2 half; b_lin at col 256)
# g-gate blocks (weights + biases) are pre-scaled by 2 for the 1-tanh trick.
# Padded gate lanes have zero weights & bias -> i=f=o=0.5, g=0 -> padded
# h/c lanes stay exactly 0, so the math is unchanged.
# ----------------------------------------------------------------------------
def pack_params(params):
    def t32(a):
        return jnp.asarray(a, jnp.float32)

    w_ih1, w_hh1 = t32(params["w_ih1"]), t32(params["w_hh1"])
    w_ih2, w_hh2 = t32(params["w_ih2"]), t32(params["w_hh2"])
    b1 = t32(params["b_ih1"]) + t32(params["b_hh1"])
    b2 = t32(params["b_ih2"]) + t32(params["b_hh2"])

    slab = jnp.zeros((W_ROWS, GATES), jnp.float32)
    for k in range(4):                       # torch gate order i, f, g, o
        s = 2.0 if k == 2 else 1.0           # pre-scale g for the tanh trick
        c1 = (2 * k) * HP                    # layer-1 gate-k column block
        c2 = (2 * k + 1) * HP                # layer-2 gate-k column block
        # block-diagonal recurrent weight (rows 0..K2)
        slab = slab.at[0:HIDDEN_1, c1:c1 + HIDDEN_1].set(
            s * w_hh1[k * HIDDEN_1:(k + 1) * HIDDEN_1, :].T)
        slab = slab.at[0:HIDDEN_1, c2:c2 + HIDDEN_2].set(
            s * w_ih2[k * HIDDEN_2:(k + 1) * HIDDEN_2, :].T)
        slab = slab.at[HP:HP + HIDDEN_2, c2:c2 + HIDDEN_2].set(
            s * w_hh2[k * HIDDEN_2:(k + 1) * HIDDEN_2, :].T)
        # layer-1 input projection (rows K2..K2+P_PAD)
        slab = slab.at[K2:K2 + P_IN, c1:c1 + HIDDEN_1].set(
            s * w_ih1[k * HIDDEN_1:(k + 1) * HIDDEN_1, :].T)
        # fused biases (row K2 + P_PAD)
        slab = slab.at[K2 + P_PAD, c1:c1 + HIDDEN_1].set(
            s * b1[k * HIDDEN_1:(k + 1) * HIDDEN_1])
        slab = slab.at[K2 + P_PAD, c2:c2 + HIDDEN_2].set(
            s * b2[k * HIDDEN_2:(k + 1) * HIDDEN_2])

    # Linear head row: w_lin aligned to the layer-2 half of h12; bias at K2.
    slab = slab.at[K2 + P_PAD + 1, HP:HP + HIDDEN_2].set(
        t32(params["w_lin"])[0, :])
    slab = slab.at[K2 + P_PAD + 1, K2].set(t32(params["b_lin"])[0])
    return slab


# ----------------------------------------------------------------------------
# Full model forward (single pallas_call, 2 operands, no grid)
# ----------------------------------------------------------------------------
def lstm_model_forward(x, wslab):
    T, B, P = x.shape
    # Pad batch rows to a full sublane tile and features to 32 lanes.
    xp = jnp.zeros((T, BP, P_PAD), jnp.float32)
    xp = xp.at[:, :B, :P].set(jnp.asarray(x, jnp.float32))
    x2d = xp.reshape(T * BP, P_PAD)

    vmem = pl.BlockSpec(memory_space=pltpu.MemorySpace.VMEM)
    out = pl.pallas_call(
        fused_lstm_kernel,
        out_shape=jax.ShapeDtypeStruct((BP, 1), jnp.float32),
        in_specs=[vmem, vmem],
        out_specs=vmem,
    )(x2d, wslab)
    return out[:B]


# ----------------------------------------------------------------------------
# Pure-JAX reference for correctness check
# ----------------------------------------------------------------------------
def lstm_layer_ref(x, w_ih, w_hh, b_ih, b_hh):
    T, B, _ = x.shape
    H = w_hh.shape[1]
    h = jnp.zeros((B, H), jnp.float32)
    c = jnp.zeros((B, H), jnp.float32)
    outs = []
    for t in range(T):
        gates = x[t] @ w_ih.T + b_ih + h @ w_hh.T + b_hh
        i = jax.nn.sigmoid(gates[:, 0:H])
        f = jax.nn.sigmoid(gates[:, H:2 * H])
        g = jnp.tanh(gates[:, 2 * H:3 * H])
        o = jax.nn.sigmoid(gates[:, 3 * H:4 * H])
        c = f * c + i * g
        h = o * jnp.tanh(c)
        outs.append(h)
    return jnp.stack(outs, axis=0)


def model_ref(x, p):
    h1 = lstm_layer_ref(x, p["w_ih1"], p["w_hh1"], p["b_ih1"], p["b_hh1"])
    h2 = lstm_layer_ref(h1, p["w_ih2"], p["w_hh2"], p["b_ih2"], p["b_hh2"])
    return h2[-1] @ p["w_lin"].T + p["b_lin"]


def init_params(key):
    ks = jax.random.split(key, 11)

    def u(k, shape, scale):
        return jax.random.uniform(k, shape, jnp.float32, -scale, scale)

    s1 = 1.0 / np.sqrt(HIDDEN_1)
    s2 = 1.0 / np.sqrt(HIDDEN_2)
    return {
        "w_ih1": u(ks[0], (4 * HIDDEN_1, P_IN), s1),
        "w_hh1": u(ks[1], (4 * HIDDEN_1, HIDDEN_1), s1),
        "b_ih1": u(ks[2], (4 * HIDDEN_1,), s1),
        "b_hh1": u(ks[3], (4 * HIDDEN_1,), s1),
        "w_ih2": u(ks[4], (4 * HIDDEN_2, HIDDEN_1), s2),
        "w_hh2": u(ks[5], (4 * HIDDEN_2, HIDDEN_2), s2),
        "b_ih2": u(ks[6], (4 * HIDDEN_2,), s2),
        "b_hh2": u(ks[7], (4 * HIDDEN_2,), s2),
        "w_lin": u(ks[8], (1, HIDDEN_2), s2),
        "b_lin": u(ks[9], (1,), s2),
    }


if __name__ == "__main__":
    key = jax.random.PRNGKey(0)
    kx, kp = jax.random.split(key)
    T, B = 8, 2
    x = jax.random.normal(kx, (T, B, P_IN), jnp.float32)
    params = init_params(kp)

    wslab = pack_params(params)              # pack weights once
    fwd = jax.jit(lstm_model_forward)
    out = jax.block_until_ready(fwd(x, wslab))

    ref = jax.block_until_ready(model_ref(x, params))
    assert out.shape == (B, 1), out.shape
    # Tolerance covers sigmoid-via-tanh and MXU accumulation-order drift.
    np.testing.assert_allclose(np.asarray(out), np.asarray(ref),
                               rtol=1e-4, atol=1e-4)
    print("KERNEL_OK")
</pallas_src>

<mosaic_0001>
module attributes {stable_mosaic.version = 11 : i64} {
  func.func @fused_lstm_kernel(%arg0: memref<64x32xf32, #tpu.memory_space<vmem>>, %arg1: memref<296x1024xf32, #tpu.memory_space<vmem>>, %arg2: memref<8x1xf32, #tpu.memory_space<vmem>>) attributes {dimension_semantics = [], scalar_prefetch = 0 : i64, scratch_operands = 0 : i64, tpu.core_type = #tpu.core_type<tc>} {
    %c0 = arith.constant 0 : index
    %c0_0 = arith.constant 0 : index
    %0 = vector.load %arg1[%c0, %c0_0] : memref<296x1024xf32, #tpu.memory_space<vmem>>, vector<256x1024xf32>
    %c256 = arith.constant 256 : index
    %c0_1 = arith.constant 0 : index
    %1 = vector.load %arg1[%c256, %c0_1] : memref<296x1024xf32, #tpu.memory_space<vmem>>, vector<32x1024xf32>
    %c288 = arith.constant 288 : index
    %c0_2 = arith.constant 0 : index
    %2 = vector.load %arg1[%c288, %c0_2] : memref<296x1024xf32, #tpu.memory_space<vmem>>, vector<1x1024xf32>
    %c289 = arith.constant 289 : index
    %c0_3 = arith.constant 0 : index
    %3 = vector.load %arg1[%c289, %c0_3] : memref<296x1024xf32, #tpu.memory_space<vmem>>, vector<1x256xf32>
    %c289_4 = arith.constant 289 : index
    %c256_5 = arith.constant 256 : index
    %4 = vector.load %arg1[%c289_4, %c256_5] : memref<296x1024xf32, #tpu.memory_space<vmem>>, vector<1x1xf32>
    %c0_6 = arith.constant 0 : index
    %c0_7 = arith.constant 0 : index
    %5 = vector.load %arg0[%c0_6, %c0_7] : memref<64x32xf32, #tpu.memory_space<vmem>>, vector<64x32xf32>
    %cst = arith.constant dense<0.000000e+00> : vector<64x1024xf32>
    %6 = tpu.matmul %5, %1, %cst {dimension_numbers = #tpu.dot_dimension_numbers<[1], [0], [0], [1], [0, 0, 1, 1], [], []>} : vector<64x32xf32>, vector<32x1024xf32>, vector<64x1024xf32> -> vector<64x1024xf32>
    %7 = vector.broadcast %2 : vector<1x1024xf32> to vector<64x1024xf32>
    %8 = arith.addf %6, %7 : vector<64x1024xf32>
    %9 = tpu.iota {dimensions = array<i32: 1>} : vector<1x256xi32>
    %c128_i32 = arith.constant 128 : i32
    %10 = vector.broadcast %c128_i32 : i32 to vector<1x256xi32>
    %11 = arith.cmpi slt, %9, %10 : vector<1x256xi32>
    %12 = arith.extui %11 : vector<1x256xi1> to vector<1x256xi32>
    %13 = arith.sitofp %12 : vector<1x256xi32> to vector<1x256xf32>
    %14 = vector.extract_strided_slice %8 {offsets = [0, 0], sizes = [8, 1024], strides = [1, 1]} : vector<64x1024xf32> to vector<8x1024xf32>
    %cst_8 = arith.constant 0.000000e+00 : f32
    %15 = vector.broadcast %cst_8 : f32 to vector<8x256xf32>
    %cst_9 = arith.constant 5.000000e-01 : f32
    %16 = vector.broadcast %cst_9 : f32 to vector<8x1024xf32>
    %17 = arith.mulf %16, %14 : vector<8x1024xf32>
    %18 = math.tanh %17 : vector<8x1024xf32>
    %19 = vector.extract_strided_slice %18 {offsets = [0, 0], sizes = [8, 256], strides = [1, 1]} : vector<8x1024xf32> to vector<8x256xf32>
    %cst_10 = arith.constant 5.000000e-01 : f32
    %20 = vector.broadcast %cst_10 : f32 to vector<8x256xf32>
    %21 = arith.mulf %20, %19 : vector<8x256xf32>
    %cst_11 = arith.constant 5.000000e-01 : f32
    %22 = vector.broadcast %cst_11 : f32 to vector<8x256xf32>
    %23 = arith.addf %21, %22 : vector<8x256xf32>
    %24 = vector.extract_strided_slice %18 {offsets = [0, 256], sizes = [8, 256], strides = [1, 1]} : vector<8x1024xf32> to vector<8x256xf32>
    %cst_12 = arith.constant 5.000000e-01 : f32
    %25 = vector.broadcast %cst_12 : f32 to vector<8x256xf32>
    %26 = arith.mulf %25, %24 : vector<8x256xf32>
    %cst_13 = arith.constant 5.000000e-01 : f32
    %27 = vector.broadcast %cst_13 : f32 to vector<8x256xf32>
    %28 = arith.addf %26, %27 : vector<8x256xf32>
    %29 = vector.extract_strided_slice %18 {offsets = [0, 512], sizes = [8, 256], strides = [1, 1]} : vector<8x1024xf32> to vector<8x256xf32>
    %30 = vector.extract_strided_slice %18 {offsets = [0, 768], sizes = [8, 256], strides = [1, 1]} : vector<8x1024xf32> to vector<8x256xf32>
    %cst_14 = arith.constant 5.000000e-01 : f32
    %31 = vector.broadcast %cst_14 : f32 to vector<8x256xf32>
    %32 = arith.mulf %31, %30 : vector<8x256xf32>
    %cst_15 = arith.constant 5.000000e-01 : f32
    %33 = vector.broadcast %cst_15 : f32 to vector<8x256xf32>
    %34 = arith.addf %32, %33 : vector<8x256xf32>
    %35 = arith.mulf %28, %15 : vector<8x256xf32>
    %36 = arith.mulf %23, %29 : vector<8x256xf32>
    %37 = arith.addf %35, %36 : vector<8x256xf32>
    %38 = math.tanh %37 : vector<8x256xf32>
    %39 = arith.mulf %34, %38 : vector<8x256xf32>
    %40 = vector.broadcast %13 : vector<1x256xf32> to vector<8x256xf32>
    %41 = arith.mulf %39, %40 : vector<8x256xf32>
    %42 = vector.broadcast %13 : vector<1x256xf32> to vector<8x256xf32>
    %43 = arith.mulf %37, %42 : vector<8x256xf32>
    %cst_16 = arith.constant dense<0.000000e+00> : vector<8x1024xf32>
    %44 = tpu.matmul %41, %0, %cst_16 {dimension_numbers = #tpu.dot_dimension_numbers<[1], [0], [0], [1], [0, 0, 1, 1], [], []>} : vector<8x256xf32>, vector<256x1024xf32>, vector<8x1024xf32> -> vector<8x1024xf32>
    %45 = vector.extract_strided_slice %8 {offsets = [8, 0], sizes = [8, 1024], strides = [1, 1]} : vector<64x1024xf32> to vector<8x1024xf32>
    %46 = arith.addf %44, %45 : vector<8x1024xf32>
    %cst_17 = arith.constant 5.000000e-01 : f32
    %47 = vector.broadcast %cst_17 : f32 to vector<8x1024xf32>
    %48 = arith.mulf %47, %46 : vector<8x1024xf32>
    %49 = math.tanh %48 : vector<8x1024xf32>
    %50 = vector.extract_strided_slice %49 {offsets = [0, 0], sizes = [8, 256], strides = [1, 1]} : vector<8x1024xf32> to vector<8x256xf32>
    %cst_18 = arith.constant 5.000000e-01 : f32
    %51 = vector.broadcast %cst_18 : f32 to vector<8x256xf32>
    %52 = arith.mulf %51, %50 : vector<8x256xf32>
    %cst_19 = arith.constant 5.000000e-01 : f32
    %53 = vector.broadcast %cst_19 : f32 to vector<8x256xf32>
    %54 = arith.addf %52, %53 : vector<8x256xf32>
    %55 = vector.extract_strided_slice %49 {offsets = [0, 256], sizes = [8, 256], strides = [1, 1]} : vector<8x1024xf32> to vector<8x256xf32>
    %cst_20 = arith.constant 5.000000e-01 : f32
    %56 = vector.broadcast %cst_20 : f32 to vector<8x256xf32>
    %57 = arith.mulf %56, %55 : vector<8x256xf32>
    %cst_21 = arith.constant 5.000000e-01 : f32
    %58 = vector.broadcast %cst_21 : f32 to vector<8x256xf32>
    %59 = arith.addf %57, %58 : vector<8x256xf32>
    %60 = vector.extract_strided_slice %49 {offsets = [0, 512], sizes = [8, 256], strides = [1, 1]} : vector<8x1024xf32> to vector<8x256xf32>
    %61 = vector.extract_strided_slice %49 {offsets = [0, 768], sizes = [8, 256], strides = [1, 1]} : vector<8x1024xf32> to vector<8x256xf32>
    %cst_22 = arith.constant 5.000000e-01 : f32
    %62 = vector.broadcast %cst_22 : f32 to vector<8x256xf32>
    %63 = arith.mulf %62, %61 : vector<8x256xf32>
    %cst_23 = arith.constant 5.000000e-01 : f32
    %64 = vector.broadcast %cst_23 : f32 to vector<8x256xf32>
    %65 = arith.addf %63, %64 : vector<8x256xf32>
    %66 = arith.mulf %59, %43 : vector<8x256xf32>
    %67 = arith.mulf %54, %60 : vector<8x256xf32>
    %68 = arith.addf %66, %67 : vector<8x256xf32>
    %69 = math.tanh %68 : vector<8x256xf32>
    %70 = arith.mulf %65, %69 : vector<8x256xf32>
    %cst_24 = arith.constant dense<0.000000e+00> : vector<8x1024xf32>
    %71 = tpu.matmul %70, %0, %cst_24 {dimension_numbers = #tpu.dot_dimension_numbers<[1], [0], [0], [1], [0, 0, 1, 1], [], []>} : vector<8x256xf32>, vector<256x1024xf32>, vector<8x1024xf32> -> vector<8x1024xf32>
    %72 = vector.extract_strided_slice %8 {offsets = [16, 0], sizes = [8, 1024], strides = [1, 1]} : vector<64x1024xf32> to vector<8x1024xf32>
    %73 = arith.addf %71, %72 : vector<8x1024xf32>
    %cst_25 = arith.constant 5.000000e-01 : f32
    %74 = vector.broadcast %cst_25 : f32 to vector<8x1024xf32>
    %75 = arith.mulf %74, %73 : vector<8x1024xf32>
    %76 = math.tanh %75 : vector<8x1024xf32>
    %77 = vector.extract_strided_slice %76 {offsets = [0, 0], sizes = [8, 256], strides = [1, 1]} : vector<8x1024xf32> to vector<8x256xf32>
    %cst_26 = arith.constant 5.000000e-01 : f32
    %78 = vector.broadcast %cst_26 : f32 to vector<8x256xf32>
    %79 = arith.mulf %78, %77 : vector<8x256xf32>
    %cst_27 = arith.constant 5.000000e-01 : f32
    %80 = vector.broadcast %cst_27 : f32 to vector<8x256xf32>
    %81 = arith.addf %79, %80 : vector<8x256xf32>
    %82 = vector.extract_strided_slice %76 {offsets = [0, 256], sizes = [8, 256], strides = [1, 1]} : vector<8x1024xf32> to vector<8x256xf32>
    %cst_28 = arith.constant 5.000000e-01 : f32
    %83 = vector.broadcast %cst_28 : f32 to vector<8x256xf32>
    %84 = arith.mulf %83, %82 : vector<8x256xf32>
    %cst_29 = arith.constant 5.000000e-01 : f32
    %85 = vector.broadcast %cst_29 : f32 to vector<8x256xf32>
    %86 = arith.addf %84, %85 : vector<8x256xf32>
    %87 = vector.extract_strided_slice %76 {offsets = [0, 512], sizes = [8, 256], strides = [1, 1]} : vector<8x1024xf32> to vector<8x256xf32>
    %88 = vector.extract_strided_slice %76 {offsets = [0, 768], sizes = [8, 256], strides = [1, 1]} : vector<8x1024xf32> to vector<8x256xf32>
    %cst_30 = arith.constant 5.000000e-01 : f32
    %89 = vector.broadcast %cst_30 : f32 to vector<8x256xf32>
    %90 = arith.mulf %89, %88 : vector<8x256xf32>
    %cst_31 = arith.constant 5.000000e-01 : f32
    %91 = vector.broadcast %cst_31 : f32 to vector<8x256xf32>
    %92 = arith.addf %90, %91 : vector<8x256xf32>
    %93 = arith.mulf %86, %68 : vector<8x256xf32>
    %94 = arith.mulf %81, %87 : vector<8x256xf32>
    %95 = arith.addf %93, %94 : vector<8x256xf32>
    %96 = math.tanh %95 : vector<8x256xf32>
    %97 = arith.mulf %92, %96 : vector<8x256xf32>
    %cst_32 = arith.constant dense<0.000000e+00> : vector<8x1024xf32>
    %98 = tpu.matmul %97, %0, %cst_32 {dimension_numbers = #tpu.dot_dimension_numbers<[1], [0], [0], [1], [0, 0, 1, 1], [], []>} : vector<8x256xf32>, vector<256x1024xf32>, vector<8x1024xf32> -> vector<8x1024xf32>
    %99 = vector.extract_strided_slice %8 {offsets = [24, 0], sizes = [8, 1024], strides = [1, 1]} : vector<64x1024xf32> to vector<8x1024xf32>
    %100 = arith.addf %98, %99 : vector<8x1024xf32>
    %cst_33 = arith.constant 5.000000e-01 : f32
    %101 = vector.broadcast %cst_33 : f32 to vector<8x1024xf32>
    %102 = arith.mulf %101, %100 : vector<8x1024xf32>
    %103 = math.tanh %102 : vector<8x1024xf32>
    %104 = vector.extract_strided_slice %103 {offsets = [0, 0], sizes = [8, 256], strides = [1, 1]} : vector<8x1024xf32> to vector<8x256xf32>
    %cst_34 = arith.constant 5.000000e-01 : f32
    %105 = vector.broadcast %cst_34 : f32 to vector<8x256xf32>
    %106 = arith.mulf %105, %104 : vector<8x256xf32>
    %cst_35 = arith.constant 5.000000e-01 : f32
    %107 = vector.broadcast %cst_35 : f32 to vector<8x256xf32>
    %108 = arith.addf %106, %107 : vector<8x256xf32>
    %109 = vector.extract_strided_slice %103 {offsets = [0, 256], sizes = [8, 256], strides = [1, 1]} : vector<8x1024xf32> to vector<8x256xf32>
    %cst_36 = arith.constant 5.000000e-01 : f32
    %110 = vector.broadcast %cst_36 : f32 to vector<8x256xf32>
    %111 = arith.mulf %110, %109 : vector<8x256xf32>
    %cst_37 = arith.constant 5.000000e-01 : f32
    %112 = vector.broadcast %cst_37 : f32 to vector<8x256xf32>
    %113 = arith.addf %111, %112 : vector<8x256xf32>
    %114 = vector.extract_strided_slice %103 {offsets = [0, 512], sizes = [8, 256], strides = [1, 1]} : vector<8x1024xf32> to vector<8x256xf32>
    %115 = vector.extract_strided_slice %103 {offsets = [0, 768], sizes = [8, 256], strides = [1, 1]} : vector<8x1024xf32> to vector<8x256xf32>
    %cst_38 = arith.constant 5.000000e-01 : f32
    %116 = vector.broadcast %cst_38 : f32 to vector<8x256xf32>
    %117 = arith.mulf %116, %115 : vector<8x256xf32>
    %cst_39 = arith.constant 5.000000e-01 : f32
    %118 = vector.broadcast %cst_39 : f32 to vector<8x256xf32>
    %119 = arith.addf %117, %118 : vector<8x256xf32>
    %120 = arith.mulf %113, %95 : vector<8x256xf32>
    %121 = arith.mulf %108, %114 : vector<8x256xf32>
    %122 = arith.addf %120, %121 : vector<8x256xf32>
    %123 = math.tanh %122 : vector<8x256xf32>
    %124 = arith.mulf %119, %123 : vector<8x256xf32>
    %cst_40 = arith.constant dense<0.000000e+00> : vector<8x1024xf32>
    %125 = tpu.matmul %124, %0, %cst_40 {dimension_numbers = #tpu.dot_dimension_numbers<[1], [0], [0], [1], [0, 0, 1, 1], [], []>} : vector<8x256xf32>, vector<256x1024xf32>, vector<8x1024xf32> -> vector<8x1024xf32>
    %126 = vector.extract_strided_slice %8 {offsets = [32, 0], sizes = [8, 1024], strides = [1, 1]} : vector<64x1024xf32> to vector<8x1024xf32>
    %127 = arith.addf %125, %126 : vector<8x1024xf32>
    %cst_41 = arith.constant 5.000000e-01 : f32
    %128 = vector.broadcast %cst_41 : f32 to vector<8x1024xf32>
    %129 = arith.mulf %128, %127 : vector<8x1024xf32>
    %130 = math.tanh %129 : vector<8x1024xf32>
    %131 = vector.extract_strided_slice %130 {offsets = [0, 0], sizes = [8, 256], strides = [1, 1]} : vector<8x1024xf32> to vector<8x256xf32>
    %cst_42 = arith.constant 5.000000e-01 : f32
    %132 = vector.broadcast %cst_42 : f32 to vector<8x256xf32>
    %133 = arith.mulf %132, %131 : vector<8x256xf32>
    %cst_43 = arith.constant 5.000000e-01 : f32
    %134 = vector.broadcast %cst_43 : f32 to vector<8x256xf32>
    %135 = arith.addf %133, %134 : vector<8x256xf32>
    %136 = vector.extract_strided_slice %130 {offsets = [0, 256], sizes = [8, 256], strides = [1, 1]} : vector<8x1024xf32> to vector<8x256xf32>
    %cst_44 = arith.constant 5.000000e-01 : f32
    %137 = vector.broadcast %cst_44 : f32 to vector<8x256xf32>
    %138 = arith.mulf %137, %136 : vector<8x256xf32>
    %cst_45 = arith.constant 5.000000e-01 : f32
    %139 = vector.broadcast %cst_45 : f32 to vector<8x256xf32>
    %140 = arith.addf %138, %139 : vector<8x256xf32>
    %141 = vector.extract_strided_slice %130 {offsets = [0, 512], sizes = [8, 256], strides = [1, 1]} : vector<8x1024xf32> to vector<8x256xf32>
    %142 = vector.extract_strided_slice %130 {offsets = [0, 768], sizes = [8, 256], strides = [1, 1]} : vector<8x1024xf32> to vector<8x256xf32>
    %cst_46 = arith.constant 5.000000e-01 : f32
    %143 = vector.broadcast %cst_46 : f32 to vector<8x256xf32>
    %144 = arith.mulf %143, %142 : vector<8x256xf32>
    %cst_47 = arith.constant 5.000000e-01 : f32
    %145 = vector.broadcast %cst_47 : f32 to vector<8x256xf32>
    %146 = arith.addf %144, %145 : vector<8x256xf32>
    %147 = arith.mulf %140, %122 : vector<8x256xf32>
    %148 = arith.mulf %135, %141 : vector<8x256xf32>
    %149 = arith.addf %147, %148 : vector<8x256xf32>
    %150 = math.tanh %149 : vector<8x256xf32>
    %151 = arith.mulf %146, %150 : vector<8x256xf32>
    %cst_48 = arith.constant dense<0.000000e+00> : vector<8x1024xf32>
    %152 = tpu.matmul %151, %0, %cst_48 {dimension_numbers = #tpu.dot_dimension_numbers<[1], [0], [0], [1], [0, 0, 1, 1], [], []>} : vector<8x256xf32>, vector<256x1024xf32>, vector<8x1024xf32> -> vector<8x1024xf32>
    %153 = vector.extract_strided_slice %8 {offsets = [40, 0], sizes = [8, 1024], strides = [1, 1]} : vector<64x1024xf32> to vector<8x1024xf32>
    %154 = arith.addf %152, %153 : vector<8x1024xf32>
    %cst_49 = arith.constant 5.000000e-01 : f32
    %155 = vector.broadcast %cst_49 : f32 to vector<8x1024xf32>
    %156 = arith.mulf %155, %154 : vector<8x1024xf32>
    %157 = math.tanh %156 : vector<8x1024xf32>
    %158 = vector.extract_strided_slice %157 {offsets = [0, 0], sizes = [8, 256], strides = [1, 1]} : vector<8x1024xf32> to vector<8x256xf32>
    %cst_50 = arith.constant 5.000000e-01 : f32
    %159 = vector.broadcast %cst_50 : f32 to vector<8x256xf32>
    %160 = arith.mulf %159, %158 : vector<8x256xf32>
    %cst_51 = arith.constant 5.000000e-01 : f32
    %161 = vector.broadcast %cst_51 : f32 to vector<8x256xf32>
    %162 = arith.addf %160, %161 : vector<8x256xf32>
    %163 = vector.extract_strided_slice %157 {offsets = [0, 256], sizes = [8, 256], strides = [1, 1]} : vector<8x1024xf32> to vector<8x256xf32>
    %cst_52 = arith.constant 5.000000e-01 : f32
    %164 = vector.broadcast %cst_52 : f32 to vector<8x256xf32>
    %165 = arith.mulf %164, %163 : vector<8x256xf32>
    %cst_53 = arith.constant 5.000000e-01 : f32
    %166 = vector.broadcast %cst_53 : f32 to vector<8x256xf32>
    %167 = arith.addf %165, %166 : vector<8x256xf32>
    %168 = vector.extract_strided_slice %157 {offsets = [0, 512], sizes = [8, 256], strides = [1, 1]} : vector<8x1024xf32> to vector<8x256xf32>
    %169 = vector.extract_strided_slice %157 {offsets = [0, 768], sizes = [8, 256], strides = [1, 1]} : vector<8x1024xf32> to vector<8x256xf32>
    %cst_54 = arith.constant 5.000000e-01 : f32
    %170 = vector.broadcast %cst_54 : f32 to vector<8x256xf32>
    %171 = arith.mulf %170, %169 : vector<8x256xf32>
    %cst_55 = arith.constant 5.000000e-01 : f32
    %172 = vector.broadcast %cst_55 : f32 to vector<8x256xf32>
    %173 = arith.addf %171, %172 : vector<8x256xf32>
    %174 = arith.mulf %167, %149 : vector<8x256xf32>
    %175 = arith.mulf %162, %168 : vector<8x256xf32>
    %176 = arith.addf %174, %175 : vector<8x256xf32>
    %177 = math.tanh %176 : vector<8x256xf32>
    %178 = arith.mulf %173, %177 : vector<8x256xf32>
    %cst_56 = arith.constant dense<0.000000e+00> : vector<8x1024xf32>
    %179 = tpu.matmul %178, %0, %cst_56 {dimension_numbers = #tpu.dot_dimension_numbers<[1], [0], [0], [1], [0, 0, 1, 1], [], []>} : vector<8x256xf32>, vector<256x1024xf32>, vector<8x1024xf32> -> vector<8x1024xf32>
    %180 = vector.extract_strided_slice %8 {offsets = [48, 0], sizes = [8, 1024], strides = [1, 1]} : vector<64x1024xf32> to vector<8x1024xf32>
    %181 = arith.addf %179, %180 : vector<8x1024xf32>
    %cst_57 = arith.constant 5.000000e-01 : f32
    %182 = vector.broadcast %cst_57 : f32 to vector<8x1024xf32>
    %183 = arith.mulf %182, %181 : vector<8x1024xf32>
    %184 = math.tanh %183 : vector<8x1024xf32>
    %185 = vector.extract_strided_slice %184 {offsets = [0, 0], sizes = [8, 256], strides = [1, 1]} : vector<8x1024xf32> to vector<8x256xf32>
    %cst_58 = arith.constant 5.000000e-01 : f32
    %186 = vector.broadcast %cst_58 : f32 to vector<8x256xf32>
    %187 = arith.mulf %186, %185 : vector<8x256xf32>
    %cst_59 = arith.constant 5.000000e-01 : f32
    %188 = vector.broadcast %cst_59 : f32 to vector<8x256xf32>
    %189 = arith.addf %187, %188 : vector<8x256xf32>
    %190 = vector.extract_strided_slice %184 {offsets = [0, 256], sizes = [8, 256], strides = [1, 1]} : vector<8x1024xf32> to vector<8x256xf32>
    %cst_60 = arith.constant 5.000000e-01 : f32
    %191 = vector.broadcast %cst_60 : f32 to vector<8x256xf32>
    %192 = arith.mulf %191, %190 : vector<8x256xf32>
    %cst_61 = arith.constant 5.000000e-01 : f32
    %193 = vector.broadcast %cst_61 : f32 to vector<8x256xf32>
    %194 = arith.addf %192, %193 : vector<8x256xf32>
    %195 = vector.extract_strided_slice %184 {offsets = [0, 512], sizes = [8, 256], strides = [1, 1]} : vector<8x1024xf32> to vector<8x256xf32>
    %196 = vector.extract_strided_slice %184 {offsets = [0, 768], sizes = [8, 256], strides = [1, 1]} : vector<8x1024xf32> to vector<8x256xf32>
    %cst_62 = arith.constant 5.000000e-01 : f32
    %197 = vector.broadcast %cst_62 : f32 to vector<8x256xf32>
    %198 = arith.mulf %197, %196 : vector<8x256xf32>
    %cst_63 = arith.constant 5.000000e-01 : f32
    %199 = vector.broadcast %cst_63 : f32 to vector<8x256xf32>
    %200 = arith.addf %198, %199 : vector<8x256xf32>
    %201 = arith.mulf %194, %176 : vector<8x256xf32>
    %202 = arith.mulf %189, %195 : vector<8x256xf32>
    %203 = arith.addf %201, %202 : vector<8x256xf32>
    %204 = math.tanh %203 : vector<8x256xf32>
    %205 = arith.mulf %200, %204 : vector<8x256xf32>
    %cst_64 = arith.constant dense<0.000000e+00> : vector<8x1024xf32>
    %206 = tpu.matmul %205, %0, %cst_64 {dimension_numbers = #tpu.dot_dimension_numbers<[1], [0], [0], [1], [0, 0, 1, 1], [], []>} : vector<8x256xf32>, vector<256x1024xf32>, vector<8x1024xf32> -> vector<8x1024xf32>
    %207 = vector.extract_strided_slice %8 {offsets = [56, 0], sizes = [8, 1024], strides = [1, 1]} : vector<64x1024xf32> to vector<8x1024xf32>
    %208 = arith.addf %206, %207 : vector<8x1024xf32>
    %cst_65 = arith.constant 5.000000e-01 : f32
    %209 = vector.broadcast %cst_65 : f32 to vector<8x1024xf32>
    %210 = arith.mulf %209, %208 : vector<8x1024xf32>
    %211 = math.tanh %210 : vector<8x1024xf32>
    %212 = vector.extract_strided_slice %211 {offsets = [0, 0], sizes = [8, 256], strides = [1, 1]} : vector<8x1024xf32> to vector<8x256xf32>
    %cst_66 = arith.constant 5.000000e-01 : f32
    %213 = vector.broadcast %cst_66 : f32 to vector<8x256xf32>
    %214 = arith.mulf %213, %212 : vector<8x256xf32>
    %cst_67 = arith.constant 5.000000e-01 : f32
    %215 = vector.broadcast %cst_67 : f32 to vector<8x256xf32>
    %216 = arith.addf %214, %215 : vector<8x256xf32>
    %217 = vector.extract_strided_slice %211 {offsets = [0, 256], sizes = [8, 256], strides = [1, 1]} : vector<8x1024xf32> to vector<8x256xf32>
    %cst_68 = arith.constant 5.000000e-01 : f32
    %218 = vector.broadcast %cst_68 : f32 to vector<8x256xf32>
    %219 = arith.mulf %218, %217 : vector<8x256xf32>
    %cst_69 = arith.constant 5.000000e-01 : f32
    %220 = vector.broadcast %cst_69 : f32 to vector<8x256xf32>
    %221 = arith.addf %219, %220 : vector<8x256xf32>
    %222 = vector.extract_strided_slice %211 {offsets = [0, 512], sizes = [8, 256], strides = [1, 1]} : vector<8x1024xf32> to vector<8x256xf32>
    %223 = vector.extract_strided_slice %211 {offsets = [0, 768], sizes = [8, 256], strides = [1, 1]} : vector<8x1024xf32> to vector<8x256xf32>
    %cst_70 = arith.constant 5.000000e-01 : f32
    %224 = vector.broadcast %cst_70 : f32 to vector<8x256xf32>
    %225 = arith.mulf %224, %223 : vector<8x256xf32>
    %cst_71 = arith.constant 5.000000e-01 : f32
    %226 = vector.broadcast %cst_71 : f32 to vector<8x256xf32>
    %227 = arith.addf %225, %226 : vector<8x256xf32>
    %228 = arith.mulf %221, %203 : vector<8x256xf32>
    %229 = arith.mulf %216, %222 : vector<8x256xf32>
    %230 = arith.addf %228, %229 : vector<8x256xf32>
    %231 = math.tanh %230 : vector<8x256xf32>
    %232 = arith.mulf %227, %231 : vector<8x256xf32>
    %cst_72 = arith.constant dense<0.000000e+00> : vector<8x1024xf32>
    %233 = tpu.matmul %232, %0, %cst_72 {dimension_numbers = #tpu.dot_dimension_numbers<[1], [0], [0], [1], [0, 0, 1, 1], [], []>} : vector<8x256xf32>, vector<256x1024xf32>, vector<8x1024xf32> -> vector<8x1024xf32>
    %234 = vector.broadcast %2 : vector<1x1024xf32> to vector<8x1024xf32>
    %235 = arith.addf %233, %234 : vector<8x1024xf32>
    %cst_73 = arith.constant 5.000000e-01 : f32
    %236 = vector.broadcast %cst_73 : f32 to vector<8x1024xf32>
    %237 = arith.mulf %236, %235 : vector<8x1024xf32>
    %238 = math.tanh %237 : vector<8x1024xf32>
    %239 = vector.extract_strided_slice %238 {offsets = [0, 0], sizes = [8, 256], strides = [1, 1]} : vector<8x1024xf32> to vector<8x256xf32>
    %cst_74 = arith.constant 5.000000e-01 : f32
    %240 = vector.broadcast %cst_74 : f32 to vector<8x256xf32>
    %241 = arith.mulf %240, %239 : vector<8x256xf32>
    %cst_75 = arith.constant 5.000000e-01 : f32
    %242 = vector.broadcast %cst_75 : f32 to vector<8x256xf32>
    %243 = arith.addf %241, %242 : vector<8x256xf32>
    %244 = vector.extract_strided_slice %238 {offsets = [0, 256], sizes = [8, 256], strides = [1, 1]} : vector<8x1024xf32> to vector<8x256xf32>
    %cst_76 = arith.constant 5.000000e-01 : f32
    %245 = vector.broadcast %cst_76 : f32 to vector<8x256xf32>
    %246 = arith.mulf %245, %244 : vector<8x256xf32>
    %cst_77 = arith.constant 5.000000e-01 : f32
    %247 = vector.broadcast %cst_77 : f32 to vector<8x256xf32>
    %248 = arith.addf %246, %247 : vector<8x256xf32>
    %249 = vector.extract_strided_slice %238 {offsets = [0, 512], sizes = [8, 256], strides = [1, 1]} : vector<8x1024xf32> to vector<8x256xf32>
    %250 = vector.extract_strided_slice %238 {offsets = [0, 768], sizes = [8, 256], strides = [1, 1]} : vector<8x1024xf32> to vector<8x256xf32>
    %cst_78 = arith.constant 5.000000e-01 : f32
    %251 = vector.broadcast %cst_78 : f32 to vector<8x256xf32>
    %252 = arith.mulf %251, %250 : vector<8x256xf32>
    %cst_79 = arith.constant 5.000000e-01 : f32
    %253 = vector.broadcast %cst_79 : f32 to vector<8x256xf32>
    %254 = arith.addf %252, %253 : vector<8x256xf32>
    %255 = arith.mulf %248, %230 : vector<8x256xf32>
    %256 = arith.mulf %243, %249 : vector<8x256xf32>
    %257 = arith.addf %255, %256 : vector<8x256xf32>
    %258 = math.tanh %257 : vector<8x256xf32>
    %259 = arith.mulf %254, %258 : vector<8x256xf32>
    %260 = vector.broadcast %3 : vector<1x256xf32> to vector<8x256xf32>
    %261 = arith.mulf %259, %260 : vector<8x256xf32>
    %cst_80 = arith.constant dense<0.000000e+00> : vector<8xf32>
    %262 = vector.multi_reduction <add>, %261, %cst_80 [1] : vector<8x256xf32> to vector<8xf32>
    %263 = vector.shape_cast %262 : vector<8xf32> to vector<8x1xf32>
    %264 = vector.broadcast %4 : vector<1x1xf32> to vector<8x1xf32>
    %265 = arith.addf %263, %264 : vector<8x1xf32>
    %c0_81 = arith.constant 0 : index
    %c0_82 = arith.constant 0 : index
    %266 = vector.load %arg2[%c0_81, %c0_82] : memref<8x1xf32, #tpu.memory_space<vmem>>, vector<8x1xf32>
    tpu.vector_store %arg2[%c0_81, %c0_82], %265 {strides = array<i32>} : memref<8x1xf32, #tpu.memory_space<vmem>>, vector<8x1xf32>,
    return
  }
}

</mosaic_0001>

<llo_original>
// kernel: lstm_model_forward.1
$region0: #{lstm_model_forward.1}
  #allocation0 [shape = 'u32[]', space=smem, size = 0x4, offset = 0x4, fixed_abs, tag = 'smem constant byte address 0x4 - core index']
  #allocation1 [shape = 'u32[72,128]{1,0:T(1,128)}', space=vmem, size = 0x9000, scoped, tag = 'internal scratch']
  %s0 = inlined_call_operand.vmem [shape: f32[64,32], index: 0, kind: input, shape index: {}]
  %s1 = inlined_call_operand.hbm [shape: f32[296,1024], index: 1, kind: input, shape index: {}]
  %s2 = inlined_call_operand.vmem [shape: f32[8,1], index: 2, kind: output, shape index: {}]
  %s3 = sld [smem:[#allocation0]]
  $region22: #{lstm_model_forward.1} parent=0
    _
  %s5 = ssub.s32 1, %s3
  %s6 = scalar_select 0, %s5, %s3
  $region1: #{lstm_model_forward.1} parent=0
    #allocation2 [shape = 'u8[1212416]{0}', space=vmem, size = 0x128000, scoped, tag = 'input window, operand 1, single buffered']
    #allocation3 [shape = 's32[1]{0}', space=sflag, size = 0x4, scoped, tag = 'scoped memory for lstm_model_forward.1']
    %7 = vsyncpa [#allocation3], 0
    // Predicated region
    $region2: #{lstm_model_forward.1} parent=1 // pred_check
      _
    $region3: #{lstm_model_forward.1} parent=1 // pred_check_branch
      %9 = sbr.rel (0) target = $region5
    $region4: #{lstm_model_forward.1} parent=1 // pred_region
      _
    $region5: #{lstm_model_forward.1} parent=1 // pred_fallthru
      _
    // Predicated region
    $region6: #{lstm_model_forward.1} parent=1 // pred_check
      _
    $region7: #{lstm_model_forward.1} parent=1 // pred_check_branch
      %11 = sbr.rel (0) target = $region9
    $region8: #{lstm_model_forward.1} parent=1 // pred_region
      %13 = vsyncadd [#allocation3], 0
      %s14 = sshll.u32 %s1, 4
      %s15 = int_to_ptr.hbm [resolvable:$true] %s14
      %s16 = sshll.u32 [#allocation2], 4
      %s17 = int_to_ptr.vmem [resolvable:$true] %s16
      %22 = dma.hbm_to_vmem [thread:$0]  %s15, 37888, %s17, [#allocation3], 1024, 1024, 64
    $region9: #{lstm_model_forward.1} parent=1 // pred_fallthru
      _
    // Predicated region
    $region10: #{lstm_model_forward.1} parent=1 // pred_check
      _
    $region11: #{lstm_model_forward.1} parent=1 // pred_check_branch
      %24 = sbr.rel (0) target = $region13
    $region12: #{lstm_model_forward.1} parent=1 // pred_region
      %26 = dma.done [#allocation3], 37888
    $region13: #{lstm_model_forward.1} parent=1 // pred_fallthru
      _
    %v27 = vld [vmem:[#allocation2] sm:$0xff]
    %v28 = vld [vmem:[#allocation2 + $0x8] sm:$0xff]
    %v29 = vld [vmem:[#allocation2 + $0x10] sm:$0xff]
    %v30 = vld [vmem:[#allocation2 + $0x18] sm:$0xff]
    %v31 = vld [vmem:[#allocation2 + $0x20] sm:$0xff]
    %v32 = vld [vmem:[#allocation2 + $0x28] sm:$0xff]
    %v33 = vld [vmem:[#allocation2 + $0x30] sm:$0xff]
    %v34 = vld [vmem:[#allocation2 + $0x38] sm:$0xff]
    %v35 = vld [vmem:[#allocation2 + $0x40] sm:$0xff]
    %v36 = vld [vmem:[#allocation2 + $0x48] sm:$0xff]
    %v37 = vld [vmem:[#allocation2 + $0x50] sm:$0xff]
    %v38 = vld [vmem:[#allocation2 + $0x58] sm:$0xff]
    %v39 = vld [vmem:[#allocation2 + $0x60] sm:$0xff]
    %v40 = vld [vmem:[#allocation2 + $0x68] sm:$0xff]
    %v41 = vld [vmem:[#allocation2 + $0x70] sm:$0xff]
    %v42 = vld [vmem:[#allocation2 + $0x78] sm:$0xff]
    %v43 = vld [vmem:[#allocation2 + $0x80] sm:$0xff]
    %v44 = vld [vmem:[#allocation2 + $0x88] sm:$0xff]
    %v45 = vld [vmem:[#allocation2 + $0x90] sm:$0xff]
    %v46 = vld [vmem:[#allocation2 + $0x98] sm:$0xff]
    %v47 = vld [vmem:[#allocation2 + $0xa0] sm:$0xff]
    %v48 = vld [vmem:[#allocation2 + $0xa8] sm:$0xff]
    %v49 = vld [vmem:[#allocation2 + $0xb0] sm:$0xff]
    %v50 = vld [vmem:[#allocation2 + $0xb8] sm:$0xff]
    %v51 = vld [vmem:[#allocation2 + $0xc0] sm:$0xff]
    %v52 = vld [vmem:[#allocation2 + $0xc8] sm:$0xff]
    %v53 = vld [vmem:[#allocation2 + $0xd0] sm:$0xff]
    %v54 = vld [vmem:[#allocation2 + $0xd8] sm:$0xff]
    %v55 = vld [vmem:[#allocation2 + $0xe0] sm:$0xff]
    %v56 = vld [vmem:[#allocation2 + $0xe8] sm:$0xff]
    %v57 = vld [vmem:[#allocation2 + $0xf0] sm:$0xff]
    %v58 = vld [vmem:[#allocation2 + $0xf8] sm:$0xff]
    %v59 = vld [vmem:[#allocation2 + $0x100] sm:$0xff]
    %v60 = vld [vmem:[#allocation2 + $0x108] sm:$0xff]
    %v61 = vld [vmem:[#allocation2 + $0x110] sm:$0xff]
    %v62 = vld [vmem:[#allocation2 + $0x118] sm:$0xff]
    %v63 = vld [vmem:[#allocation2 + $0x120] sm:$0xff]
    %v64 = vld [vmem:[#allocation2 + $0x128] sm:$0xff]
    %v65 = vld [vmem:[#allocation2 + $0x130] sm:$0xff]
    %v66 = vld [vmem:[#allocation2 + $0x138] sm:$0xff]
    %v67 = vld [vmem:[#allocation2 + $0x140] sm:$0xff]
    %v68 = vld [vmem:[#allocation2 + $0x148] sm:$0xff]
    %v69 = vld [vmem:[#allocation2 + $0x150] sm:$0xff]
    %v70 = vld [vmem:[#allocation2 + $0x158] sm:$0xff]
    %v71 = vld [vmem:[#allocation2 + $0x160] sm:$0xff]
    %v72 = vld [vmem:[#allocation2 + $0x168] sm:$0xff]
    %v73 = vld [vmem:[#allocation2 + $0x170] sm:$0xff]
    %v74 = vld [vmem:[#allocation2 + $0x178] sm:$0xff]
    %v75 = vld [vmem:[#allocation2 + $0x180] sm:$0xff]
    %v76 = vld [vmem:[#allocation2 + $0x188] sm:$0xff]
    %v77 = vld [vmem:[#allocation2 + $0x190] sm:$0xff]
    %v78 = vld [vmem:[#allocation2 + $0x198] sm:$0xff]
    %v79 = vld [vmem:[#allocation2 + $0x1a0] sm:$0xff]
    %v80 = vld [vmem:[#allocation2 + $0x1a8] sm:$0xff]
    %v81 = vld [vmem:[#allocation2 + $0x1b0] sm:$0xff]
    %v82 = vld [vmem:[#allocation2 + $0x1b8] sm:$0xff]
    %v83 = vld [vmem:[#allocation2 + $0x1c0] sm:$0xff]
    %v84 = vld [vmem:[#allocation2 + $0x1c8] sm:$0xff]
    %v85 = vld [vmem:[#allocation2 + $0x1d0] sm:$0xff]
    %v86 = vld [vmem:[#allocation2 + $0x1d8] sm:$0xff]
    %v87 = vld [vmem:[#allocation2 + $0x1e0] sm:$0xff]
    %v88 = vld [vmem:[#allocation2 + $0x1e8] sm:$0xff]
    %v89 = vld [vmem:[#allocation2 + $0x1f0] sm:$0xff]
    %v90 = vld [vmem:[#allocation2 + $0x1f8] sm:$0xff]
    %v91 = vld [vmem:[#allocation2 + $0x200] sm:$0xff]
    %v92 = vld [vmem:[#allocation2 + $0x208] sm:$0xff]
    %v93 = vld [vmem:[#allocation2 + $0x210] sm:$0xff]
    %v94 = vld [vmem:[#allocation2 + $0x218] sm:$0xff]
    %v95 = vld [vmem:[#allocation2 + $0x220] sm:$0xff]
    %v96 = vld [vmem:[#allocation2 + $0x228] sm:$0xff]
    %v97 = vld [vmem:[#allocation2 + $0x230] sm:$0xff]
    %v98 = vld [vmem:[#allocation2 + $0x238] sm:$0xff]
    %v99 = vld [vmem:[#allocation2 + $0x240] sm:$0xff]
    %v100 = vld [vmem:[#allocation2 + $0x248] sm:$0xff]
    %v101 = vld [vmem:[#allocation2 + $0x250] sm:$0xff]
    %v102 = vld [vmem:[#allocation2 + $0x258] sm:$0xff]
    %v103 = vld [vmem:[#allocation2 + $0x260] sm:$0xff]
    %v104 = vld [vmem:[#allocation2 + $0x268] sm:$0xff]
    %v105 = vld [vmem:[#allocation2 + $0x270] sm:$0xff]
    %v106 = vld [vmem:[#allocation2 + $0x278] sm:$0xff]
    %v107 = vld [vmem:[#allocation2 + $0x280] sm:$0xff]
    %v108 = vld [vmem:[#allocation2 + $0x288] sm:$0xff]
    %v109 = vld [vmem:[#allocation2 + $0x290] sm:$0xff]
    %v110 = vld [vmem:[#allocation2 + $0x298] sm:$0xff]
    %v111 = vld [vmem:[#allocation2 + $0x2a0] sm:$0xff]
    %v112 = vld [vmem:[#allocation2 + $0x2a8] sm:$0xff]
    %v113 = vld [vmem:[#allocation2 + $0x2b0] sm:$0xff]
    %v114 = vld [vmem:[#allocation2 + $0x2b8] sm:$0xff]
    %v115 = vld [vmem:[#allocation2 + $0x2c0] sm:$0xff]
    %v116 = vld [vmem:[#allocation2 + $0x2c8] sm:$0xff]
    %v117 = vld [vmem:[#allocation2 + $0x2d0] sm:$0xff]
    %v118 = vld [vmem:[#allocation2 + $0x2d8] sm:$0xff]
    %v119 = vld [vmem:[#allocation2 + $0x2e0] sm:$0xff]
    %v120 = vld [vmem:[#allocation2 + $0x2e8] sm:$0xff]
    %v121 = vld [vmem:[#allocation2 + $0x2f0] sm:$0xff]
    %v122 = vld [vmem:[#allocation2 + $0x2f8] sm:$0xff]
    %v123 = vld [vmem:[#allocation2 + $0x300] sm:$0xff]
    %v124 = vld [vmem:[#allocation2 + $0x308] sm:$0xff]
    %v125 = vld [vmem:[#allocation2 + $0x310] sm:$0xff]
    %v126 = vld [vmem:[#allocation2 + $0x318] sm:$0xff]
    %v127 = vld [vmem:[#allocation2 + $0x320] sm:$0xff]
    %v128 = vld [vmem:[#allocation2 + $0x328] sm:$0xff]
    %v129 = vld [vmem:[#allocation2 + $0x330] sm:$0xff]
    %v130 = vld [vmem:[#allocation2 + $0x338] sm:$0xff]
    %v131 = vld [vmem:[#allocation2 + $0x340] sm:$0xff]
    %v132 = vld [vmem:[#allocation2 + $0x348] sm:$0xff]
    %v133 = vld [vmem:[#allocation2 + $0x350] sm:$0xff]
    %v134 = vld [vmem:[#allocation2 + $0x358] sm:$0xff]
    %v135 = vld [vmem:[#allocation2 + $0x360] sm:$0xff]
    %v136 = vld [vmem:[#allocation2 + $0x368] sm:$0xff]
    %v137 = vld [vmem:[#allocation2 + $0x370] sm:$0xff]
    %v138 = vld [vmem:[#allocation2 + $0x378] sm:$0xff]
    %v139 = vld [vmem:[#allocation2 + $0x380] sm:$0xff]
    %v140 = vld [vmem:[#allocation2 + $0x388] sm:$0xff]
    %v141 = vld [vmem:[#allocation2 + $0x390] sm:$0xff]
    %v142 = vld [vmem:[#allocation2 + $0x398] sm:$0xff]
    %v143 = vld [vmem:[#allocation2 + $0x3a0] sm:$0xff]
    %v144 = vld [vmem:[#allocation2 + $0x3a8] sm:$0xff]
    %v145 = vld [vmem:[#allocation2 + $0x3b0] sm:$0xff]
    %v146 = vld [vmem:[#allocation2 + $0x3b8] sm:$0xff]
    %v147 = vld [vmem:[#allocation2 + $0x3c0] sm:$0xff]
    %v148 = vld [vmem:[#allocation2 + $0x3c8] sm:$0xff]
    %v149 = vld [vmem:[#allocation2 + $0x3d0] sm:$0xff]
    %v150 = vld [vmem:[#allocation2 + $0x3d8] sm:$0xff]
    %v151 = vld [vmem:[#allocation2 + $0x3e0] sm:$0xff]
    %v152 = vld [vmem:[#allocation2 + $0x3e8] sm:$0xff]
    %v153 = vld [vmem:[#allocation2 + $0x3f0] sm:$0xff]
    %v154 = vld [vmem:[#allocation2 + $0x3f8] sm:$0xff]
    %v155 = vld [vmem:[#allocation2 + $0x400] sm:$0xff]
    %v156 = vld [vmem:[#allocation2 + $0x408] sm:$0xff]
    %v157 = vld [vmem:[#allocation2 + $0x410] sm:$0xff]
    %v158 = vld [vmem:[#allocation2 + $0x418] sm:$0xff]
    %v159 = vld [vmem:[#allocation2 + $0x420] sm:$0xff]
    %v160 = vld [vmem:[#allocation2 + $0x428] sm:$0xff]
    %v161 = vld [vmem:[#allocation2 + $0x430] sm:$0xff]
    %v162 = vld [vmem:[#allocation2 + $0x438] sm:$0xff]
    %v163 = vld [vmem:[#allocation2 + $0x440] sm:$0xff]
    %v164 = vld [vmem:[#allocation2 + $0x448] sm:$0xff]
    %v165 = vld [vmem:[#allocation2 + $0x450] sm:$0xff]
    %v166 = vld [vmem:[#allocation2 + $0x458] sm:$0xff]
    %v167 = vld [vmem:[#allocation2 + $0x460] sm:$0xff]
    %v168 = vld [vmem:[#allocation2 + $0x468] sm:$0xff]
    %v169 = vld [vmem:[#allocation2 + $0x470] sm:$0xff]
    %v170 = vld [vmem:[#allocation2 + $0x478] sm:$0xff]
    %v171 = vld [vmem:[#allocation2 + $0x480] sm:$0xff]
    %v172 = vld [vmem:[#allocation2 + $0x488] sm:$0xff]
    %v173 = vld [vmem:[#allocation2 + $0x490] sm:$0xff]
    %v174 = vld [vmem:[#allocation2 + $0x498] sm:$0xff]
    %v175 = vld [vmem:[#allocation2 + $0x4a0] sm:$0xff]
    %v176 = vld [vmem:[#allocation2 + $0x4a8] sm:$0xff]
    %v177 = vld [vmem:[#allocation2 + $0x4b0] sm:$0xff]
    %v178 = vld [vmem:[#allocation2 + $0x4b8] sm:$0xff]
    %v179 = vld [vmem:[#allocation2 + $0x4c0] sm:$0xff]
    %v180 = vld [vmem:[#allocation2 + $0x4c8] sm:$0xff]
    %v181 = vld [vmem:[#allocation2 + $0x4d0] sm:$0xff]
    %v182 = vld [vmem:[#allocation2 + $0x4d8] sm:$0xff]
    %v183 = vld [vmem:[#allocation2 + $0x4e0] sm:$0xff]
    %v184 = vld [vmem:[#allocation2 + $0x4e8] sm:$0xff]
    %v185 = vld [vmem:[#allocation2 + $0x4f0] sm:$0xff]
    %v186 = vld [vmem:[#allocation2 + $0x4f8] sm:$0xff]
    %v187 = vld [vmem:[#allocation2 + $0x500] sm:$0xff]
    %v188 = vld [vmem:[#allocation2 + $0x508] sm:$0xff]
    %v189 = vld [vmem:[#allocation2 + $0x510] sm:$0xff]
    %v190 = vld [vmem:[#allocation2 + $0x518] sm:$0xff]
    %v191 = vld [vmem:[#allocation2 + $0x520] sm:$0xff]
    %v192 = vld [vmem:[#allocation2 + $0x528] sm:$0xff]
    %v193 = vld [vmem:[#allocation2 + $0x530] sm:$0xff]
    %v194 = vld [vmem:[#allocation2 + $0x538] sm:$0xff]
    %v195 = vld [vmem:[#allocation2 + $0x540] sm:$0xff]
    %v196 = vld [vmem:[#allocation2 + $0x548] sm:$0xff]
    %v197 = vld [vmem:[#allocation2 + $0x550] sm:$0xff]
    %v198 = vld [vmem:[#allocation2 + $0x558] sm:$0xff]
    %v199 = vld [vmem:[#allocation2 + $0x560] sm:$0xff]
    %v200 = vld [vmem:[#allocation2 + $0x568] sm:$0xff]
    %v201 = vld [vmem:[#allocation2 + $0x570] sm:$0xff]
    %v202 = vld [vmem:[#allocation2 + $0x578] sm:$0xff]
    %v203 = vld [vmem:[#allocation2 + $0x580] sm:$0xff]
    %v204 = vld [vmem:[#allocation2 + $0x588] sm:$0xff]
    %v205 = vld [vmem:[#allocation2 + $0x590] sm:$0xff]
    %v206 = vld [vmem:[#allocation2 + $0x598] sm:$0xff]
    %v207 = vld [vmem:[#allocation2 + $0x5a0] sm:$0xff]
    %v208 = vld [vmem:[#allocation2 + $0x5a8] sm:$0xff]
    %v209 = vld [vmem:[#allocation2 + $0x5b0] sm:$0xff]
    %v210 = vld [vmem:[#allocation2 + $0x5b8] sm:$0xff]
    %v211 = vld [vmem:[#allocation2 + $0x5c0] sm:$0xff]
    %v212 = vld [vmem:[#allocation2 + $0x5c8] sm:$0xff]
    %v213 = vld [vmem:[#allocation2 + $0x5d0] sm:$0xff]
    %v214 = vld [vmem:[#allocation2 + $0x5d8] sm:$0xff]
    %v215 = vld [vmem:[#allocation2 + $0x5e0] sm:$0xff]
    %v216 = vld [vmem:[#allocation2 + $0x5e8] sm:$0xff]
    %v217 = vld [vmem:[#allocation2 + $0x5f0] sm:$0xff]
    %v218 = vld [vmem:[#allocation2 + $0x5f8] sm:$0xff]
    %v219 = vld [vmem:[#allocation2 + $0x600] sm:$0xff]
    %v220 = vld [vmem:[#allocation2 + $0x608] sm:$0xff]
    %v221 = vld [vmem:[#allocation2 + $0x610] sm:$0xff]
    %v222 = vld [vmem:[#allocation2 + $0x618] sm:$0xff]
    %v223 = vld [vmem:[#allocation2 + $0x620] sm:$0xff]
    %v224 = vld [vmem:[#allocation2 + $0x628] sm:$0xff]
    %v225 = vld [vmem:[#allocation2 + $0x630] sm:$0xff]
    %v226 = vld [vmem:[#allocation2 + $0x638] sm:$0xff]
    %v227 = vld [vmem:[#allocation2 + $0x640] sm:$0xff]
    %v228 = vld [vmem:[#allocation2 + $0x648] sm:$0xff]
    %v229 = vld [vmem:[#allocation2 + $0x650] sm:$0xff]
    %v230 = vld [vmem:[#allocation2 + $0x658] sm:$0xff]
    %v231 = vld [vmem:[#allocation2 + $0x660] sm:$0xff]
    %v232 = vld [vmem:[#allocation2 + $0x668] sm:$0xff]
    %v233 = vld [vmem:[#allocation2 + $0x670] sm:$0xff]
    %v234 = vld [vmem:[#allocation2 + $0x678] sm:$0xff]
    %v235 = vld [vmem:[#allocation2 + $0x680] sm:$0xff]
    %v236 = vld [vmem:[#allocation2 + $0x688] sm:$0xff]
    %v237 = vld [vmem:[#allocation2 + $0x690] sm:$0xff]
    %v238 = vld [vmem:[#allocation2 + $0x698] sm:$0xff]
    %v239 = vld [vmem:[#allocation2 + $0x6a0] sm:$0xff]
    %v240 = vld [vmem:[#allocation2 + $0x6a8] sm:$0xff]
    %v241 = vld [vmem:[#allocation2 + $0x6b0] sm:$0xff]
    %v242 = vld [vmem:[#allocation2 + $0x6b8] sm:$0xff]
    %v243 = vld [vmem:[#allocation2 + $0x6c0] sm:$0xff]
    %v244 = vld [vmem:[#allocation2 + $0x6c8] sm:$0xff]
    %v245 = vld [vmem:[#allocation2 + $0x6d0] sm:$0xff]
    %v246 = vld [vmem:[#allocation2 + $0x6d8] sm:$0xff]
    %v247 = vld [vmem:[#allocation2 + $0x6e0] sm:$0xff]
    %v248 = vld [vmem:[#allocation2 + $0x6e8] sm:$0xff]
    %v249 = vld [vmem:[#allocation2 + $0x6f0] sm:$0xff]
    %v250 = vld [vmem:[#allocation2 + $0x6f8] sm:$0xff]
    %v251 = vld [vmem:[#allocation2 + $0x700] sm:$0xff]
    %v252 = vld [vmem:[#allocation2 + $0x708] sm:$0xff]
    %v253 = vld [vmem:[#allocation2 + $0x710] sm:$0xff]
    %v254 = vld [vmem:[#allocation2 + $0x718] sm:$0xff]
    %v255 = vld [vmem:[#allocation2 + $0x720] sm:$0xff]
    %v256 = vld [vmem:[#allocation2 + $0x728] sm:$0xff]
    %v257 = vld [vmem:[#allocation2 + $0x730] sm:$0xff]
    %v258 = vld [vmem:[#allocation2 + $0x738] sm:$0xff]
    %v259 = vld [vmem:[#allocation2 + $0x740] sm:$0xff]
    %v260 = vld [vmem:[#allocation2 + $0x748] sm:$0xff]
    %v261 = vld [vmem:[#allocation2 + $0x750] sm:$0xff]
    %v262 = vld [vmem:[#allocation2 + $0x758] sm:$0xff]
    %v263 = vld [vmem:[#allocation2 + $0x760] sm:$0xff]
    %v264 = vld [vmem:[#allocation2 + $0x768] sm:$0xff]
    %v265 = vld [vmem:[#allocation2 + $0x770] sm:$0xff]
    %v266 = vld [vmem:[#allocation2 + $0x778] sm:$0xff]
    %v267 = vld [vmem:[#allocation2 + $0x780] sm:$0xff]
    %v268 = vld [vmem:[#allocation2 + $0x788] sm:$0xff]
    %v269 = vld [vmem:[#allocation2 + $0x790] sm:$0xff]
    %v270 = vld [vmem:[#allocation2 + $0x798] sm:$0xff]
    %v271 = vld [vmem:[#allocation2 + $0x7a0] sm:$0xff]
    %v272 = vld [vmem:[#allocation2 + $0x7a8] sm:$0xff]
    %v273 = vld [vmem:[#allocation2 + $0x7b0] sm:$0xff]
    %v274 = vld [vmem:[#allocation2 + $0x7b8] sm:$0xff]
    %v275 = vld [vmem:[#allocation2 + $0x7c0] sm:$0xff]
    %v276 = vld [vmem:[#allocation2 + $0x7c8] sm:$0xff]
    %v277 = vld [vmem:[#allocation2 + $0x7d0] sm:$0xff]
    %v278 = vld [vmem:[#allocation2 + $0x7d8] sm:$0xff]
    %v279 = vld [vmem:[#allocation2 + $0x7e0] sm:$0xff]
    %v280 = vld [vmem:[#allocation2 + $0x7e8] sm:$0xff]
    %v281 = vld [vmem:[#allocation2 + $0x7f0] sm:$0xff]
    %v282 = vld [vmem:[#allocation2 + $0x7f8] sm:$0xff]
    %v283 = vld [vmem:[#allocation2 + $0x800] sm:$0xff]
    %v284 = vld [vmem:[#allocation2 + $0x808] sm:$0xff]
    %v285 = vld [vmem:[#allocation2 + $0x810] sm:$0xff]
    %v286 = vld [vmem:[#allocation2 + $0x818] sm:$0xff]
    %v287 = vld [vmem:[#allocation2 + $0x820] sm:$0xff]
    %v288 = vld [vmem:[#allocation2 + $0x828] sm:$0xff]
    %v289 = vld [vmem:[#allocation2 + $0x830] sm:$0xff]
    %v290 = vld [vmem:[#allocation2 + $0x838] sm:$0xff]
    %v291 = vld [vmem:[#allocation2 + $0x840] sm:$0xff]
    %v292 = vld [vmem:[#allocation2 + $0x848] sm:$0xff]
    %v293 = vld [vmem:[#allocation2 + $0x850] sm:$0xff]
    %v294 = vld [vmem:[#allocation2 + $0x858] sm:$0xff]
    %v295 = vld [vmem:[#allocation2 + $0x860] sm:$0xff]
    %v296 = vld [vmem:[#allocation2 + $0x868] sm:$0xff]
    %v297 = vld [vmem:[#allocation2 + $0x870] sm:$0xff]
    %v298 = vld [vmem:[#allocation2 + $0x878] sm:$0xff]
    %v299 = vld [vmem:[#allocation2 + $0x880] sm:$0xff]
    %v300 = vld [vmem:[#allocation2 + $0x888] sm:$0xff]
    %v301 = vld [vmem:[#allocation2 + $0x890] sm:$0xff]
    %v302 = vld [vmem:[#allocation2 + $0x898] sm:$0xff]
    %v303 = vld [vmem:[#allocation2 + $0x8a0] sm:$0xff]
    %v304 = vld [vmem:[#allocation2 + $0x8a8] sm:$0xff]
    %v305 = vld [vmem:[#allocation2 + $0x8b0] sm:$0xff]
    %v306 = vld [vmem:[#allocation2 + $0x8b8] sm:$0xff]
    %v307 = vld [vmem:[#allocation2 + $0x8c0] sm:$0xff]
    %v308 = vld [vmem:[#allocation2 + $0x8c8] sm:$0xff]
    %v309 = vld [vmem:[#allocation2 + $0x8d0] sm:$0xff]
    %v310 = vld [vmem:[#allocation2 + $0x8d8] sm:$0xff]
    %v311 = vld [vmem:[#allocation2 + $0x8e0] sm:$0xff]
    %v312 = vld [vmem:[#allocation2 + $0x8e8] sm:$0xff]
    %v313 = vld [vmem:[#allocation2 + $0x8f0] sm:$0xff]
    %v314 = vld [vmem:[#allocation2 + $0x8f8] sm:$0xff]
    %s315 = scalar_lea.vmem [#allocation2], 2304
    %v316 = vld [vmem:[%s315] ss:$8 sm:$0xf]
    %v317 = vld [vmem:[%s315] ss:$8 sm:$0xf0]
    %v318 = vor.u32 %v316, %v317
    %s319 = scalar_lea.vmem [#allocation2], 2305
    %v320 = vld [vmem:[%s319] ss:$8 sm:$0x3]
    %v321 = vld [vmem:[#allocation2 + $0x911] ss:$0 sm:$0xff]
    %v322 = vld [vmem:[%s0] sm:$0xff]
    %v323 = vld [vmem:[%s0 + $0x8] sm:$0xff]
    %v324 = vld [vmem:[%s0 + $0x10] sm:$0xff]
    %v325 = vld [vmem:[%s0 + $0x18] sm:$0xff]
    %v326 = vld [vmem:[%s0 + $0x20] sm:$0xff]
    %v327 = vld [vmem:[%s0 + $0x28] sm:$0xff]
    %v328 = vld [vmem:[%s0 + $0x30] sm:$0xff]
    %v329 = vld [vmem:[%s0 + $0x38] sm:$0xff]
    %v331 = vperm.slane %v318, 0
    %v332 = vperm.slane %v318, 1
    %v333 = vperm.slane %v318, 2
    %v334 = vperm.slane %v318, 3
    %v335 = vperm.slane %v318, 4
    %v336 = vperm.slane %v318, 5
    %v337 = vperm.slane %v318, 6
    %v338 = vperm.slane %v318, 7
    %vm347 = vcmask 261120
    %v349 = vsel %vm347, %v322, 0
    %v352 = vsel %vm347, %v323, 0
    %v355 = vsel %vm347, %v324, 0
    %v358 = vsel %vm347, %v325, 0
    %v361 = vsel %vm347, %v326, 0
    %v364 = vsel %vm347, %v327, 0
    %v367 = vsel %vm347, %v328, 0
    %v370 = vsel %vm347, %v329, 0
    %372 = vmatpush.msra.mxu0 0.0
    %373 = vmatpush.msra.mxu0 0.0
    %374 = vmatpush.msra.mxu0 0.0
    %375 = vmatpush.msra.mxu0 0.0
    %376 = vmatpush.msra.mxu0 0.0
    %377 = vmatpush.msra.mxu0 0.0
    %378 = vmatpush.msra.mxu0 0.0
    %379 = vmatpush.msra.mxu0 0.0
    %380 = vmatpush.msra.mxu0 0.0
    %381 = vmatpush.msra.mxu0 0.0
    %382 = vmatpush.msra.mxu0 0.0
    %383 = vmatpush.msra.mxu0 0.0
    %384 = vmatpush.msra.mxu0 %v307
    %385 = vmatpush.msra.mxu0 %v299
    %386 = vmatpush.msra.mxu0 %v291
    %387 = vmatpush.msra.mxu0 %v283
    %388 = vmatmul.f32.gmra.mxu0 %v349
    %v389 = vpop.f32.mrf.mxu0
    %v390 = vadd.f32 %v331, %v389
    %391 = vmatmul.f32.gmra.mxu0 %v352
    %v392 = vpop.f32.mrf.mxu0
    %v393 = vadd.f32 %v331, %v392
    %394 = vmatmul.f32.gmra.mxu0 %v355
    %v395 = vpop.f32.mrf.mxu0
    %v396 = vadd.f32 %v331, %v395
    %397 = vmatmul.f32.gmra.mxu0 %v358
    %v398 = vpop.f32.mrf.mxu0
    %v399 = vadd.f32 %v331, %v398
    %400 = vmatmul.f32.gmra.mxu0 %v361
    %v401 = vpop.f32.mrf.mxu0
    %v402 = vadd.f32 %v331, %v401
    %403 = vmatmul.f32.gmra.mxu0 %v364
    %v404 = vpop.f32.mrf.mxu0
    %v405 = vadd.f32 %v331, %v404
    %406 = vmatmul.f32.gmra.mxu0 %v367
    %v407 = vpop.f32.mrf.mxu0
    %v408 = vadd.f32 %v331, %v407
    %409 = vmatmul.f32.gmra.mxu0 %v370
    %v410 = vpop.f32.mrf.mxu0
    %v411 = vadd.f32 %v331, %v410
    %412 = vdwg.mxu0
    %413 = vmatpush.msra.mxu0 0.0
    %414 = vmatpush.msra.mxu0 0.0
    %415 = vmatpush.msra.mxu0 0.0
    %416 = vmatpush.msra.mxu0 0.0
    %417 = vmatpush.msra.mxu0 0.0
    %418 = vmatpush.msra.mxu0 0.0
    %419 = vmatpush.msra.mxu0 0.0
    %420 = vmatpush.msra.mxu0 0.0
    %421 = vmatpush.msra.mxu0 0.0
    %422 = vmatpush.msra.mxu0 0.0
    %423 = vmatpush.msra.mxu0 0.0
    %424 = vmatpush.msra.mxu0 0.0
    %425 = vmatpush.msra.mxu0 %v308
    %426 = vmatpush.msra.mxu0 %v300
    %427 = vmatpush.msra.mxu0 %v292
    %428 = vmatpush.msra.mxu0 %v284
    %429 = vmatmul.f32.gmra.mxu0 %v349
    %v430 = vpop.f32.mrf.mxu0
    %v431 = vadd.f32 %v332, %v430
    %432 = vmatmul.f32.gmra.mxu0 %v352
    %v433 = vpop.f32.mrf.mxu0
    %v434 = vadd.f32 %v332, %v433
    %435 = vmatmul.f32.gmra.mxu0 %v355
    %v436 = vpop.f32.mrf.mxu0
    %v437 = vadd.f32 %v332, %v436
    %438 = vmatmul.f32.gmra.mxu0 %v358
    %v439 = vpop.f32.mrf.mxu0
    %v440 = vadd.f32 %v332, %v439
    %441 = vmatmul.f32.gmra.mxu0 %v361
    %v442 = vpop.f32.mrf.mxu0
    %v443 = vadd.f32 %v332, %v442
    %444 = vmatmul.f32.gmra.mxu0 %v364
    %v445 = vpop.f32.mrf.mxu0
    %v446 = vadd.f32 %v332, %v445
    %447 = vmatmul.f32.gmra.mxu0 %v367
    %v448 = vpop.f32.mrf.mxu0
    %v449 = vadd.f32 %v332, %v448
    %450 = vmatmul.f32.gmra.mxu0 %v370
    %v451 = vpop.f32.mrf.mxu0
    %v452 = vadd.f32 %v332, %v451
    %453 = vdwg.mxu0
    %454 = vmatpush.msra.mxu0 0.0
    %455 = vmatpush.msra.mxu0 0.0
    %456 = vmatpush.msra.mxu0 0.0
    %457 = vmatpush.msra.mxu0 0.0
    %458 = vmatpush.msra.mxu0 0.0
    %459 = vmatpush.msra.mxu0 0.0
    %460 = vmatpush.msra.mxu0 0.0
    %461 = vmatpush.msra.mxu0 0.0
    %462 = vmatpush.msra.mxu0 0.0
    %463 = vmatpush.msra.mxu0 0.0
    %464 = vmatpush.msra.mxu0 0.0
    %465 = vmatpush.msra.mxu0 0.0
    %466 = vmatpush.msra.mxu0 %v309
    %467 = vmatpush.msra.mxu0 %v301
    %468 = vmatpush.msra.mxu0 %v293
    %469 = vmatpush.msra.mxu0 %v285
    %470 = vmatmul.f32.gmra.mxu0 %v349
    %v471 = vpop.f32.mrf.mxu0
    %v472 = vadd.f32 %v333, %v471
    %473 = vmatmul.f32.gmra.mxu0 %v352
    %v474 = vpop.f32.mrf.mxu0
    %v475 = vadd.f32 %v333, %v474
    %476 = vmatmul.f32.gmra.mxu0 %v355
    %v477 = vpop.f32.mrf.mxu0
    %v478 = vadd.f32 %v333, %v477
    %479 = vmatmul.f32.gmra.mxu0 %v358
    %v480 = vpop.f32.mrf.mxu0
    %v481 = vadd.f32 %v333, %v480
    %482 = vmatmul.f32.gmra.mxu0 %v361
    %v483 = vpop.f32.mrf.mxu0
    %v484 = vadd.f32 %v333, %v483
    %485 = vmatmul.f32.gmra.mxu0 %v364
    %v486 = vpop.f32.mrf.mxu0
    %v487 = vadd.f32 %v333, %v486
    %488 = vmatmul.f32.gmra.mxu0 %v367
    %v489 = vpop.f32.mrf.mxu0
    %v490 = vadd.f32 %v333, %v489
    %491 = vmatmul.f32.gmra.mxu0 %v370
    %v492 = vpop.f32.mrf.mxu0
    %v493 = vadd.f32 %v333, %v492
    %494 = vdwg.mxu0
    %495 = vmatpush.msra.mxu0 0.0
    %496 = vmatpush.msra.mxu0 0.0
    %497 = vmatpush.msra.mxu0 0.0
    %498 = vmatpush.msra.mxu0 0.0
    %499 = vmatpush.msra.mxu0 0.0
    %500 = vmatpush.msra.mxu0 0.0
    %501 = vmatpush.msra.mxu0 0.0
    %502 = vmatpush.msra.mxu0 0.0
    %503 = vmatpush.msra.mxu0 0.0
    %504 = vmatpush.msra.mxu0 0.0
    %505 = vmatpush.msra.mxu0 0.0
    %506 = vmatpush.msra.mxu0 0.0
    %507 = vmatpush.msra.mxu0 %v310
    %508 = vmatpush.msra.mxu0 %v302
    %509 = vmatpush.msra.mxu0 %v294
    %510 = vmatpush.msra.mxu0 %v286
    %511 = vmatmul.f32.gmra.mxu0 %v349
    %v512 = vpop.f32.mrf.mxu0
    %v513 = vadd.f32 %v334, %v512
    %514 = vmatmul.f32.gmra.mxu0 %v352
    %v515 = vpop.f32.mrf.mxu0
    %v516 = vadd.f32 %v334, %v515
    %517 = vmatmul.f32.gmra.mxu0 %v355
    %v518 = vpop.f32.mrf.mxu0
    %v519 = vadd.f32 %v334, %v518
    %520 = vmatmul.f32.gmra.mxu0 %v358
    %v521 = vpop.f32.mrf.mxu0
    %v522 = vadd.f32 %v334, %v521
    %523 = vmatmul.f32.gmra.mxu0 %v361
    %v524 = vpop.f32.mrf.mxu0
    %v525 = vadd.f32 %v334, %v524
    %526 = vmatmul.f32.gmra.mxu0 %v364
    %v527 = vpop.f32.mrf.mxu0
    %v528 = vadd.f32 %v334, %v527
    %529 = vmatmul.f32.gmra.mxu0 %v367
    %v530 = vpop.f32.mrf.mxu0
    %v531 = vadd.f32 %v334, %v530
    %532 = vmatmul.f32.gmra.mxu0 %v370
    %v533 = vpop.f32.mrf.mxu0
    %v534 = vadd.f32 %v334, %v533
    %535 = vdwg.mxu0
    %536 = vmatpush.msra.mxu0 0.0
    %537 = vmatpush.msra.mxu0 0.0
    %538 = vmatpush.msra.mxu0 0.0
    %539 = vmatpush.msra.mxu0 0.0
    %540 = vmatpush.msra.mxu0 0.0
    %541 = vmatpush.msra.mxu0 0.0
    %542 = vmatpush.msra.mxu0 0.0
    %543 = vmatpush.msra.mxu0 0.0
    %544 = vmatpush.msra.mxu0 0.0
    %545 = vmatpush.msra.mxu0 0.0
    %546 = vmatpush.msra.mxu0 0.0
    %547 = vmatpush.msra.mxu0 0.0
    %548 = vmatpush.msra.mxu0 %v311
    %549 = vmatpush.msra.mxu0 %v303
    %550 = vmatpush.msra.mxu0 %v295
    %551 = vmatpush.msra.mxu0 %v287
    %552 = vmatmul.f32.gmra.mxu0 %v349
    %v553 = vpop.f32.mrf.mxu0
    %v554 = vadd.f32 %v335, %v553
    %555 = vmatmul.f32.gmra.mxu0 %v352
    %v556 = vpop.f32.mrf.mxu0
    %v557 = vadd.f32 %v335, %v556
    %558 = vmatmul.f32.gmra.mxu0 %v355
    %v559 = vpop.f32.mrf.mxu0
    %v560 = vadd.f32 %v335, %v559
    %561 = vmatmul.f32.gmra.mxu0 %v358
    %v562 = vpop.f32.mrf.mxu0
    %v563 = vadd.f32 %v335, %v562
    %564 = vmatmul.f32.gmra.mxu0 %v361
    %v565 = vpop.f32.mrf.mxu0
    %v566 = vadd.f32 %v335, %v565
    %567 = vmatmul.f32.gmra.mxu0 %v364
    %v568 = vpop.f32.mrf.mxu0
    %v569 = vadd.f32 %v335, %v568
    %570 = vmatmul.f32.gmra.mxu0 %v367
    %v571 = vpop.f32.mrf.mxu0
    %v572 = vadd.f32 %v335, %v571
    %573 = vmatmul.f32.gmra.mxu0 %v370
    %v574 = vpop.f32.mrf.mxu0
    %v575 = vadd.f32 %v335, %v574
    %576 = vdwg.mxu0
    %577 = vmatpush.msra.mxu0 0.0
    %578 = vmatpush.msra.mxu0 0.0
    %579 = vmatpush.msra.mxu0 0.0
    %580 = vmatpush.msra.mxu0 0.0
    %581 = vmatpush.msra.mxu0 0.0
    %582 = vmatpush.msra.mxu0 0.0
    %583 = vmatpush.msra.mxu0 0.0
    %584 = vmatpush.msra.mxu0 0.0
    %585 = vmatpush.msra.mxu0 0.0
    %586 = vmatpush.msra.mxu0 0.0
    %587 = vmatpush.msra.mxu0 0.0
    %588 = vmatpush.msra.mxu0 0.0
    %589 = vmatpush.msra.mxu0 %v312
    %590 = vmatpush.msra.mxu0 %v304
    %591 = vmatpush.msra.mxu0 %v296
    %592 = vmatpush.msra.mxu0 %v288
    %593 = vmatmul.f32.gmra.mxu0 %v349
    %v594 = vpop.f32.mrf.mxu0
    %v595 = vadd.f32 %v336, %v594
    %596 = vmatmul.f32.gmra.mxu0 %v352
    %v597 = vpop.f32.mrf.mxu0
    %v598 = vadd.f32 %v336, %v597
    %599 = vmatmul.f32.gmra.mxu0 %v355
    %v600 = vpop.f32.mrf.mxu0
    %v601 = vadd.f32 %v336, %v600
    %602 = vmatmul.f32.gmra.mxu0 %v358
    %v603 = vpop.f32.mrf.mxu0
    %v604 = vadd.f32 %v336, %v603
    %605 = vmatmul.f32.gmra.mxu0 %v361
    %v606 = vpop.f32.mrf.mxu0
    %v607 = vadd.f32 %v336, %v606
    %608 = vmatmul.f32.gmra.mxu0 %v364
    %v609 = vpop.f32.mrf.mxu0
    %v610 = vadd.f32 %v336, %v609
    %611 = vmatmul.f32.gmra.mxu0 %v367
    %v612 = vpop.f32.mrf.mxu0
    %v613 = vadd.f32 %v336, %v612
    %614 = vmatmul.f32.gmra.mxu0 %v370
    %v615 = vpop.f32.mrf.mxu0
    %v616 = vadd.f32 %v336, %v615
    %617 = vdwg.mxu0
    %618 = vmatpush.msra.mxu0 0.0
    %619 = vmatpush.msra.mxu0 0.0
    %620 = vmatpush.msra.mxu0 0.0
    %621 = vmatpush.msra.mxu0 0.0
    %622 = vmatpush.msra.mxu0 0.0
    %623 = vmatpush.msra.mxu0 0.0
    %624 = vmatpush.msra.mxu0 0.0
    %625 = vmatpush.msra.mxu0 0.0
    %626 = vmatpush.msra.mxu0 0.0
    %627 = vmatpush.msra.mxu0 0.0
    %628 = vmatpush.msra.mxu0 0.0
    %629 = vmatpush.msra.mxu0 0.0
    %630 = vmatpush.msra.mxu0 %v313
    %631 = vmatpush.msra.mxu0 %v305
    %632 = vmatpush.msra.mxu0 %v297
    %633 = vmatpush.msra.mxu0 %v289
    %634 = vmatmul.f32.gmra.mxu0 %v349
    %v635 = vpop.f32.mrf.mxu0
    %v636 = vadd.f32 %v337, %v635
    %637 = vmatmul.f32.gmra.mxu0 %v352
    %v638 = vpop.f32.mrf.mxu0
    %v639 = vadd.f32 %v337, %v638
    %640 = vmatmul.f32.gmra.mxu0 %v355
    %v641 = vpop.f32.mrf.mxu0
    %v642 = vadd.f32 %v337, %v641
    %643 = vmatmul.f32.gmra.mxu0 %v358
    %v644 = vpop.f32.mrf.mxu0
    %v645 = vadd.f32 %v337, %v644
    %646 = vmatmul.f32.gmra.mxu0 %v361
    %v647 = vpop.f32.mrf.mxu0
    %v648 = vadd.f32 %v337, %v647
    %649 = vmatmul.f32.gmra.mxu0 %v364
    %v650 = vpop.f32.mrf.mxu0
    %v651 = vadd.f32 %v337, %v650
    %652 = vmatmul.f32.gmra.mxu0 %v367
    %v653 = vpop.f32.mrf.mxu0
    %v654 = vadd.f32 %v337, %v653
    %655 = vmatmul.f32.gmra.mxu0 %v370
    %v656 = vpop.f32.mrf.mxu0
    %v657 = vadd.f32 %v337, %v656
    %658 = vdwg.mxu0
    %659 = vmatpush.msra.mxu0 0.0
    %660 = vmatpush.msra.mxu0 0.0
    %661 = vmatpush.msra.mxu0 0.0
    %662 = vmatpush.msra.mxu0 0.0
    %663 = vmatpush.msra.mxu0 0.0
    %664 = vmatpush.msra.mxu0 0.0
    %665 = vmatpush.msra.mxu0 0.0
    %666 = vmatpush.msra.mxu0 0.0
    %667 = vmatpush.msra.mxu0 0.0
    %668 = vmatpush.msra.mxu0 0.0
    %669 = vmatpush.msra.mxu0 0.0
    %670 = vmatpush.msra.mxu0 0.0
    %671 = vmatpush.msra.mxu0 %v314
    %672 = vmatpush.msra.mxu0 %v306
    %673 = vmatpush.msra.mxu0 %v298
    %674 = vmatpush.msra.mxu0 %v290
    %675 = vmatmul.f32.gmra.mxu0 %v349
    %v676 = vpop.f32.mrf.mxu0
    %v677 = vadd.f32 %v338, %v676
    %678 = vmatmul.f32.gmra.mxu0 %v352
    %v679 = vpop.f32.mrf.mxu0
    %v680 = vadd.f32 %v338, %v679
    %681 = vmatmul.f32.gmra.mxu0 %v355
    %v682 = vpop.f32.mrf.mxu0
    %v683 = vadd.f32 %v338, %v682
    %684 = vmatmul.f32.gmra.mxu0 %v358
    %v685 = vpop.f32.mrf.mxu0
    %v686 = vadd.f32 %v338, %v685
    %687 = vmatmul.f32.gmra.mxu0 %v361
    %v688 = vpop.f32.mrf.mxu0
    %v689 = vadd.f32 %v338, %v688
    %690 = vmatmul.f32.gmra.mxu0 %v364
    %v691 = vpop.f32.mrf.mxu0
    %v692 = vadd.f32 %v338, %v691
    %693 = vmatmul.f32.gmra.mxu0 %v367
    %v694 = vpop.f32.mrf.mxu0
    %v695 = vadd.f32 %v338, %v694
    %696 = vmatmul.f32.gmra.mxu0 %v370
    %v697 = vpop.f32.mrf.mxu0
    %v698 = vadd.f32 %v338, %v697
    %699 = vdwg.mxu0
    %v700 = vlaneseq
    %v701 = vand.u32 %v700, 127
    %v702 = vadd.s32 %v701, 128
    %vm703 = vcmp.lt.s32.totalorder %v701, 128
    %vm704 = vcmp.lt.s32.totalorder %v702, 128
    %v705 = vsel %vm703, 1, 0
    %v706 = vsel %vm704, 1, 0
    %v707 = vcvt.s32.f32 %v705
    %v708 = vcvt.s32.f32 %v706
    %v709 = vmul.f32 %v390, 0.5
    %v710 = vmul.f32 %v431, 0.5
    %v711 = vmul.f32 %v472, 0.5
    %v712 = vmul.f32 %v513, 0.5
    %v713 = vmul.f32 %v554, 0.5
    %v714 = vmul.f32 %v595, 0.5
    %v715 = vmul.f32 %v636, 0.5
    %v716 = vmul.f32 %v677, 0.5
    %v717 = vtanh.pop %v709
    %v718 = vtanh.pop %v710
    %v719 = vtanh.pop %v711
    %v720 = vtanh.pop %v712
    %v721 = vtanh.pop %v713
    %v722 = vtanh.pop %v714
    %v723 = vtanh.pop %v715
    %v724 = vtanh.pop %v716
    %v725 = vmul.f32 %v717, 0.5
    %v726 = vmul.f32 %v718, 0.5
    %v727 = vadd.f32 %v725, 0.5
    %v728 = vadd.f32 %v726, 0.5
    %v729 = vmul.f32 %v719, 0.5
    %v730 = vmul.f32 %v720, 0.5
    %v731 = vadd.f32 %v729, 0.5
    %v732 = vadd.f32 %v730, 0.5
    %v733 = vmul.f32 %v723, 0.5
    %v734 = vmul.f32 %v724, 0.5
    %v735 = vadd.f32 %v733, 0.5
    %v736 = vadd.f32 %v734, 0.5
    %v737 = vmul.f32 %v731, 0.0
    %v738 = vmul.f32 %v732, 0.0
    %v739 = vmul.f32 %v727, %v721
    %v740 = vmul.f32 %v728, %v722
    %v741 = vadd.f32 %v737, %v739
    %v742 = vadd.f32 %v738, %v740
    %v743 = vtanh.pop %v741
    %v744 = vtanh.pop %v742
    %v745 = vmul.f32 %v735, %v743
    %v746 = vmul.f32 %v736, %v744
    %v747 = vmul.f32 %v745, %v707
    %v748 = vmul.f32 %v746, %v708
    %v749 = vmul.f32 %v741, %v707
    %v750 = vmul.f32 %v742, %v708
    %751 = vmatpush.msra.mxu0 %v147
    %752 = vmatpush.msra.mxu0 %v139
    %753 = vmatpush.msra.mxu0 %v131
    %754 = vmatpush.msra.mxu0 %v123
    %755 = vmatpush.msra.mxu0 %v115
    %756 = vmatpush.msra.mxu0 %v107
    %757 = vmatpush.msra.mxu0 %v99
    %758 = vmatpush.msra.mxu0 %v91
    %759 = vmatpush.msra.mxu0 %v83
    %760 = vmatpush.msra.mxu0 %v75
    %761 = vmatpush.msra.mxu0 %v67
    %762 = vmatpush.msra.mxu0 %v59
    %763 = vmatpush.msra.mxu0 %v51
    %764 = vmatpush.msra.mxu0 %v43
    %765 = vmatpush.msra.mxu0 %v35
    %766 = vmatpush.msra.mxu0 %v27
    %767 = vmatmul.f32.gmra.mxu0 %v747
    %v768 = vpop.f32.mrf.mxu0
    %v769 = vadd.f32 %v393, %v768
    %770 = vdwg.mxu0
    %771 = vmatpush.msra.mxu0 %v275
    %772 = vmatpush.msra.mxu0 %v267
    %773 = vmatpush.msra.mxu0 %v259
    %774 = vmatpush.msra.mxu0 %v251
    %775 = vmatpush.msra.mxu0 %v243
    %776 = vmatpush.msra.mxu0 %v235
    %777 = vmatpush.msra.mxu0 %v227
    %778 = vmatpush.msra.mxu0 %v219
    %779 = vmatpush.msra.mxu0 %v211
    %780 = vmatpush.msra.mxu0 %v203
    %781 = vmatpush.msra.mxu0 %v195
    %782 = vmatpush.msra.mxu0 %v187
    %783 = vmatpush.msra.mxu0 %v179
    %784 = vmatpush.msra.mxu0 %v171
    %785 = vmatpush.msra.mxu0 %v163
    %786 = vmatpush.msra.mxu0 %v155
    %787 = vmatmul.f32.gmra.mxu0 %v748
    %v788 = vpop.f32.mrf.mxu0
    %v789 = vadd.f32 %v769, %v788
    %790 = vdwg.mxu0
    %791 = vmatpush.msra.mxu0 %v148
    %792 = vmatpush.msra.mxu0 %v140
    %793 = vmatpush.msra.mxu0 %v132
    %794 = vmatpush.msra.mxu0 %v124
    %795 = vmatpush.msra.mxu0 %v116
    %796 = vmatpush.msra.mxu0 %v108
    %797 = vmatpush.msra.mxu0 %v100
    %798 = vmatpush.msra.mxu0 %v92
    %799 = vmatpush.msra.mxu0 %v84
    %800 = vmatpush.msra.mxu0 %v76
    %801 = vmatpush.msra.mxu0 %v68
    %802 = vmatpush.msra.mxu0 %v60
    %803 = vmatpush.msra.mxu0 %v52
    %804 = vmatpush.msra.mxu0 %v44
    %805 = vmatpush.msra.mxu0 %v36
    %806 = vmatpush.msra.mxu0 %v28
    %807 = vmatmul.f32.gmra.mxu0 %v747
    %v808 = vpop.f32.mrf.mxu0
    %v809 = vadd.f32 %v434, %v808
    %810 = vdwg.mxu0
    %811 = vmatpush.msra.mxu0 %v276
    %812 = vmatpush.msra.mxu0 %v268
    %813 = vmatpush.msra.mxu0 %v260
    %814 = vmatpush.msra.mxu0 %v252
    %815 = vmatpush.msra.mxu0 %v244
    %816 = vmatpush.msra.mxu0 %v236
    %817 = vmatpush.msra.mxu0 %v228
    %818 = vmatpush.msra.mxu0 %v220
    %819 = vmatpush.msra.mxu0 %v212
    %820 = vmatpush.msra.mxu0 %v204
    %821 = vmatpush.msra.mxu0 %v196
    %822 = vmatpush.msra.mxu0 %v188
    %823 = vmatpush.msra.mxu0 %v180
    %824 = vmatpush.msra.mxu0 %v172
    %825 = vmatpush.msra.mxu0 %v164
    %826 = vmatpush.msra.mxu0 %v156
    %827 = vmatmul.f32.gmra.mxu0 %v748
    %v828 = vpop.f32.mrf.mxu0
    %v829 = vadd.f32 %v809, %v828
    %830 = vdwg.mxu0
    %831 = vmatpush.msra.mxu0 %v149
    %832 = vmatpush.msra.mxu0 %v141
    %833 = vmatpush.msra.mxu0 %v133
    %834 = vmatpush.msra.mxu0 %v125
    %835 = vmatpush.msra.mxu0 %v117
    %836 = vmatpush.msra.mxu0 %v109
    %837 = vmatpush.msra.mxu0 %v101
    %838 = vmatpush.msra.mxu0 %v93
    %839 = vmatpush.msra.mxu0 %v85
    %840 = vmatpush.msra.mxu0 %v77
    %841 = vmatpush.msra.mxu0 %v69
    %842 = vmatpush.msra.mxu0 %v61
    %843 = vmatpush.msra.mxu0 %v53
    %844 = vmatpush.msra.mxu0 %v45
    %845 = vmatpush.msra.mxu0 %v37
    %846 = vmatpush.msra.mxu0 %v29
    %847 = vmatmul.f32.gmra.mxu0 %v747
    %v848 = vpop.f32.mrf.mxu0
    %v849 = vadd.f32 %v475, %v848
    %850 = vdwg.mxu0
    %851 = vmatpush.msra.mxu0 %v277
    %852 = vmatpush.msra.mxu0 %v269
    %853 = vmatpush.msra.mxu0 %v261
    %854 = vmatpush.msra.mxu0 %v253
    %855 = vmatpush.msra.mxu0 %v245
    %856 = vmatpush.msra.mxu0 %v237
    %857 = vmatpush.msra.mxu0 %v229
    %858 = vmatpush.msra.mxu0 %v221
    %859 = vmatpush.msra.mxu0 %v213
    %860 = vmatpush.msra.mxu0 %v205
    %861 = vmatpush.msra.mxu0 %v197
    %862 = vmatpush.msra.mxu0 %v189
    %863 = vmatpush.msra.mxu0 %v181
    %864 = vmatpush.msra.mxu0 %v173
    %865 = vmatpush.msra.mxu0 %v165
    %866 = vmatpush.msra.mxu0 %v157
    %867 = vmatmul.f32.gmra.mxu0 %v748
    %v868 = vpop.f32.mrf.mxu0
    %v869 = vadd.f32 %v849, %v868
    %870 = vdwg.mxu0
    %871 = vmatpush.msra.mxu0 %v150
    %872 = vmatpush.msra.mxu0 %v142
    %873 = vmatpush.msra.mxu0 %v134
    %874 = vmatpush.msra.mxu0 %v126
    %875 = vmatpush.msra.mxu0 %v118
    %876 = vmatpush.msra.mxu0 %v110
    %877 = vmatpush.msra.mxu0 %v102
    %878 = vmatpush.msra.mxu0 %v94
    %879 = vmatpush.msra.mxu0 %v86
    %880 = vmatpush.msra.mxu0 %v78
    %881 = vmatpush.msra.mxu0 %v70
    %882 = vmatpush.msra.mxu0 %v62
    %883 = vmatpush.msra.mxu0 %v54
    %884 = vmatpush.msra.mxu0 %v46
    %885 = vmatpush.msra.mxu0 %v38
    %886 = vmatpush.msra.mxu0 %v30
    %887 = vmatmul.f32.gmra.mxu0 %v747
    %v888 = vpop.f32.mrf.mxu0
    %v889 = vadd.f32 %v516, %v888
    %890 = vdwg.mxu0
    %891 = vmatpush.msra.mxu0 %v278
    %892 = vmatpush.msra.mxu0 %v270
    %893 = vmatpush.msra.mxu0 %v262
    %894 = vmatpush.msra.mxu0 %v254
    %895 = vmatpush.msra.mxu0 %v246
    %896 = vmatpush.msra.mxu0 %v238
    %897 = vmatpush.msra.mxu0 %v230
    %898 = vmatpush.msra.mxu0 %v222
    %899 = vmatpush.msra.mxu0 %v214
    %900 = vmatpush.msra.mxu0 %v206
    %901 = vmatpush.msra.mxu0 %v198
    %902 = vmatpush.msra.mxu0 %v190
    %903 = vmatpush.msra.mxu0 %v182
    %904 = vmatpush.msra.mxu0 %v174
    %905 = vmatpush.msra.mxu0 %v166
    %906 = vmatpush.msra.mxu0 %v158
    %907 = vmatmul.f32.gmra.mxu0 %v748
    %v908 = vpop.f32.mrf.mxu0
    %v909 = vadd.f32 %v889, %v908
    %910 = vdwg.mxu0
    %911 = vmatpush.msra.mxu0 %v151
    %912 = vmatpush.msra.mxu0 %v143
    %913 = vmatpush.msra.mxu0 %v135
    %914 = vmatpush.msra.mxu0 %v127
    %915 = vmatpush.msra.mxu0 %v119
    %916 = vmatpush.msra.mxu0 %v111
    %917 = vmatpush.msra.mxu0 %v103
    %918 = vmatpush.msra.mxu0 %v95
    %919 = vmatpush.msra.mxu0 %v87
    %920 = vmatpush.msra.mxu0 %v79
    %921 = vmatpush.msra.mxu0 %v71
    %922 = vmatpush.msra.mxu0 %v63
    %923 = vmatpush.msra.mxu0 %v55
    %924 = vmatpush.msra.mxu0 %v47
    %925 = vmatpush.msra.mxu0 %v39
    %926 = vmatpush.msra.mxu0 %v31
    %927 = vmatmul.f32.gmra.mxu0 %v747
    %v928 = vpop.f32.mrf.mxu0
    %v929 = vadd.f32 %v557, %v928
    %930 = vdwg.mxu0
    %931 = vmatpush.msra.mxu0 %v279
    %932 = vmatpush.msra.mxu0 %v271
    %933 = vmatpush.msra.mxu0 %v263
    %934 = vmatpush.msra.mxu0 %v255
    %935 = vmatpush.msra.mxu0 %v247
    %936 = vmatpush.msra.mxu0 %v239
    %937 = vmatpush.msra.mxu0 %v231
    %938 = vmatpush.msra.mxu0 %v223
    %939 = vmatpush.msra.mxu0 %v215
    %940 = vmatpush.msra.mxu0 %v207
    %941 = vmatpush.msra.mxu0 %v199
    %942 = vmatpush.msra.mxu0 %v191
    %943 = vmatpush.msra.mxu0 %v183
    %944 = vmatpush.msra.mxu0 %v175
    %945 = vmatpush.msra.mxu0 %v167
    %946 = vmatpush.msra.mxu0 %v159
    %947 = vmatmul.f32.gmra.mxu0 %v748
    %v948 = vpop.f32.mrf.mxu0
    %v949 = vadd.f32 %v929, %v948
    %950 = vdwg.mxu0
    %951 = vmatpush.msra.mxu0 %v152
    %952 = vmatpush.msra.mxu0 %v144
    %953 = vmatpush.msra.mxu0 %v136
    %954 = vmatpush.msra.mxu0 %v128
    %955 = vmatpush.msra.mxu0 %v120
    %956 = vmatpush.msra.mxu0 %v112
    %957 = vmatpush.msra.mxu0 %v104
    %958 = vmatpush.msra.mxu0 %v96
    %959 = vmatpush.msra.mxu0 %v88
    %960 = vmatpush.msra.mxu0 %v80
    %961 = vmatpush.msra.mxu0 %v72
    %962 = vmatpush.msra.mxu0 %v64
    %963 = vmatpush.msra.mxu0 %v56
    %964 = vmatpush.msra.mxu0 %v48
    %965 = vmatpush.msra.mxu0 %v40
    %966 = vmatpush.msra.mxu0 %v32
    %967 = vmatmul.f32.gmra.mxu0 %v747
    %v968 = vpop.f32.mrf.mxu0
    %v969 = vadd.f32 %v598, %v968
    %970 = vdwg.mxu0
    %971 = vmatpush.msra.mxu0 %v280
    %972 = vmatpush.msra.mxu0 %v272
    %973 = vmatpush.msra.mxu0 %v264
    %974 = vmatpush.msra.mxu0 %v256
    %975 = vmatpush.msra.mxu0 %v248
    %976 = vmatpush.msra.mxu0 %v240
    %977 = vmatpush.msra.mxu0 %v232
    %978 = vmatpush.msra.mxu0 %v224
    %979 = vmatpush.msra.mxu0 %v216
    %980 = vmatpush.msra.mxu0 %v208
    %981 = vmatpush.msra.mxu0 %v200
    %982 = vmatpush.msra.mxu0 %v192
    %983 = vmatpush.msra.mxu0 %v184
    %984 = vmatpush.msra.mxu0 %v176
    %985 = vmatpush.msra.mxu0 %v168
    %986 = vmatpush.msra.mxu0 %v160
    %987 = vmatmul.f32.gmra.mxu0 %v748
    %v988 = vpop.f32.mrf.mxu0
    %v989 = vadd.f32 %v969, %v988
    %990 = vdwg.mxu0
    %991 = vmatpush.msra.mxu0 %v153
    %992 = vmatpush.msra.mxu0 %v145
    %993 = vmatpush.msra.mxu0 %v137
    %994 = vmatpush.msra.mxu0 %v129
    %995 = vmatpush.msra.mxu0 %v121
    %996 = vmatpush.msra.mxu0 %v113
    %997 = vmatpush.msra.mxu0 %v105
    %998 = vmatpush.msra.mxu0 %v97
    %999 = vmatpush.msra.mxu0 %v89
    %1000 = vmatpush.msra.mxu0 %v81
    %1001 = vmatpush.msra.mxu0 %v73
    %1002 = vmatpush.msra.mxu0 %v65
    %1003 = vmatpush.msra.mxu0 %v57
    %1004 = vmatpush.msra.mxu0 %v49
    %1005 = vmatpush.msra.mxu0 %v41
    %1006 = vmatpush.msra.mxu0 %v33
    %1007 = vmatmul.f32.gmra.mxu0 %v747
    %v1008 = vpop.f32.mrf.mxu0
    %v1009 = vadd.f32 %v639, %v1008
    %1010 = vdwg.mxu0
    %1011 = vmatpush.msra.mxu0 %v281
    %1012 = vmatpush.msra.mxu0 %v273
    %1013 = vmatpush.msra.mxu0 %v265
    %1014 = vmatpush.msra.mxu0 %v257
    %1015 = vmatpush.msra.mxu0 %v249
    %1016 = vmatpush.msra.mxu0 %v241
    %1017 = vmatpush.msra.mxu0 %v233
    %1018 = vmatpush.msra.mxu0 %v225
    %1019 = vmatpush.msra.mxu0 %v217
    %1020 = vmatpush.msra.mxu0 %v209
    %1021 = vmatpush.msra.mxu0 %v201
    %1022 = vmatpush.msra.mxu0 %v193
    %1023 = vmatpush.msra.mxu0 %v185
    %1024 = vmatpush.msra.mxu0 %v177
    %1025 = vmatpush.msra.mxu0 %v169
    %1026 = vmatpush.msra.mxu0 %v161
    %1027 = vmatmul.f32.gmra.mxu0 %v748
    %v1028 = vpop.f32.mrf.mxu0
    %v1029 = vadd.f32 %v1009, %v1028
    %1030 = vdwg.mxu0
    %1031 = vmatpush.msra.mxu0 %v154
    %1032 = vmatpush.msra.mxu0 %v146
    %1033 = vmatpush.msra.mxu0 %v138
    %1034 = vmatpush.msra.mxu0 %v130
    %1035 = vmatpush.msra.mxu0 %v122
    %1036 = vmatpush.msra.mxu0 %v114
    %1037 = vmatpush.msra.mxu0 %v106
    %1038 = vmatpush.msra.mxu0 %v98
    %1039 = vmatpush.msra.mxu0 %v90
    %1040 = vmatpush.msra.mxu0 %v82
    %1041 = vmatpush.msra.mxu0 %v74
    %1042 = vmatpush.msra.mxu0 %v66
    %1043 = vmatpush.msra.mxu0 %v58
    %1044 = vmatpush.msra.mxu0 %v50
    %1045 = vmatpush.msra.mxu0 %v42
    %1046 = vmatpush.msra.mxu0 %v34
    %1047 = vmatmul.f32.gmra.mxu0 %v747
    %v1048 = vpop.f32.mrf.mxu0
    %v1049 = vadd.f32 %v680, %v1048
    %1050 = vdwg.mxu0
    %1051 = vmatpush.msra.mxu0 %v282
    %1052 = vmatpush.msra.mxu0 %v274
    %1053 = vmatpush.msra.mxu0 %v266
    %1054 = vmatpush.msra.mxu0 %v258
    %1055 = vmatpush.msra.mxu0 %v250
    %1056 = vmatpush.msra.mxu0 %v242
    %1057 = vmatpush.msra.mxu0 %v234
    %1058 = vmatpush.msra.mxu0 %v226
    %1059 = vmatpush.msra.mxu0 %v218
    %1060 = vmatpush.msra.mxu0 %v210
    %1061 = vmatpush.msra.mxu0 %v202
    %1062 = vmatpush.msra.mxu0 %v194
    %1063 = vmatpush.msra.mxu0 %v186
    %1064 = vmatpush.msra.mxu0 %v178
    %1065 = vmatpush.msra.mxu0 %v170
    %1066 = vmatpush.msra.mxu0 %v162
    %1067 = vmatmul.f32.gmra.mxu0 %v748
    %v1068 = vpop.f32.mrf.mxu0
    %v1069 = vadd.f32 %v1049, %v1068
    %1070 = vdwg.mxu0
    %v1071 = vmul.f32 %v789, 0.5
    %v1072 = vmul.f32 %v829, 0.5
    %v1073 = vmul.f32 %v869, 0.5
    %v1074 = vmul.f32 %v909, 0.5
    %v1075 = vmul.f32 %v949, 0.5
    %v1076 = vmul.f32 %v989, 0.5
    %v1077 = vmul.f32 %v1029, 0.5
    %v1078 = vmul.f32 %v1069, 0.5
    %v1079 = vtanh.pop %v1071
    %v1080 = vtanh.pop %v1072
    %v1081 = vtanh.pop %v1073
    %v1082 = vtanh.pop %v1074
    %v1083 = vtanh.pop %v1075
    %v1084 = vtanh.pop %v1076
    %v1085 = vtanh.pop %v1077
    %v1086 = vtanh.pop %v1078
    %v1087 = vmul.f32 %v1079, 0.5
    %v1088 = vmul.f32 %v1080, 0.5
    %v1089 = vadd.f32 %v1087, 0.5
    %v1090 = vadd.f32 %v1088, 0.5
    %v1091 = vmul.f32 %v1081, 0.5
    %v1092 = vmul.f32 %v1082, 0.5
    %v1093 = vadd.f32 %v1091, 0.5
    %v1094 = vadd.f32 %v1092, 0.5
    %v1095 = vmul.f32 %v1085, 0.5
    %v1096 = vmul.f32 %v1086, 0.5
    %v1097 = vadd.f32 %v1095, 0.5
    %v1098 = vadd.f32 %v1096, 0.5
    %v1099 = vmul.f32 %v1093, %v749
    %v1100 = vmul.f32 %v1094, %v750
    %v1101 = vmul.f32 %v1089, %v1083
    %v1102 = vmul.f32 %v1090, %v1084
    %v1103 = vadd.f32 %v1099, %v1101
    %v1104 = vadd.f32 %v1100, %v1102
    %v1105 = vtanh.pop %v1103
    %v1106 = vtanh.pop %v1104
    %v1107 = vmul.f32 %v1097, %v1105
    %v1108 = vmul.f32 %v1098, %v1106
    %1109 = vmatpush.msra.mxu0 %v147
    %1110 = vmatpush.msra.mxu0 %v139
    %1111 = vmatpush.msra.mxu0 %v131
    %1112 = vmatpush.msra.mxu0 %v123
    %1113 = vmatpush.msra.mxu0 %v115
    %1114 = vmatpush.msra.mxu0 %v107
    %1115 = vmatpush.msra.mxu0 %v99
    %1116 = vmatpush.msra.mxu0 %v91
    %1117 = vmatpush.msra.mxu0 %v83
    %1118 = vmatpush.msra.mxu0 %v75
    %1119 = vmatpush.msra.mxu0 %v67
    %1120 = vmatpush.msra.mxu0 %v59
    %1121 = vmatpush.msra.mxu0 %v51
    %1122 = vmatpush.msra.mxu0 %v43
    %1123 = vmatpush.msra.mxu0 %v35
    %1124 = vmatpush.msra.mxu0 %v27
    %1125 = vmatmul.f32.gmra.mxu0 %v1107
    %v1126 = vpop.f32.mrf.mxu0
    %v1127 = vadd.f32 %v396, %v1126
    %1128 = vdwg.mxu0
    %1129 = vmatpush.msra.mxu0 %v275
    %1130 = vmatpush.msra.mxu0 %v267
    %1131 = vmatpush.msra.mxu0 %v259
    %1132 = vmatpush.msra.mxu0 %v251
    %1133 = vmatpush.msra.mxu0 %v243
    %1134 = vmatpush.msra.mxu0 %v235
    %1135 = vmatpush.msra.mxu0 %v227
    %1136 = vmatpush.msra.mxu0 %v219
    %1137 = vmatpush.msra.mxu0 %v211
    %1138 = vmatpush.msra.mxu0 %v203
    %1139 = vmatpush.msra.mxu0 %v195
    %1140 = vmatpush.msra.mxu0 %v187
    %1141 = vmatpush.msra.mxu0 %v179
    %1142 = vmatpush.msra.mxu0 %v171
    %1143 = vmatpush.msra.mxu0 %v163
    %1144 = vmatpush.msra.mxu0 %v155
    %1145 = vmatmul.f32.gmra.mxu0 %v1108
    %v1146 = vpop.f32.mrf.mxu0
    %v1147 = vadd.f32 %v1127, %v1146
    %1148 = vdwg.mxu0
    %1149 = vmatpush.msra.mxu0 %v148
    %1150 = vmatpush.msra.mxu0 %v140
    %1151 = vmatpush.msra.mxu0 %v132
    %1152 = vmatpush.msra.mxu0 %v124
    %1153 = vmatpush.msra.mxu0 %v116
    %1154 = vmatpush.msra.mxu0 %v108
    %1155 = vmatpush.msra.mxu0 %v100
    %1156 = vmatpush.msra.mxu0 %v92
    %1157 = vmatpush.msra.mxu0 %v84
    %1158 = vmatpush.msra.mxu0 %v76
    %1159 = vmatpush.msra.mxu0 %v68
    %1160 = vmatpush.msra.mxu0 %v60
    %1161 = vmatpush.msra.mxu0 %v52
    %1162 = vmatpush.msra.mxu0 %v44
    %1163 = vmatpush.msra.mxu0 %v36
    %1164 = vmatpush.msra.mxu0 %v28
    %1165 = vmatmul.f32.gmra.mxu0 %v1107
    %v1166 = vpop.f32.mrf.mxu0
    %v1167 = vadd.f32 %v437, %v1166
    %1168 = vdwg.mxu0
    %1169 = vmatpush.msra.mxu0 %v276
    %1170 = vmatpush.msra.mxu0 %v268
    %1171 = vmatpush.msra.mxu0 %v260
    %1172 = vmatpush.msra.mxu0 %v252
    %1173 = vmatpush.msra.mxu0 %v244
    %1174 = vmatpush.msra.mxu0 %v236
    %1175 = vmatpush.msra.mxu0 %v228
    %1176 = vmatpush.msra.mxu0 %v220
    %1177 = vmatpush.msra.mxu0 %v212
    %1178 = vmatpush.msra.mxu0 %v204
    %1179 = vmatpush.msra.mxu0 %v196
    %1180 = vmatpush.msra.mxu0 %v188
    %1181 = vmatpush.msra.mxu0 %v180
    %1182 = vmatpush.msra.mxu0 %v172
    %1183 = vmatpush.msra.mxu0 %v164
    %1184 = vmatpush.msra.mxu0 %v156
    %1185 = vmatmul.f32.gmra.mxu0 %v1108
    %v1186 = vpop.f32.mrf.mxu0
    %v1187 = vadd.f32 %v1167, %v1186
    %1188 = vdwg.mxu0
    %1189 = vmatpush.msra.mxu0 %v149
    %1190 = vmatpush.msra.mxu0 %v141
    %1191 = vmatpush.msra.mxu0 %v133
    %1192 = vmatpush.msra.mxu0 %v125
    %1193 = vmatpush.msra.mxu0 %v117
    %1194 = vmatpush.msra.mxu0 %v109
    %1195 = vmatpush.msra.mxu0 %v101
    %1196 = vmatpush.msra.mxu0 %v93
    %1197 = vmatpush.msra.mxu0 %v85
    %1198 = vmatpush.msra.mxu0 %v77
    %1199 = vmatpush.msra.mxu0 %v69
    %1200 = vmatpush.msra.mxu0 %v61
    %1201 = vmatpush.msra.mxu0 %v53
    %1202 = vmatpush.msra.mxu0 %v45
    %1203 = vmatpush.msra.mxu0 %v37
    %1204 = vmatpush.msra.mxu0 %v29
    %1205 = vmatmul.f32.gmra.mxu0 %v1107
    %v1206 = vpop.f32.mrf.mxu0
    %v1207 = vadd.f32 %v478, %v1206
    %1208 = vdwg.mxu0
    %1209 = vmatpush.msra.mxu0 %v277
    %1210 = vmatpush.msra.mxu0 %v269
    %1211 = vmatpush.msra.mxu0 %v261
    %1212 = vmatpush.msra.mxu0 %v253
    %1213 = vmatpush.msra.mxu0 %v245
    %1214 = vmatpush.msra.mxu0 %v237
    %1215 = vmatpush.msra.mxu0 %v229
    %1216 = vmatpush.msra.mxu0 %v221
    %1217 = vmatpush.msra.mxu0 %v213
    %1218 = vmatpush.msra.mxu0 %v205
    %1219 = vmatpush.msra.mxu0 %v197
    %1220 = vmatpush.msra.mxu0 %v189
    %1221 = vmatpush.msra.mxu0 %v181
    %1222 = vmatpush.msra.mxu0 %v173
    %1223 = vmatpush.msra.mxu0 %v165
    %1224 = vmatpush.msra.mxu0 %v157
    %1225 = vmatmul.f32.gmra.mxu0 %v1108
    %v1226 = vpop.f32.mrf.mxu0
    %v1227 = vadd.f32 %v1207, %v1226
    %1228 = vdwg.mxu0
    %1229 = vmatpush.msra.mxu0 %v150
    %1230 = vmatpush.msra.mxu0 %v142
    %1231 = vmatpush.msra.mxu0 %v134
    %1232 = vmatpush.msra.mxu0 %v126
    %1233 = vmatpush.msra.mxu0 %v118
    %1234 = vmatpush.msra.mxu0 %v110
    %1235 = vmatpush.msra.mxu0 %v102
    %1236 = vmatpush.msra.mxu0 %v94
    %1237 = vmatpush.msra.mxu0 %v86
    %1238 = vmatpush.msra.mxu0 %v78
    %1239 = vmatpush.msra.mxu0 %v70
    %1240 = vmatpush.msra.mxu0 %v62
    %1241 = vmatpush.msra.mxu0 %v54
    %1242 = vmatpush.msra.mxu0 %v46
    %1243 = vmatpush.msra.mxu0 %v38
    %1244 = vmatpush.msra.mxu0 %v30
    %1245 = vmatmul.f32.gmra.mxu0 %v1107
    %v1246 = vpop.f32.mrf.mxu0
    %v1247 = vadd.f32 %v519, %v1246
    %1248 = vdwg.mxu0
    %1249 = vmatpush.msra.mxu0 %v278
    %1250 = vmatpush.msra.mxu0 %v270
    %1251 = vmatpush.msra.mxu0 %v262
    %1252 = vmatpush.msra.mxu0 %v254
    %1253 = vmatpush.msra.mxu0 %v246
    %1254 = vmatpush.msra.mxu0 %v238
    %1255 = vmatpush.msra.mxu0 %v230
    %1256 = vmatpush.msra.mxu0 %v222
    %1257 = vmatpush.msra.mxu0 %v214
    %1258 = vmatpush.msra.mxu0 %v206
    %1259 = vmatpush.msra.mxu0 %v198
    %1260 = vmatpush.msra.mxu0 %v190
    %1261 = vmatpush.msra.mxu0 %v182
    %1262 = vmatpush.msra.mxu0 %v174
    %1263 = vmatpush.msra.mxu0 %v166
    %1264 = vmatpush.msra.mxu0 %v158
    %1265 = vmatmul.f32.gmra.mxu0 %v1108
    %v1266 = vpop.f32.mrf.mxu0
    %v1267 = vadd.f32 %v1247, %v1266
    %1268 = vdwg.mxu0
    %1269 = vmatpush.msra.mxu0 %v151
    %1270 = vmatpush.msra.mxu0 %v143
    %1271 = vmatpush.msra.mxu0 %v135
    %1272 = vmatpush.msra.mxu0 %v127
    %1273 = vmatpush.msra.mxu0 %v119
    %1274 = vmatpush.msra.mxu0 %v111
    %1275 = vmatpush.msra.mxu0 %v103
    %1276 = vmatpush.msra.mxu0 %v95
    %1277 = vmatpush.msra.mxu0 %v87
    %1278 = vmatpush.msra.mxu0 %v79
    %1279 = vmatpush.msra.mxu0 %v71
    %1280 = vmatpush.msra.mxu0 %v63
    %1281 = vmatpush.msra.mxu0 %v55
    %1282 = vmatpush.msra.mxu0 %v47
    %1283 = vmatpush.msra.mxu0 %v39
    %1284 = vmatpush.msra.mxu0 %v31
    %1285 = vmatmul.f32.gmra.mxu0 %v1107
    %v1286 = vpop.f32.mrf.mxu0
    %v1287 = vadd.f32 %v560, %v1286
    %1288 = vdwg.mxu0
    %1289 = vmatpush.msra.mxu0 %v279
    %1290 = vmatpush.msra.mxu0 %v271
    %1291 = vmatpush.msra.mxu0 %v263
    %1292 = vmatpush.msra.mxu0 %v255
    %1293 = vmatpush.msra.mxu0 %v247
    %1294 = vmatpush.msra.mxu0 %v239
    %1295 = vmatpush.msra.mxu0 %v231
    %1296 = vmatpush.msra.mxu0 %v223
    %1297 = vmatpush.msra.mxu0 %v215
    %1298 = vmatpush.msra.mxu0 %v207
    %1299 = vmatpush.msra.mxu0 %v199
    %1300 = vmatpush.msra.mxu0 %v191
    %1301 = vmatpush.msra.mxu0 %v183
    %1302 = vmatpush.msra.mxu0 %v175
    %1303 = vmatpush.msra.mxu0 %v167
    %1304 = vmatpush.msra.mxu0 %v159
    %1305 = vmatmul.f32.gmra.mxu0 %v1108
    %v1306 = vpop.f32.mrf.mxu0
    %v1307 = vadd.f32 %v1287, %v1306
    %1308 = vdwg.mxu0
    %1309 = vmatpush.msra.mxu0 %v152
    %1310 = vmatpush.msra.mxu0 %v144
    %1311 = vmatpush.msra.mxu0 %v136
    %1312 = vmatpush.msra.mxu0 %v128
    %1313 = vmatpush.msra.mxu0 %v120
    %1314 = vmatpush.msra.mxu0 %v112
    %1315 = vmatpush.msra.mxu0 %v104
    %1316 = vmatpush.msra.mxu0 %v96
    %1317 = vmatpush.msra.mxu0 %v88
    %1318 = vmatpush.msra.mxu0 %v80
    %1319 = vmatpush.msra.mxu0 %v72
    %1320 = vmatpush.msra.mxu0 %v64
    %1321 = vmatpush.msra.mxu0 %v56
    %1322 = vmatpush.msra.mxu0 %v48
    %1323 = vmatpush.msra.mxu0 %v40
    %1324 = vmatpush.msra.mxu0 %v32
    %1325 = vmatmul.f32.gmra.mxu0 %v1107
    %v1326 = vpop.f32.mrf.mxu0
    %v1327 = vadd.f32 %v601, %v1326
    %1328 = vdwg.mxu0
    %1329 = vmatpush.msra.mxu0 %v280
    %1330 = vmatpush.msra.mxu0 %v272
    %1331 = vmatpush.msra.mxu0 %v264
    %1332 = vmatpush.msra.mxu0 %v256
    %1333 = vmatpush.msra.mxu0 %v248
    %1334 = vmatpush.msra.mxu0 %v240
    %1335 = vmatpush.msra.mxu0 %v232
    %1336 = vmatpush.msra.mxu0 %v224
    %1337 = vmatpush.msra.mxu0 %v216
    %1338 = vmatpush.msra.mxu0 %v208
    %1339 = vmatpush.msra.mxu0 %v200
    %1340 = vmatpush.msra.mxu0 %v192
    %1341 = vmatpush.msra.mxu0 %v184
    %1342 = vmatpush.msra.mxu0 %v176
    %1343 = vmatpush.msra.mxu0 %v168
    %1344 = vmatpush.msra.mxu0 %v160
    %1345 = vmatmul.f32.gmra.mxu0 %v1108
    %v1346 = vpop.f32.mrf.mxu0
    %v1347 = vadd.f32 %v1327, %v1346
    %1348 = vdwg.mxu0
    %1349 = vmatpush.msra.mxu0 %v153
    %1350 = vmatpush.msra.mxu0 %v145
    %1351 = vmatpush.msra.mxu0 %v137
    %1352 = vmatpush.msra.mxu0 %v129
    %1353 = vmatpush.msra.mxu0 %v121
    %1354 = vmatpush.msra.mxu0 %v113
    %1355 = vmatpush.msra.mxu0 %v105
    %1356 = vmatpush.msra.mxu0 %v97
    %1357 = vmatpush.msra.mxu0 %v89
    %1358 = vmatpush.msra.mxu0 %v81
    %1359 = vmatpush.msra.mxu0 %v73
    %1360 = vmatpush.msra.mxu0 %v65
    %1361 = vmatpush.msra.mxu0 %v57
    %1362 = vmatpush.msra.mxu0 %v49
    %1363 = vmatpush.msra.mxu0 %v41
    %1364 = vmatpush.msra.mxu0 %v33
    %1365 = vmatmul.f32.gmra.mxu0 %v1107
    %v1366 = vpop.f32.mrf.mxu0
    %v1367 = vadd.f32 %v642, %v1366
    %1368 = vdwg.mxu0
    %1369 = vmatpush.msra.mxu0 %v281
    %1370 = vmatpush.msra.mxu0 %v273
    %1371 = vmatpush.msra.mxu0 %v265
    %1372 = vmatpush.msra.mxu0 %v257
    %1373 = vmatpush.msra.mxu0 %v249
    %1374 = vmatpush.msra.mxu0 %v241
    %1375 = vmatpush.msra.mxu0 %v233
    %1376 = vmatpush.msra.mxu0 %v225
    %1377 = vmatpush.msra.mxu0 %v217
    %1378 = vmatpush.msra.mxu0 %v209
    %1379 = vmatpush.msra.mxu0 %v201
    %1380 = vmatpush.msra.mxu0 %v193
    %1381 = vmatpush.msra.mxu0 %v185
    %1382 = vmatpush.msra.mxu0 %v177
    %1383 = vmatpush.msra.mxu0 %v169
    %1384 = vmatpush.msra.mxu0 %v161
    %1385 = vmatmul.f32.gmra.mxu0 %v1108
    %v1386 = vpop.f32.mrf.mxu0
    %v1387 = vadd.f32 %v1367, %v1386
    %1388 = vdwg.mxu0
    %1389 = vmatpush.msra.mxu0 %v154
    %1390 = vmatpush.msra.mxu0 %v146
    %1391 = vmatpush.msra.mxu0 %v138
    %1392 = vmatpush.msra.mxu0 %v130
    %1393 = vmatpush.msra.mxu0 %v122
    %1394 = vmatpush.msra.mxu0 %v114
    %1395 = vmatpush.msra.mxu0 %v106
    %1396 = vmatpush.msra.mxu0 %v98
    %1397 = vmatpush.msra.mxu0 %v90
    %1398 = vmatpush.msra.mxu0 %v82
    %1399 = vmatpush.msra.mxu0 %v74
    %1400 = vmatpush.msra.mxu0 %v66
    %1401 = vmatpush.msra.mxu0 %v58
    %1402 = vmatpush.msra.mxu0 %v50
    %1403 = vmatpush.msra.mxu0 %v42
    %1404 = vmatpush.msra.mxu0 %v34
    %1405 = vmatmul.f32.gmra.mxu0 %v1107
    %v1406 = vpop.f32.mrf.mxu0
    %v1407 = vadd.f32 %v683, %v1406
    %1408 = vdwg.mxu0
    %1409 = vmatpush.msra.mxu0 %v282
    %1410 = vmatpush.msra.mxu0 %v274
    %1411 = vmatpush.msra.mxu0 %v266
    %1412 = vmatpush.msra.mxu0 %v258
    %1413 = vmatpush.msra.mxu0 %v250
    %1414 = vmatpush.msra.mxu0 %v242
    %1415 = vmatpush.msra.mxu0 %v234
    %1416 = vmatpush.msra.mxu0 %v226
    %1417 = vmatpush.msra.mxu0 %v218
    %1418 = vmatpush.msra.mxu0 %v210
    %1419 = vmatpush.msra.mxu0 %v202
    %1420 = vmatpush.msra.mxu0 %v194
    %1421 = vmatpush.msra.mxu0 %v186
    %1422 = vmatpush.msra.mxu0 %v178
    %1423 = vmatpush.msra.mxu0 %v170
    %1424 = vmatpush.msra.mxu0 %v162
    %1425 = vmatmul.f32.gmra.mxu0 %v1108
    %v1426 = vpop.f32.mrf.mxu0
    %v1427 = vadd.f32 %v1407, %v1426
    %1428 = vdwg.mxu0
    %v1429 = vmul.f32 %v1147, 0.5
    %v1430 = vmul.f32 %v1187, 0.5
    %v1431 = vmul.f32 %v1227, 0.5
    %v1432 = vmul.f32 %v1267, 0.5
    %v1433 = vmul.f32 %v1307, 0.5
    %v1434 = vmul.f32 %v1347, 0.5
    %v1435 = vmul.f32 %v1387, 0.5
    %v1436 = vmul.f32 %v1427, 0.5
    %v1437 = vtanh.pop %v1429
    %v1438 = vtanh.pop %v1430
    %v1439 = vtanh.pop %v1431
    %v1440 = vtanh.pop %v1432
    %v1441 = vtanh.pop %v1433
    %v1442 = vtanh.pop %v1434
    %v1443 = vtanh.pop %v1435
    %v1444 = vtanh.pop %v1436
    %v1445 = vmul.f32 %v1437, 0.5
    %v1446 = vmul.f32 %v1438, 0.5
    %v1447 = vadd.f32 %v1445, 0.5
    %v1448 = vadd.f32 %v1446, 0.5
    %v1449 = vmul.f32 %v1439, 0.5
    %v1450 = vmul.f32 %v1440, 0.5
    %v1451 = vadd.f32 %v1449, 0.5
    %v1452 = vadd.f32 %v1450, 0.5
    %v1453 = vmul.f32 %v1443, 0.5
    %v1454 = vmul.f32 %v1444, 0.5
    %v1455 = vadd.f32 %v1453, 0.5
    %v1456 = vadd.f32 %v1454, 0.5
    %v1457 = vmul.f32 %v1451, %v1103
    %v1458 = vmul.f32 %v1452, %v1104
    %v1459 = vmul.f32 %v1447, %v1441
    %v1460 = vmul.f32 %v1448, %v1442
    %v1461 = vadd.f32 %v1457, %v1459
    %v1462 = vadd.f32 %v1458, %v1460
    %v1463 = vtanh.pop %v1461
    %v1464 = vtanh.pop %v1462
    %v1465 = vmul.f32 %v1455, %v1463
    %v1466 = vmul.f32 %v1456, %v1464
    %1467 = vmatpush.msra.mxu0 %v147
    %1468 = vmatpush.msra.mxu0 %v139
    %1469 = vmatpush.msra.mxu0 %v131
    %1470 = vmatpush.msra.mxu0 %v123
    %1471 = vmatpush.msra.mxu0 %v115
    %1472 = vmatpush.msra.mxu0 %v107
    %1473 = vmatpush.msra.mxu0 %v99
    %1474 = vmatpush.msra.mxu0 %v91
    %1475 = vmatpush.msra.mxu0 %v83
    %1476 = vmatpush.msra.mxu0 %v75
    %1477 = vmatpush.msra.mxu0 %v67
    %1478 = vmatpush.msra.mxu0 %v59
    %1479 = vmatpush.msra.mxu0 %v51
    %1480 = vmatpush.msra.mxu0 %v43
    %1481 = vmatpush.msra.mxu0 %v35
    %1482 = vmatpush.msra.mxu0 %v27
    %1483 = vmatmul.f32.gmra.mxu0 %v1465
    %v1484 = vpop.f32.mrf.mxu0
    %v1485 = vadd.f32 %v399, %v1484
    %1486 = vdwg.mxu0
    %1487 = vmatpush.msra.mxu0 %v275
    %1488 = vmatpush.msra.mxu0 %v267
    %1489 = vmatpush.msra.mxu0 %v259
    %1490 = vmatpush.msra.mxu0 %v251
    %1491 = vmatpush.msra.mxu0 %v243
    %1492 = vmatpush.msra.mxu0 %v235
    %1493 = vmatpush.msra.mxu0 %v227
    %1494 = vmatpush.msra.mxu0 %v219
    %1495 = vmatpush.msra.mxu0 %v211
    %1496 = vmatpush.msra.mxu0 %v203
    %1497 = vmatpush.msra.mxu0 %v195
    %1498 = vmatpush.msra.mxu0 %v187
    %1499 = vmatpush.msra.mxu0 %v179
    %1500 = vmatpush.msra.mxu0 %v171
    %1501 = vmatpush.msra.mxu0 %v163
    %1502 = vmatpush.msra.mxu0 %v155
    %1503 = vmatmul.f32.gmra.mxu0 %v1466
    %v1504 = vpop.f32.mrf.mxu0
    %v1505 = vadd.f32 %v1485, %v1504
    %1506 = vdwg.mxu0
    %1507 = vmatpush.msra.mxu0 %v148
    %1508 = vmatpush.msra.mxu0 %v140
    %1509 = vmatpush.msra.mxu0 %v132
    %1510 = vmatpush.msra.mxu0 %v124
    %1511 = vmatpush.msra.mxu0 %v116
    %1512 = vmatpush.msra.mxu0 %v108
    %1513 = vmatpush.msra.mxu0 %v100
    %1514 = vmatpush.msra.mxu0 %v92
    %1515 = vmatpush.msra.mxu0 %v84
    %1516 = vmatpush.msra.mxu0 %v76
    %1517 = vmatpush.msra.mxu0 %v68
    %1518 = vmatpush.msra.mxu0 %v60
    %1519 = vmatpush.msra.mxu0 %v52
    %1520 = vmatpush.msra.mxu0 %v44
    %1521 = vmatpush.msra.mxu0 %v36
    %1522 = vmatpush.msra.mxu0 %v28
    %1523 = vmatmul.f32.gmra.mxu0 %v1465
    %v1524 = vpop.f32.mrf.mxu0
    %v1525 = vadd.f32 %v440, %v1524
    %1526 = vdwg.mxu0
    %1527 = vmatpush.msra.mxu0 %v276
    %1528 = vmatpush.msra.mxu0 %v268
    %1529 = vmatpush.msra.mxu0 %v260
    %1530 = vmatpush.msra.mxu0 %v252
    %1531 = vmatpush.msra.mxu0 %v244
    %1532 = vmatpush.msra.mxu0 %v236
    %1533 = vmatpush.msra.mxu0 %v228
    %1534 = vmatpush.msra.mxu0 %v220
    %1535 = vmatpush.msra.mxu0 %v212
    %1536 = vmatpush.msra.mxu0 %v204
    %1537 = vmatpush.msra.mxu0 %v196
    %1538 = vmatpush.msra.mxu0 %v188
    %1539 = vmatpush.msra.mxu0 %v180
    %1540 = vmatpush.msra.mxu0 %v172
    %1541 = vmatpush.msra.mxu0 %v164
    %1542 = vmatpush.msra.mxu0 %v156
    %1543 = vmatmul.f32.gmra.mxu0 %v1466
    %v1544 = vpop.f32.mrf.mxu0
    %v1545 = vadd.f32 %v1525, %v1544
    %1546 = vdwg.mxu0
    %1547 = vmatpush.msra.mxu0 %v149
    %1548 = vmatpush.msra.mxu0 %v141
    %1549 = vmatpush.msra.mxu0 %v133
    %1550 = vmatpush.msra.mxu0 %v125
    %1551 = vmatpush.msra.mxu0 %v117
    %1552 = vmatpush.msra.mxu0 %v109
    %1553 = vmatpush.msra.mxu0 %v101
    %1554 = vmatpush.msra.mxu0 %v93
    %1555 = vmatpush.msra.mxu0 %v85
    %1556 = vmatpush.msra.mxu0 %v77
    %1557 = vmatpush.msra.mxu0 %v69
    %1558 = vmatpush.msra.mxu0 %v61
    %1559 = vmatpush.msra.mxu0 %v53
    %1560 = vmatpush.msra.mxu0 %v45
    %1561 = vmatpush.msra.mxu0 %v37
    %1562 = vmatpush.msra.mxu0 %v29
    %1563 = vmatmul.f32.gmra.mxu0 %v1465
    %v1564 = vpop.f32.mrf.mxu0
    %v1565 = vadd.f32 %v481, %v1564
    %1566 = vdwg.mxu0
    %1567 = vmatpush.msra.mxu0 %v277
    %1568 = vmatpush.msra.mxu0 %v269
    %1569 = vmatpush.msra.mxu0 %v261
    %1570 = vmatpush.msra.mxu0 %v253
    %1571 = vmatpush.msra.mxu0 %v245
    %1572 = vmatpush.msra.mxu0 %v237
    %1573 = vmatpush.msra.mxu0 %v229
    %1574 = vmatpush.msra.mxu0 %v221
    %1575 = vmatpush.msra.mxu0 %v213
    %1576 = vmatpush.msra.mxu0 %v205
    %1577 = vmatpush.msra.mxu0 %v197
    %1578 = vmatpush.msra.mxu0 %v189
    %1579 = vmatpush.msra.mxu0 %v181
    %1580 = vmatpush.msra.mxu0 %v173
    %1581 = vmatpush.msra.mxu0 %v165
    %1582 = vmatpush.msra.mxu0 %v157
    %1583 = vmatmul.f32.gmra.mxu0 %v1466
    %v1584 = vpop.f32.mrf.mxu0
    %v1585 = vadd.f32 %v1565, %v1584
    %1586 = vdwg.mxu0
    %1587 = vmatpush.msra.mxu0 %v150
    %1588 = vmatpush.msra.mxu0 %v142
    %1589 = vmatpush.msra.mxu0 %v134
    %1590 = vmatpush.msra.mxu0 %v126
    %1591 = vmatpush.msra.mxu0 %v118
    %1592 = vmatpush.msra.mxu0 %v110
    %1593 = vmatpush.msra.mxu0 %v102
    %1594 = vmatpush.msra.mxu0 %v94
    %1595 = vmatpush.msra.mxu0 %v86
    %1596 = vmatpush.msra.mxu0 %v78
    %1597 = vmatpush.msra.mxu0 %v70
    %1598 = vmatpush.msra.mxu0 %v62
    %1599 = vmatpush.msra.mxu0 %v54
    %1600 = vmatpush.msra.mxu0 %v46
    %1601 = vmatpush.msra.mxu0 %v38
    %1602 = vmatpush.msra.mxu0 %v30
    %1603 = vmatmul.f32.gmra.mxu0 %v1465
    %v1604 = vpop.f32.mrf.mxu0
    %v1605 = vadd.f32 %v522, %v1604
    %1606 = vdwg.mxu0
    %1607 = vmatpush.msra.mxu0 %v278
    %1608 = vmatpush.msra.mxu0 %v270
    %1609 = vmatpush.msra.mxu0 %v262
    %1610 = vmatpush.msra.mxu0 %v254
    %1611 = vmatpush.msra.mxu0 %v246
    %1612 = vmatpush.msra.mxu0 %v238
    %1613 = vmatpush.msra.mxu0 %v230
    %1614 = vmatpush.msra.mxu0 %v222
    %1615 = vmatpush.msra.mxu0 %v214
    %1616 = vmatpush.msra.mxu0 %v206
    %1617 = vmatpush.msra.mxu0 %v198
    %1618 = vmatpush.msra.mxu0 %v190
    %1619 = vmatpush.msra.mxu0 %v182
    %1620 = vmatpush.msra.mxu0 %v174
    %1621 = vmatpush.msra.mxu0 %v166
    %1622 = vmatpush.msra.mxu0 %v158
    %1623 = vmatmul.f32.gmra.mxu0 %v1466
    %v1624 = vpop.f32.mrf.mxu0
    %v1625 = vadd.f32 %v1605, %v1624
    %1626 = vdwg.mxu0
    %1627 = vmatpush.msra.mxu0 %v151
    %1628 = vmatpush.msra.mxu0 %v143
    %1629 = vmatpush.msra.mxu0 %v135
    %1630 = vmatpush.msra.mxu0 %v127
    %1631 = vmatpush.msra.mxu0 %v119
    %1632 = vmatpush.msra.mxu0 %v111
    %1633 = vmatpush.msra.mxu0 %v103
    %1634 = vmatpush.msra.mxu0 %v95
    %1635 = vmatpush.msra.mxu0 %v87
    %1636 = vmatpush.msra.mxu0 %v79
    %1637 = vmatpush.msra.mxu0 %v71
    %1638 = vmatpush.msra.mxu0 %v63
    %1639 = vmatpush.msra.mxu0 %v55
    %1640 = vmatpush.msra.mxu0 %v47
    %1641 = vmatpush.msra.mxu0 %v39
    %1642 = vmatpush.msra.mxu0 %v31
    %1643 = vmatmul.f32.gmra.mxu0 %v1465
    %v1644 = vpop.f32.mrf.mxu0
    %v1645 = vadd.f32 %v563, %v1644
    %1646 = vdwg.mxu0
    %1647 = vmatpush.msra.mxu0 %v279
    %1648 = vmatpush.msra.mxu0 %v271
    %1649 = vmatpush.msra.mxu0 %v263
    %1650 = vmatpush.msra.mxu0 %v255
    %1651 = vmatpush.msra.mxu0 %v247
    %1652 = vmatpush.msra.mxu0 %v239
    %1653 = vmatpush.msra.mxu0 %v231
    %1654 = vmatpush.msra.mxu0 %v223
    %1655 = vmatpush.msra.mxu0 %v215
    %1656 = vmatpush.msra.mxu0 %v207
    %1657 = vmatpush.msra.mxu0 %v199
    %1658 = vmatpush.msra.mxu0 %v191
    %1659 = vmatpush.msra.mxu0 %v183
    %1660 = vmatpush.msra.mxu0 %v175
    %1661 = vmatpush.msra.mxu0 %v167
    %1662 = vmatpush.msra.mxu0 %v159
    %1663 = vmatmul.f32.gmra.mxu0 %v1466
    %v1664 = vpop.f32.mrf.mxu0
    %v1665 = vadd.f32 %v1645, %v1664
    %1666 = vdwg.mxu0
    %1667 = vmatpush.msra.mxu0 %v152
    %1668 = vmatpush.msra.mxu0 %v144
    %1669 = vmatpush.msra.mxu0 %v136
    %1670 = vmatpush.msra.mxu0 %v128
    %1671 = vmatpush.msra.mxu0 %v120
    %1672 = vmatpush.msra.mxu0 %v112
    %1673 = vmatpush.msra.mxu0 %v104
    %1674 = vmatpush.msra.mxu0 %v96
    %1675 = vmatpush.msra.mxu0 %v88
    %1676 = vmatpush.msra.mxu0 %v80
    %1677 = vmatpush.msra.mxu0 %v72
    %1678 = vmatpush.msra.mxu0 %v64
    %1679 = vmatpush.msra.mxu0 %v56
    %1680 = vmatpush.msra.mxu0 %v48
    %1681 = vmatpush.msra.mxu0 %v40
    %1682 = vmatpush.msra.mxu0 %v32
    %1683 = vmatmul.f32.gmra.mxu0 %v1465
    %v1684 = vpop.f32.mrf.mxu0
    %v1685 = vadd.f32 %v604, %v1684
    %1686 = vdwg.mxu0
    %1687 = vmatpush.msra.mxu0 %v280
    %1688 = vmatpush.msra.mxu0 %v272
    %1689 = vmatpush.msra.mxu0 %v264
    %1690 = vmatpush.msra.mxu0 %v256
    %1691 = vmatpush.msra.mxu0 %v248
    %1692 = vmatpush.msra.mxu0 %v240
    %1693 = vmatpush.msra.mxu0 %v232
    %1694 = vmatpush.msra.mxu0 %v224
    %1695 = vmatpush.msra.mxu0 %v216
    %1696 = vmatpush.msra.mxu0 %v208
    %1697 = vmatpush.msra.mxu0 %v200
    %1698 = vmatpush.msra.mxu0 %v192
    %1699 = vmatpush.msra.mxu0 %v184
    %1700 = vmatpush.msra.mxu0 %v176
    %1701 = vmatpush.msra.mxu0 %v168
    %1702 = vmatpush.msra.mxu0 %v160
    %1703 = vmatmul.f32.gmra.mxu0 %v1466
    %v1704 = vpop.f32.mrf.mxu0
    %v1705 = vadd.f32 %v1685, %v1704
    %1706 = vdwg.mxu0
    %1707 = vmatpush.msra.mxu0 %v153
    %1708 = vmatpush.msra.mxu0 %v145
    %1709 = vmatpush.msra.mxu0 %v137
    %1710 = vmatpush.msra.mxu0 %v129
    %1711 = vmatpush.msra.mxu0 %v121
    %1712 = vmatpush.msra.mxu0 %v113
    %1713 = vmatpush.msra.mxu0 %v105
    %1714 = vmatpush.msra.mxu0 %v97
    %1715 = vmatpush.msra.mxu0 %v89
    %1716 = vmatpush.msra.mxu0 %v81
    %1717 = vmatpush.msra.mxu0 %v73
    %1718 = vmatpush.msra.mxu0 %v65
    %1719 = vmatpush.msra.mxu0 %v57
    %1720 = vmatpush.msra.mxu0 %v49
    %1721 = vmatpush.msra.mxu0 %v41
    %1722 = vmatpush.msra.mxu0 %v33
    %1723 = vmatmul.f32.gmra.mxu0 %v1465
    %v1724 = vpop.f32.mrf.mxu0
    %v1725 = vadd.f32 %v645, %v1724
    %1726 = vdwg.mxu0
    %1727 = vmatpush.msra.mxu0 %v281
    %1728 = vmatpush.msra.mxu0 %v273
    %1729 = vmatpush.msra.mxu0 %v265
    %1730 = vmatpush.msra.mxu0 %v257
    %1731 = vmatpush.msra.mxu0 %v249
    %1732 = vmatpush.msra.mxu0 %v241
    %1733 = vmatpush.msra.mxu0 %v233
    %1734 = vmatpush.msra.mxu0 %v225
    %1735 = vmatpush.msra.mxu0 %v217
    %1736 = vmatpush.msra.mxu0 %v209
    %1737 = vmatpush.msra.mxu0 %v201
    %1738 = vmatpush.msra.mxu0 %v193
    %1739 = vmatpush.msra.mxu0 %v185
    %1740 = vmatpush.msra.mxu0 %v177
    %1741 = vmatpush.msra.mxu0 %v169
    %1742 = vmatpush.msra.mxu0 %v161
    %1743 = vmatmul.f32.gmra.mxu0 %v1466
    %v1744 = vpop.f32.mrf.mxu0
    %v1745 = vadd.f32 %v1725, %v1744
    %1746 = vdwg.mxu0
    %1747 = vmatpush.msra.mxu0 %v154
    %1748 = vmatpush.msra.mxu0 %v146
    %1749 = vmatpush.msra.mxu0 %v138
    %1750 = vmatpush.msra.mxu0 %v130
    %1751 = vmatpush.msra.mxu0 %v122
    %1752 = vmatpush.msra.mxu0 %v114
    %1753 = vmatpush.msra.mxu0 %v106
    %1754 = vmatpush.msra.mxu0 %v98
    %1755 = vmatpush.msra.mxu0 %v90
    %1756 = vmatpush.msra.mxu0 %v82
    %1757 = vmatpush.msra.mxu0 %v74
    %1758 = vmatpush.msra.mxu0 %v66
    %1759 = vmatpush.msra.mxu0 %v58
    %1760 = vmatpush.msra.mxu0 %v50
    %1761 = vmatpush.msra.mxu0 %v42
    %1762 = vmatpush.msra.mxu0 %v34
    %1763 = vmatmul.f32.gmra.mxu0 %v1465
    %v1764 = vpop.f32.mrf.mxu0
    %v1765 = vadd.f32 %v686, %v1764
    %1766 = vdwg.mxu0
    %1767 = vmatpush.msra.mxu0 %v282
    %1768 = vmatpush.msra.mxu0 %v274
    %1769 = vmatpush.msra.mxu0 %v266
    %1770 = vmatpush.msra.mxu0 %v258
    %1771 = vmatpush.msra.mxu0 %v250
    %1772 = vmatpush.msra.mxu0 %v242
    %1773 = vmatpush.msra.mxu0 %v234
    %1774 = vmatpush.msra.mxu0 %v226
    %1775 = vmatpush.msra.mxu0 %v218
    %1776 = vmatpush.msra.mxu0 %v210
    %1777 = vmatpush.msra.mxu0 %v202
    %1778 = vmatpush.msra.mxu0 %v194
    %1779 = vmatpush.msra.mxu0 %v186
    %1780 = vmatpush.msra.mxu0 %v178
    %1781 = vmatpush.msra.mxu0 %v170
    %1782 = vmatpush.msra.mxu0 %v162
    %1783 = vmatmul.f32.gmra.mxu0 %v1466
    %v1784 = vpop.f32.mrf.mxu0
    %v1785 = vadd.f32 %v1765, %v1784
    %1786 = vdwg.mxu0
    %v1787 = vmul.f32 %v1505, 0.5
    %v1788 = vmul.f32 %v1545, 0.5
    %v1789 = vmul.f32 %v1585, 0.5
    %v1790 = vmul.f32 %v1625, 0.5
    %v1791 = vmul.f32 %v1665, 0.5
    %v1792 = vmul.f32 %v1705, 0.5
    %v1793 = vmul.f32 %v1745, 0.5
    %v1794 = vmul.f32 %v1785, 0.5
    %v1795 = vtanh.pop %v1787
    %v1796 = vtanh.pop %v1788
    %v1797 = vtanh.pop %v1789
    %v1798 = vtanh.pop %v1790
    %v1799 = vtanh.pop %v1791
    %v1800 = vtanh.pop %v1792
    %v1801 = vtanh.pop %v1793
    %v1802 = vtanh.pop %v1794
    %v1803 = vmul.f32 %v1795, 0.5
    %v1804 = vmul.f32 %v1796, 0.5
    %v1805 = vadd.f32 %v1803, 0.5
    %v1806 = vadd.f32 %v1804, 0.5
    %v1807 = vmul.f32 %v1797, 0.5
    %v1808 = vmul.f32 %v1798, 0.5
    %v1809 = vadd.f32 %v1807, 0.5
    %v1810 = vadd.f32 %v1808, 0.5
    %v1811 = vmul.f32 %v1801, 0.5
    %v1812 = vmul.f32 %v1802, 0.5
    %v1813 = vadd.f32 %v1811, 0.5
    %v1814 = vadd.f32 %v1812, 0.5
    %v1815 = vmul.f32 %v1809, %v1461
    %v1816 = vmul.f32 %v1810, %v1462
    %v1817 = vmul.f32 %v1805, %v1799
    %v1818 = vmul.f32 %v1806, %v1800
    %v1819 = vadd.f32 %v1815, %v1817
    %v1820 = vadd.f32 %v1816, %v1818
    %v1821 = vtanh.pop %v1819
    %v1822 = vtanh.pop %v1820
    %v1823 = vmul.f32 %v1813, %v1821
    %v1824 = vmul.f32 %v1814, %v1822
    %1825 = vmatpush.msra.mxu0 %v147
    %1826 = vmatpush.msra.mxu0 %v139
    %1827 = vmatpush.msra.mxu0 %v131
    %1828 = vmatpush.msra.mxu0 %v123
    %1829 = vmatpush.msra.mxu0 %v115
    %1830 = vmatpush.msra.mxu0 %v107
    %1831 = vmatpush.msra.mxu0 %v99
    %1832 = vmatpush.msra.mxu0 %v91
    %1833 = vmatpush.msra.mxu0 %v83
    %1834 = vmatpush.msra.mxu0 %v75
    %1835 = vmatpush.msra.mxu0 %v67
    %1836 = vmatpush.msra.mxu0 %v59
    %1837 = vmatpush.msra.mxu0 %v51
    %1838 = vmatpush.msra.mxu0 %v43
    %1839 = vmatpush.msra.mxu0 %v35
    %1840 = vmatpush.msra.mxu0 %v27
    %1841 = vmatmul.f32.gmra.mxu0 %v1823
    %v1842 = vpop.f32.mrf.mxu0
    %v1843 = vadd.f32 %v402, %v1842
    %1844 = vdwg.mxu0
    %1845 = vmatpush.msra.mxu0 %v275
    %1846 = vmatpush.msra.mxu0 %v267
    %1847 = vmatpush.msra.mxu0 %v259
    %1848 = vmatpush.msra.mxu0 %v251
    %1849 = vmatpush.msra.mxu0 %v243
    %1850 = vmatpush.msra.mxu0 %v235
    %1851 = vmatpush.msra.mxu0 %v227
    %1852 = vmatpush.msra.mxu0 %v219
    %1853 = vmatpush.msra.mxu0 %v211
    %1854 = vmatpush.msra.mxu0 %v203
    %1855 = vmatpush.msra.mxu0 %v195
    %1856 = vmatpush.msra.mxu0 %v187
    %1857 = vmatpush.msra.mxu0 %v179
    %1858 = vmatpush.msra.mxu0 %v171
    %1859 = vmatpush.msra.mxu0 %v163
    %1860 = vmatpush.msra.mxu0 %v155
    %1861 = vmatmul.f32.gmra.mxu0 %v1824
    %v1862 = vpop.f32.mrf.mxu0
    %v1863 = vadd.f32 %v1843, %v1862
    %1864 = vdwg.mxu0
    %1865 = vmatpush.msra.mxu0 %v148
    %1866 = vmatpush.msra.mxu0 %v140
    %1867 = vmatpush.msra.mxu0 %v132
    %1868 = vmatpush.msra.mxu0 %v124
    %1869 = vmatpush.msra.mxu0 %v116
    %1870 = vmatpush.msra.mxu0 %v108
    %1871 = vmatpush.msra.mxu0 %v100
    %1872 = vmatpush.msra.mxu0 %v92
    %1873 = vmatpush.msra.mxu0 %v84
    %1874 = vmatpush.msra.mxu0 %v76
    %1875 = vmatpush.msra.mxu0 %v68
    %1876 = vmatpush.msra.mxu0 %v60
    %1877 = vmatpush.msra.mxu0 %v52
    %1878 = vmatpush.msra.mxu0 %v44
    %1879 = vmatpush.msra.mxu0 %v36
    %1880 = vmatpush.msra.mxu0 %v28
    %1881 = vmatmul.f32.gmra.mxu0 %v1823
    %v1882 = vpop.f32.mrf.mxu0
    %v1883 = vadd.f32 %v443, %v1882
    %1884 = vdwg.mxu0
    %1885 = vmatpush.msra.mxu0 %v276
    %1886 = vmatpush.msra.mxu0 %v268
    %1887 = vmatpush.msra.mxu0 %v260
    %1888 = vmatpush.msra.mxu0 %v252
    %1889 = vmatpush.msra.mxu0 %v244
    %1890 = vmatpush.msra.mxu0 %v236
    %1891 = vmatpush.msra.mxu0 %v228
    %1892 = vmatpush.msra.mxu0 %v220
    %1893 = vmatpush.msra.mxu0 %v212
    %1894 = vmatpush.msra.mxu0 %v204
    %1895 = vmatpush.msra.mxu0 %v196
    %1896 = vmatpush.msra.mxu0 %v188
    %1897 = vmatpush.msra.mxu0 %v180
    %1898 = vmatpush.msra.mxu0 %v172
    %1899 = vmatpush.msra.mxu0 %v164
    %1900 = vmatpush.msra.mxu0 %v156
    %1901 = vmatmul.f32.gmra.mxu0 %v1824
    %v1902 = vpop.f32.mrf.mxu0
    %v1903 = vadd.f32 %v1883, %v1902
    %1904 = vdwg.mxu0
    %1905 = vmatpush.msra.mxu0 %v149
    %1906 = vmatpush.msra.mxu0 %v141
    %1907 = vmatpush.msra.mxu0 %v133
    %1908 = vmatpush.msra.mxu0 %v125
    %1909 = vmatpush.msra.mxu0 %v117
    %1910 = vmatpush.msra.mxu0 %v109
    %1911 = vmatpush.msra.mxu0 %v101
    %1912 = vmatpush.msra.mxu0 %v93
    %1913 = vmatpush.msra.mxu0 %v85
    %1914 = vmatpush.msra.mxu0 %v77
    %1915 = vmatpush.msra.mxu0 %v69
    %1916 = vmatpush.msra.mxu0 %v61
    %1917 = vmatpush.msra.mxu0 %v53
    %1918 = vmatpush.msra.mxu0 %v45
    %1919 = vmatpush.msra.mxu0 %v37
    %1920 = vmatpush.msra.mxu0 %v29
    %1921 = vmatmul.f32.gmra.mxu0 %v1823
    %v1922 = vpop.f32.mrf.mxu0
    %v1923 = vadd.f32 %v484, %v1922
    %1924 = vdwg.mxu0
    %1925 = vmatpush.msra.mxu0 %v277
    %1926 = vmatpush.msra.mxu0 %v269
    %1927 = vmatpush.msra.mxu0 %v261
    %1928 = vmatpush.msra.mxu0 %v253
    %1929 = vmatpush.msra.mxu0 %v245
    %1930 = vmatpush.msra.mxu0 %v237
    %1931 = vmatpush.msra.mxu0 %v229
    %1932 = vmatpush.msra.mxu0 %v221
    %1933 = vmatpush.msra.mxu0 %v213
    %1934 = vmatpush.msra.mxu0 %v205
    %1935 = vmatpush.msra.mxu0 %v197
    %1936 = vmatpush.msra.mxu0 %v189
    %1937 = vmatpush.msra.mxu0 %v181
    %1938 = vmatpush.msra.mxu0 %v173
    %1939 = vmatpush.msra.mxu0 %v165
    %1940 = vmatpush.msra.mxu0 %v157
    %1941 = vmatmul.f32.gmra.mxu0 %v1824
    %v1942 = vpop.f32.mrf.mxu0
    %v1943 = vadd.f32 %v1923, %v1942
    %1944 = vdwg.mxu0
    %1945 = vmatpush.msra.mxu0 %v150
    %1946 = vmatpush.msra.mxu0 %v142
    %1947 = vmatpush.msra.mxu0 %v134
    %1948 = vmatpush.msra.mxu0 %v126
    %1949 = vmatpush.msra.mxu0 %v118
    %1950 = vmatpush.msra.mxu0 %v110
    %1951 = vmatpush.msra.mxu0 %v102
    %1952 = vmatpush.msra.mxu0 %v94
    %1953 = vmatpush.msra.mxu0 %v86
    %1954 = vmatpush.msra.mxu0 %v78
    %1955 = vmatpush.msra.mxu0 %v70
    %1956 = vmatpush.msra.mxu0 %v62
    %1957 = vmatpush.msra.mxu0 %v54
    %1958 = vmatpush.msra.mxu0 %v46
    %1959 = vmatpush.msra.mxu0 %v38
    %1960 = vmatpush.msra.mxu0 %v30
    %1961 = vmatmul.f32.gmra.mxu0 %v1823
    %v1962 = vpop.f32.mrf.mxu0
    %v1963 = vadd.f32 %v525, %v1962
    %1964 = vdwg.mxu0
    %1965 = vmatpush.msra.mxu0 %v278
    %1966 = vmatpush.msra.mxu0 %v270
    %1967 = vmatpush.msra.mxu0 %v262
    %1968 = vmatpush.msra.mxu0 %v254
    %1969 = vmatpush.msra.mxu0 %v246
    %1970 = vmatpush.msra.mxu0 %v238
    %1971 = vmatpush.msra.mxu0 %v230
    %1972 = vmatpush.msra.mxu0 %v222
    %1973 = vmatpush.msra.mxu0 %v214
    %1974 = vmatpush.msra.mxu0 %v206
    %1975 = vmatpush.msra.mxu0 %v198
    %1976 = vmatpush.msra.mxu0 %v190
    %1977 = vmatpush.msra.mxu0 %v182
    %1978 = vmatpush.msra.mxu0 %v174
    %1979 = vmatpush.msra.mxu0 %v166
    %1980 = vmatpush.msra.mxu0 %v158
    %1981 = vmatmul.f32.gmra.mxu0 %v1824
    %v1982 = vpop.f32.mrf.mxu0
    %v1983 = vadd.f32 %v1963, %v1982
    %1984 = vdwg.mxu0
    %1985 = vmatpush.msra.mxu0 %v151
    %1986 = vmatpush.msra.mxu0 %v143
    %1987 = vmatpush.msra.mxu0 %v135
    %1988 = vmatpush.msra.mxu0 %v127
    %1989 = vmatpush.msra.mxu0 %v119
    %1990 = vmatpush.msra.mxu0 %v111
    %1991 = vmatpush.msra.mxu0 %v103
    %1992 = vmatpush.msra.mxu0 %v95
    %1993 = vmatpush.msra.mxu0 %v87
    %1994 = vmatpush.msra.mxu0 %v79
    %1995 = vmatpush.msra.mxu0 %v71
    %1996 = vmatpush.msra.mxu0 %v63
    %1997 = vmatpush.msra.mxu0 %v55
    %1998 = vmatpush.msra.mxu0 %v47
    %1999 = vmatpush.msra.mxu0 %v39
    %2000 = vmatpush.msra.mxu0 %v31
    %2001 = vmatmul.f32.gmra.mxu0 %v1823
    %v2002 = vpop.f32.mrf.mxu0
    %v2003 = vadd.f32 %v566, %v2002
    %2004 = vdwg.mxu0
    %2005 = vmatpush.msra.mxu0 %v279
    %2006 = vmatpush.msra.mxu0 %v271
    %2007 = vmatpush.msra.mxu0 %v263
    %2008 = vmatpush.msra.mxu0 %v255
    %2009 = vmatpush.msra.mxu0 %v247
    %2010 = vmatpush.msra.mxu0 %v239
    %2011 = vmatpush.msra.mxu0 %v231
    %2012 = vmatpush.msra.mxu0 %v223
    %2013 = vmatpush.msra.mxu0 %v215
    %2014 = vmatpush.msra.mxu0 %v207
    %2015 = vmatpush.msra.mxu0 %v199
    %2016 = vmatpush.msra.mxu0 %v191
    %2017 = vmatpush.msra.mxu0 %v183
    %2018 = vmatpush.msra.mxu0 %v175
    %2019 = vmatpush.msra.mxu0 %v167
    %2020 = vmatpush.msra.mxu0 %v159
    %2021 = vmatmul.f32.gmra.mxu0 %v1824
    %v2022 = vpop.f32.mrf.mxu0
    %v2023 = vadd.f32 %v2003, %v2022
    %2024 = vdwg.mxu0
    %2025 = vmatpush.msra.mxu0 %v152
    %2026 = vmatpush.msra.mxu0 %v144
    %2027 = vmatpush.msra.mxu0 %v136
    %2028 = vmatpush.msra.mxu0 %v128
    %2029 = vmatpush.msra.mxu0 %v120
    %2030 = vmatpush.msra.mxu0 %v112
    %2031 = vmatpush.msra.mxu0 %v104
    %2032 = vmatpush.msra.mxu0 %v96
    %2033 = vmatpush.msra.mxu0 %v88
    %2034 = vmatpush.msra.mxu0 %v80
    %2035 = vmatpush.msra.mxu0 %v72
    %2036 = vmatpush.msra.mxu0 %v64
    %2037 = vmatpush.msra.mxu0 %v56
    %2038 = vmatpush.msra.mxu0 %v48
    %2039 = vmatpush.msra.mxu0 %v40
    %2040 = vmatpush.msra.mxu0 %v32
    %2041 = vmatmul.f32.gmra.mxu0 %v1823
    %v2042 = vpop.f32.mrf.mxu0
    %v2043 = vadd.f32 %v607, %v2042
    %2044 = vdwg.mxu0
    %2045 = vmatpush.msra.mxu0 %v280
    %2046 = vmatpush.msra.mxu0 %v272
    %2047 = vmatpush.msra.mxu0 %v264
    %2048 = vmatpush.msra.mxu0 %v256
    %2049 = vmatpush.msra.mxu0 %v248
    %2050 = vmatpush.msra.mxu0 %v240
    %2051 = vmatpush.msra.mxu0 %v232
    %2052 = vmatpush.msra.mxu0 %v224
    %2053 = vmatpush.msra.mxu0 %v216
    %2054 = vmatpush.msra.mxu0 %v208
    %2055 = vmatpush.msra.mxu0 %v200
    %2056 = vmatpush.msra.mxu0 %v192
    %2057 = vmatpush.msra.mxu0 %v184
    %2058 = vmatpush.msra.mxu0 %v176
    %2059 = vmatpush.msra.mxu0 %v168
    %2060 = vmatpush.msra.mxu0 %v160
    %2061 = vmatmul.f32.gmra.mxu0 %v1824
    %v2062 = vpop.f32.mrf.mxu0
    %v2063 = vadd.f32 %v2043, %v2062
    %2064 = vdwg.mxu0
    %2065 = vmatpush.msra.mxu0 %v153
    %2066 = vmatpush.msra.mxu0 %v145
    %2067 = vmatpush.msra.mxu0 %v137
    %2068 = vmatpush.msra.mxu0 %v129
    %2069 = vmatpush.msra.mxu0 %v121
    %2070 = vmatpush.msra.mxu0 %v113
    %2071 = vmatpush.msra.mxu0 %v105
    %2072 = vmatpush.msra.mxu0 %v97
    %2073 = vmatpush.msra.mxu0 %v89
    %2074 = vmatpush.msra.mxu0 %v81
    %2075 = vmatpush.msra.mxu0 %v73
    %2076 = vmatpush.msra.mxu0 %v65
    %2077 = vmatpush.msra.mxu0 %v57
    %2078 = vmatpush.msra.mxu0 %v49
    %2079 = vmatpush.msra.mxu0 %v41
    %2080 = vmatpush.msra.mxu0 %v33
    %2081 = vmatmul.f32.gmra.mxu0 %v1823
    %v2082 = vpop.f32.mrf.mxu0
    %v2083 = vadd.f32 %v648, %v2082
    %2084 = vdwg.mxu0
    %2085 = vmatpush.msra.mxu0 %v281
    %2086 = vmatpush.msra.mxu0 %v273
    %2087 = vmatpush.msra.mxu0 %v265
    %2088 = vmatpush.msra.mxu0 %v257
    %2089 = vmatpush.msra.mxu0 %v249
    %2090 = vmatpush.msra.mxu0 %v241
    %2091 = vmatpush.msra.mxu0 %v233
    %2092 = vmatpush.msra.mxu0 %v225
    %2093 = vmatpush.msra.mxu0 %v217
    %2094 = vmatpush.msra.mxu0 %v209
    %2095 = vmatpush.msra.mxu0 %v201
    %2096 = vmatpush.msra.mxu0 %v193
    %2097 = vmatpush.msra.mxu0 %v185
    %2098 = vmatpush.msra.mxu0 %v177
    %2099 = vmatpush.msra.mxu0 %v169
    %2100 = vmatpush.msra.mxu0 %v161
    %2101 = vmatmul.f32.gmra.mxu0 %v1824
    %v2102 = vpop.f32.mrf.mxu0
    %v2103 = vadd.f32 %v2083, %v2102
    %2104 = vdwg.mxu0
    %2105 = vmatpush.msra.mxu0 %v154
    %2106 = vmatpush.msra.mxu0 %v146
    %2107 = vmatpush.msra.mxu0 %v138
    %2108 = vmatpush.msra.mxu0 %v130
    %2109 = vmatpush.msra.mxu0 %v122
    %2110 = vmatpush.msra.mxu0 %v114
    %2111 = vmatpush.msra.mxu0 %v106
    %2112 = vmatpush.msra.mxu0 %v98
    %2113 = vmatpush.msra.mxu0 %v90
    %2114 = vmatpush.msra.mxu0 %v82
    %2115 = vmatpush.msra.mxu0 %v74
    %2116 = vmatpush.msra.mxu0 %v66
    %2117 = vmatpush.msra.mxu0 %v58
    %2118 = vmatpush.msra.mxu0 %v50
    %2119 = vmatpush.msra.mxu0 %v42
    %2120 = vmatpush.msra.mxu0 %v34
    %2121 = vmatmul.f32.gmra.mxu0 %v1823
    %v2122 = vpop.f32.mrf.mxu0
    %v2123 = vadd.f32 %v689, %v2122
    %2124 = vdwg.mxu0
    %2125 = vmatpush.msra.mxu0 %v282
    %2126 = vmatpush.msra.mxu0 %v274
    %2127 = vmatpush.msra.mxu0 %v266
    %2128 = vmatpush.msra.mxu0 %v258
    %2129 = vmatpush.msra.mxu0 %v250
    %2130 = vmatpush.msra.mxu0 %v242
    %2131 = vmatpush.msra.mxu0 %v234
    %2132 = vmatpush.msra.mxu0 %v226
    %2133 = vmatpush.msra.mxu0 %v218
    %2134 = vmatpush.msra.mxu0 %v210
    %2135 = vmatpush.msra.mxu0 %v202
    %2136 = vmatpush.msra.mxu0 %v194
    %2137 = vmatpush.msra.mxu0 %v186
    %2138 = vmatpush.msra.mxu0 %v178
    %2139 = vmatpush.msra.mxu0 %v170
    %2140 = vmatpush.msra.mxu0 %v162
    %2141 = vmatmul.f32.gmra.mxu0 %v1824
    %v2142 = vpop.f32.mrf.mxu0
    %v2143 = vadd.f32 %v2123, %v2142
    %2144 = vdwg.mxu0
    %v2145 = vmul.f32 %v1863, 0.5
    %v2146 = vmul.f32 %v1903, 0.5
    %v2147 = vmul.f32 %v1943, 0.5
    %v2148 = vmul.f32 %v1983, 0.5
    %v2149 = vmul.f32 %v2023, 0.5
    %v2150 = vmul.f32 %v2063, 0.5
    %v2151 = vmul.f32 %v2103, 0.5
    %v2152 = vmul.f32 %v2143, 0.5
    %v2153 = vtanh.pop %v2145
    %v2154 = vtanh.pop %v2146
    %v2155 = vtanh.pop %v2147
    %v2156 = vtanh.pop %v2148
    %v2157 = vtanh.pop %v2149
    %v2158 = vtanh.pop %v2150
    %v2159 = vtanh.pop %v2151
    %v2160 = vtanh.pop %v2152
    %v2161 = vmul.f32 %v2153, 0.5
    %v2162 = vmul.f32 %v2154, 0.5
    %v2163 = vadd.f32 %v2161, 0.5
    %v2164 = vadd.f32 %v2162, 0.5
    %v2165 = vmul.f32 %v2155, 0.5
    %v2166 = vmul.f32 %v2156, 0.5
    %v2167 = vadd.f32 %v2165, 0.5
    %v2168 = vadd.f32 %v2166, 0.5
    %v2169 = vmul.f32 %v2159, 0.5
    %v2170 = vmul.f32 %v2160, 0.5
    %v2171 = vadd.f32 %v2169, 0.5
    %v2172 = vadd.f32 %v2170, 0.5
    %v2173 = vmul.f32 %v2167, %v1819
    %v2174 = vmul.f32 %v2168, %v1820
    %v2175 = vmul.f32 %v2163, %v2157
    %v2176 = vmul.f32 %v2164, %v2158
    %v2177 = vadd.f32 %v2173, %v2175
    %v2178 = vadd.f32 %v2174, %v2176
    %v2179 = vtanh.pop %v2177
    %v2180 = vtanh.pop %v2178
    %v2181 = vmul.f32 %v2171, %v2179
    %v2182 = vmul.f32 %v2172, %v2180
    %2183 = vmatpush.msra.mxu0 %v147
    %2184 = vmatpush.msra.mxu0 %v139
    %2185 = vmatpush.msra.mxu0 %v131
    %2186 = vmatpush.msra.mxu0 %v123
    %2187 = vmatpush.msra.mxu0 %v115
    %2188 = vmatpush.msra.mxu0 %v107
    %2189 = vmatpush.msra.mxu0 %v99
    %2190 = vmatpush.msra.mxu0 %v91
    %2191 = vmatpush.msra.mxu0 %v83
    %2192 = vmatpush.msra.mxu0 %v75
    %2193 = vmatpush.msra.mxu0 %v67
    %2194 = vmatpush.msra.mxu0 %v59
    %2195 = vmatpush.msra.mxu0 %v51
    %2196 = vmatpush.msra.mxu0 %v43
    %2197 = vmatpush.msra.mxu0 %v35
    %2198 = vmatpush.msra.mxu0 %v27
    %2199 = vmatmul.f32.gmra.mxu0 %v2181
    %v2200 = vpop.f32.mrf.mxu0
    %v2201 = vadd.f32 %v405, %v2200
    %2202 = vdwg.mxu0
    %2203 = vmatpush.msra.mxu0 %v275
    %2204 = vmatpush.msra.mxu0 %v267
    %2205 = vmatpush.msra.mxu0 %v259
    %2206 = vmatpush.msra.mxu0 %v251
    %2207 = vmatpush.msra.mxu0 %v243
    %2208 = vmatpush.msra.mxu0 %v235
    %2209 = vmatpush.msra.mxu0 %v227
    %2210 = vmatpush.msra.mxu0 %v219
    %2211 = vmatpush.msra.mxu0 %v211
    %2212 = vmatpush.msra.mxu0 %v203
    %2213 = vmatpush.msra.mxu0 %v195
    %2214 = vmatpush.msra.mxu0 %v187
    %2215 = vmatpush.msra.mxu0 %v179
    %2216 = vmatpush.msra.mxu0 %v171
    %2217 = vmatpush.msra.mxu0 %v163
    %2218 = vmatpush.msra.mxu0 %v155
    %2219 = vmatmul.f32.gmra.mxu0 %v2182
    %v2220 = vpop.f32.mrf.mxu0
    %v2221 = vadd.f32 %v2201, %v2220
    %2222 = vdwg.mxu0
    %2223 = vmatpush.msra.mxu0 %v148
    %2224 = vmatpush.msra.mxu0 %v140
    %2225 = vmatpush.msra.mxu0 %v132
    %2226 = vmatpush.msra.mxu0 %v124
    %2227 = vmatpush.msra.mxu0 %v116
    %2228 = vmatpush.msra.mxu0 %v108
    %2229 = vmatpush.msra.mxu0 %v100
    %2230 = vmatpush.msra.mxu0 %v92
    %2231 = vmatpush.msra.mxu0 %v84
    %2232 = vmatpush.msra.mxu0 %v76
    %2233 = vmatpush.msra.mxu0 %v68
    %2234 = vmatpush.msra.mxu0 %v60
    %2235 = vmatpush.msra.mxu0 %v52
    %2236 = vmatpush.msra.mxu0 %v44
    %2237 = vmatpush.msra.mxu0 %v36
    %2238 = vmatpush.msra.mxu0 %v28
    %2239 = vmatmul.f32.gmra.mxu0 %v2181
    %v2240 = vpop.f32.mrf.mxu0
    %v2241 = vadd.f32 %v446, %v2240
    %2242 = vdwg.mxu0
    %2243 = vmatpush.msra.mxu0 %v276
    %2244 = vmatpush.msra.mxu0 %v268
    %2245 = vmatpush.msra.mxu0 %v260
    %2246 = vmatpush.msra.mxu0 %v252
    %2247 = vmatpush.msra.mxu0 %v244
    %2248 = vmatpush.msra.mxu0 %v236
    %2249 = vmatpush.msra.mxu0 %v228
    %2250 = vmatpush.msra.mxu0 %v220
    %2251 = vmatpush.msra.mxu0 %v212
    %2252 = vmatpush.msra.mxu0 %v204
    %2253 = vmatpush.msra.mxu0 %v196
    %2254 = vmatpush.msra.mxu0 %v188
    %2255 = vmatpush.msra.mxu0 %v180
    %2256 = vmatpush.msra.mxu0 %v172
    %2257 = vmatpush.msra.mxu0 %v164
    %2258 = vmatpush.msra.mxu0 %v156
    %2259 = vmatmul.f32.gmra.mxu0 %v2182
    %v2260 = vpop.f32.mrf.mxu0
    %v2261 = vadd.f32 %v2241, %v2260
    %2262 = vdwg.mxu0
    %2263 = vmatpush.msra.mxu0 %v149
    %2264 = vmatpush.msra.mxu0 %v141
    %2265 = vmatpush.msra.mxu0 %v133
    %2266 = vmatpush.msra.mxu0 %v125
    %2267 = vmatpush.msra.mxu0 %v117
    %2268 = vmatpush.msra.mxu0 %v109
    %2269 = vmatpush.msra.mxu0 %v101
    %2270 = vmatpush.msra.mxu0 %v93
    %2271 = vmatpush.msra.mxu0 %v85
    %2272 = vmatpush.msra.mxu0 %v77
    %2273 = vmatpush.msra.mxu0 %v69
    %2274 = vmatpush.msra.mxu0 %v61
    %2275 = vmatpush.msra.mxu0 %v53
    %2276 = vmatpush.msra.mxu0 %v45
    %2277 = vmatpush.msra.mxu0 %v37
    %2278 = vmatpush.msra.mxu0 %v29
    %2279 = vmatmul.f32.gmra.mxu0 %v2181
    %v2280 = vpop.f32.mrf.mxu0
    %v2281 = vadd.f32 %v487, %v2280
    %2282 = vdwg.mxu0
    %2283 = vmatpush.msra.mxu0 %v277
    %2284 = vmatpush.msra.mxu0 %v269
    %2285 = vmatpush.msra.mxu0 %v261
    %2286 = vmatpush.msra.mxu0 %v253
    %2287 = vmatpush.msra.mxu0 %v245
    %2288 = vmatpush.msra.mxu0 %v237
    %2289 = vmatpush.msra.mxu0 %v229
    %2290 = vmatpush.msra.mxu0 %v221
    %2291 = vmatpush.msra.mxu0 %v213
    %2292 = vmatpush.msra.mxu0 %v205
    %2293 = vmatpush.msra.mxu0 %v197
    %2294 = vmatpush.msra.mxu0 %v189
    %2295 = vmatpush.msra.mxu0 %v181
    %2296 = vmatpush.msra.mxu0 %v173
    %2297 = vmatpush.msra.mxu0 %v165
    %2298 = vmatpush.msra.mxu0 %v157
    %2299 = vmatmul.f32.gmra.mxu0 %v2182
    %v2300 = vpop.f32.mrf.mxu0
    %v2301 = vadd.f32 %v2281, %v2300
    %2302 = vdwg.mxu0
    %2303 = vmatpush.msra.mxu0 %v150
    %2304 = vmatpush.msra.mxu0 %v142
    %2305 = vmatpush.msra.mxu0 %v134
    %2306 = vmatpush.msra.mxu0 %v126
    %2307 = vmatpush.msra.mxu0 %v118
    %2308 = vmatpush.msra.mxu0 %v110
    %2309 = vmatpush.msra.mxu0 %v102
    %2310 = vmatpush.msra.mxu0 %v94
    %2311 = vmatpush.msra.mxu0 %v86
    %2312 = vmatpush.msra.mxu0 %v78
    %2313 = vmatpush.msra.mxu0 %v70
    %2314 = vmatpush.msra.mxu0 %v62
    %2315 = vmatpush.msra.mxu0 %v54
    %2316 = vmatpush.msra.mxu0 %v46
    %2317 = vmatpush.msra.mxu0 %v38
    %2318 = vmatpush.msra.mxu0 %v30
    %2319 = vmatmul.f32.gmra.mxu0 %v2181
    %v2320 = vpop.f32.mrf.mxu0
    %v2321 = vadd.f32 %v528, %v2320
    %2322 = vdwg.mxu0
    %2323 = vmatpush.msra.mxu0 %v278
    %2324 = vmatpush.msra.mxu0 %v270
    %2325 = vmatpush.msra.mxu0 %v262
    %2326 = vmatpush.msra.mxu0 %v254
    %2327 = vmatpush.msra.mxu0 %v246
    %2328 = vmatpush.msra.mxu0 %v238
    %2329 = vmatpush.msra.mxu0 %v230
    %2330 = vmatpush.msra.mxu0 %v222
    %2331 = vmatpush.msra.mxu0 %v214
    %2332 = vmatpush.msra.mxu0 %v206
    %2333 = vmatpush.msra.mxu0 %v198
    %2334 = vmatpush.msra.mxu0 %v190
    %2335 = vmatpush.msra.mxu0 %v182
    %2336 = vmatpush.msra.mxu0 %v174
    %2337 = vmatpush.msra.mxu0 %v166
    %2338 = vmatpush.msra.mxu0 %v158
    %2339 = vmatmul.f32.gmra.mxu0 %v2182
    %v2340 = vpop.f32.mrf.mxu0
    %v2341 = vadd.f32 %v2321, %v2340
    %2342 = vdwg.mxu0
    %2343 = vmatpush.msra.mxu0 %v151
    %2344 = vmatpush.msra.mxu0 %v143
    %2345 = vmatpush.msra.mxu0 %v135
    %2346 = vmatpush.msra.mxu0 %v127
    %2347 = vmatpush.msra.mxu0 %v119
    %2348 = vmatpush.msra.mxu0 %v111
    %2349 = vmatpush.msra.mxu0 %v103
    %2350 = vmatpush.msra.mxu0 %v95
    %2351 = vmatpush.msra.mxu0 %v87
    %2352 = vmatpush.msra.mxu0 %v79
    %2353 = vmatpush.msra.mxu0 %v71
    %2354 = vmatpush.msra.mxu0 %v63
    %2355 = vmatpush.msra.mxu0 %v55
    %2356 = vmatpush.msra.mxu0 %v47
    %2357 = vmatpush.msra.mxu0 %v39
    %2358 = vmatpush.msra.mxu0 %v31
    %2359 = vmatmul.f32.gmra.mxu0 %v2181
    %v2360 = vpop.f32.mrf.mxu0
    %v2361 = vadd.f32 %v569, %v2360
    %2362 = vdwg.mxu0
    %2363 = vmatpush.msra.mxu0 %v279
    %2364 = vmatpush.msra.mxu0 %v271
    %2365 = vmatpush.msra.mxu0 %v263
    %2366 = vmatpush.msra.mxu0 %v255
    %2367 = vmatpush.msra.mxu0 %v247
    %2368 = vmatpush.msra.mxu0 %v239
    %2369 = vmatpush.msra.mxu0 %v231
    %2370 = vmatpush.msra.mxu0 %v223
    %2371 = vmatpush.msra.mxu0 %v215
    %2372 = vmatpush.msra.mxu0 %v207
    %2373 = vmatpush.msra.mxu0 %v199
    %2374 = vmatpush.msra.mxu0 %v191
    %2375 = vmatpush.msra.mxu0 %v183
    %2376 = vmatpush.msra.mxu0 %v175
    %2377 = vmatpush.msra.mxu0 %v167
    %2378 = vmatpush.msra.mxu0 %v159
    %2379 = vmatmul.f32.gmra.mxu0 %v2182
    %v2380 = vpop.f32.mrf.mxu0
    %v2381 = vadd.f32 %v2361, %v2380
    %2382 = vdwg.mxu0
    %2383 = vmatpush.msra.mxu0 %v152
    %2384 = vmatpush.msra.mxu0 %v144
    %2385 = vmatpush.msra.mxu0 %v136
    %2386 = vmatpush.msra.mxu0 %v128
    %2387 = vmatpush.msra.mxu0 %v120
    %2388 = vmatpush.msra.mxu0 %v112
    %2389 = vmatpush.msra.mxu0 %v104
    %2390 = vmatpush.msra.mxu0 %v96
    %2391 = vmatpush.msra.mxu0 %v88
    %2392 = vmatpush.msra.mxu0 %v80
    %2393 = vmatpush.msra.mxu0 %v72
    %2394 = vmatpush.msra.mxu0 %v64
    %2395 = vmatpush.msra.mxu0 %v56
    %2396 = vmatpush.msra.mxu0 %v48
    %2397 = vmatpush.msra.mxu0 %v40
    %2398 = vmatpush.msra.mxu0 %v32
    %2399 = vmatmul.f32.gmra.mxu0 %v2181
    %v2400 = vpop.f32.mrf.mxu0
    %v2401 = vadd.f32 %v610, %v2400
    %2402 = vdwg.mxu0
    %2403 = vmatpush.msra.mxu0 %v280
    %2404 = vmatpush.msra.mxu0 %v272
    %2405 = vmatpush.msra.mxu0 %v264
    %2406 = vmatpush.msra.mxu0 %v256
    %2407 = vmatpush.msra.mxu0 %v248
    %2408 = vmatpush.msra.mxu0 %v240
    %2409 = vmatpush.msra.mxu0 %v232
    %2410 = vmatpush.msra.mxu0 %v224
    %2411 = vmatpush.msra.mxu0 %v216
    %2412 = vmatpush.msra.mxu0 %v208
    %2413 = vmatpush.msra.mxu0 %v200
    %2414 = vmatpush.msra.mxu0 %v192
    %2415 = vmatpush.msra.mxu0 %v184
    %2416 = vmatpush.msra.mxu0 %v176
    %2417 = vmatpush.msra.mxu0 %v168
    %2418 = vmatpush.msra.mxu0 %v160
    %2419 = vmatmul.f32.gmra.mxu0 %v2182
    %v2420 = vpop.f32.mrf.mxu0
    %v2421 = vadd.f32 %v2401, %v2420
    %2422 = vdwg.mxu0
    %2423 = vmatpush.msra.mxu0 %v153
    %2424 = vmatpush.msra.mxu0 %v145
    %2425 = vmatpush.msra.mxu0 %v137
    %2426 = vmatpush.msra.mxu0 %v129
    %2427 = vmatpush.msra.mxu0 %v121
    %2428 = vmatpush.msra.mxu0 %v113
    %2429 = vmatpush.msra.mxu0 %v105
    %2430 = vmatpush.msra.mxu0 %v97
    %2431 = vmatpush.msra.mxu0 %v89
    %2432 = vmatpush.msra.mxu0 %v81
    %2433 = vmatpush.msra.mxu0 %v73
    %2434 = vmatpush.msra.mxu0 %v65
    %2435 = vmatpush.msra.mxu0 %v57
    %2436 = vmatpush.msra.mxu0 %v49
    %2437 = vmatpush.msra.mxu0 %v41
    %2438 = vmatpush.msra.mxu0 %v33
    %2439 = vmatmul.f32.gmra.mxu0 %v2181
    %v2440 = vpop.f32.mrf.mxu0
    %v2441 = vadd.f32 %v651, %v2440
    %2442 = vdwg.mxu0
    %2443 = vmatpush.msra.mxu0 %v281
    %2444 = vmatpush.msra.mxu0 %v273
    %2445 = vmatpush.msra.mxu0 %v265
    %2446 = vmatpush.msra.mxu0 %v257
    %2447 = vmatpush.msra.mxu0 %v249
    %2448 = vmatpush.msra.mxu0 %v241
    %2449 = vmatpush.msra.mxu0 %v233
    %2450 = vmatpush.msra.mxu0 %v225
    %2451 = vmatpush.msra.mxu0 %v217
    %2452 = vmatpush.msra.mxu0 %v209
    %2453 = vmatpush.msra.mxu0 %v201
    %2454 = vmatpush.msra.mxu0 %v193
    %2455 = vmatpush.msra.mxu0 %v185
    %2456 = vmatpush.msra.mxu0 %v177
    %2457 = vmatpush.msra.mxu0 %v169
    %2458 = vmatpush.msra.mxu0 %v161
    %2459 = vmatmul.f32.gmra.mxu0 %v2182
    %v2460 = vpop.f32.mrf.mxu0
    %v2461 = vadd.f32 %v2441, %v2460
    %2462 = vdwg.mxu0
    %2463 = vmatpush.msra.mxu0 %v154
    %2464 = vmatpush.msra.mxu0 %v146
    %2465 = vmatpush.msra.mxu0 %v138
    %2466 = vmatpush.msra.mxu0 %v130
    %2467 = vmatpush.msra.mxu0 %v122
    %2468 = vmatpush.msra.mxu0 %v114
    %2469 = vmatpush.msra.mxu0 %v106
    %2470 = vmatpush.msra.mxu0 %v98
    %2471 = vmatpush.msra.mxu0 %v90
    %2472 = vmatpush.msra.mxu0 %v82
    %2473 = vmatpush.msra.mxu0 %v74
    %2474 = vmatpush.msra.mxu0 %v66
    %2475 = vmatpush.msra.mxu0 %v58
    %2476 = vmatpush.msra.mxu0 %v50
    %2477 = vmatpush.msra.mxu0 %v42
    %2478 = vmatpush.msra.mxu0 %v34
    %2479 = vmatmul.f32.gmra.mxu0 %v2181
    %v2480 = vpop.f32.mrf.mxu0
    %v2481 = vadd.f32 %v692, %v2480
    %2482 = vdwg.mxu0
    %2483 = vmatpush.msra.mxu0 %v282
    %2484 = vmatpush.msra.mxu0 %v274
    %2485 = vmatpush.msra.mxu0 %v266
    %2486 = vmatpush.msra.mxu0 %v258
    %2487 = vmatpush.msra.mxu0 %v250
    %2488 = vmatpush.msra.mxu0 %v242
    %2489 = vmatpush.msra.mxu0 %v234
    %2490 = vmatpush.msra.mxu0 %v226
    %2491 = vmatpush.msra.mxu0 %v218
    %2492 = vmatpush.msra.mxu0 %v210
    %2493 = vmatpush.msra.mxu0 %v202
    %2494 = vmatpush.msra.mxu0 %v194
    %2495 = vmatpush.msra.mxu0 %v186
    %2496 = vmatpush.msra.mxu0 %v178
    %2497 = vmatpush.msra.mxu0 %v170
    %2498 = vmatpush.msra.mxu0 %v162
    %2499 = vmatmul.f32.gmra.mxu0 %v2182
    %v2500 = vpop.f32.mrf.mxu0
    %v2501 = vadd.f32 %v2481, %v2500
    %2502 = vdwg.mxu0
    %v2503 = vmul.f32 %v2221, 0.5
    %v2504 = vmul.f32 %v2261, 0.5
    %v2505 = vmul.f32 %v2301, 0.5
    %v2506 = vmul.f32 %v2341, 0.5
    %v2507 = vmul.f32 %v2381, 0.5
    %v2508 = vmul.f32 %v2421, 0.5
    %v2509 = vmul.f32 %v2461, 0.5
    %v2510 = vmul.f32 %v2501, 0.5
    %v2511 = vtanh.pop %v2503
    %v2512 = vtanh.pop %v2504
    %v2513 = vtanh.pop %v2505
    %v2514 = vtanh.pop %v2506
    %v2515 = vtanh.pop %v2507
    %v2516 = vtanh.pop %v2508
    %v2517 = vtanh.pop %v2509
    %v2518 = vtanh.pop %v2510
    %v2519 = vmul.f32 %v2511, 0.5
    %v2520 = vmul.f32 %v2512, 0.5
    %v2521 = vadd.f32 %v2519, 0.5
    %v2522 = vadd.f32 %v2520, 0.5
    %v2523 = vmul.f32 %v2513, 0.5
    %v2524 = vmul.f32 %v2514, 0.5
    %v2525 = vadd.f32 %v2523, 0.5
    %v2526 = vadd.f32 %v2524, 0.5
    %v2527 = vmul.f32 %v2517, 0.5
    %v2528 = vmul.f32 %v2518, 0.5
    %v2529 = vadd.f32 %v2527, 0.5
    %v2530 = vadd.f32 %v2528, 0.5
    %v2531 = vmul.f32 %v2525, %v2177
    %v2532 = vmul.f32 %v2526, %v2178
    %v2533 = vmul.f32 %v2521, %v2515
    %v2534 = vmul.f32 %v2522, %v2516
    %v2535 = vadd.f32 %v2531, %v2533
    %v2536 = vadd.f32 %v2532, %v2534
    %v2537 = vtanh.pop %v2535
    %v2538 = vtanh.pop %v2536
    %v2539 = vmul.f32 %v2529, %v2537
    %v2540 = vmul.f32 %v2530, %v2538
    %2541 = vmatpush.msra.mxu0 %v147
    %2542 = vmatpush.msra.mxu0 %v139
    %2543 = vmatpush.msra.mxu0 %v131
    %2544 = vmatpush.msra.mxu0 %v123
    %2545 = vmatpush.msra.mxu0 %v115
    %2546 = vmatpush.msra.mxu0 %v107
    %2547 = vmatpush.msra.mxu0 %v99
    %2548 = vmatpush.msra.mxu0 %v91
    %2549 = vmatpush.msra.mxu0 %v83
    %2550 = vmatpush.msra.mxu0 %v75
    %2551 = vmatpush.msra.mxu0 %v67
    %2552 = vmatpush.msra.mxu0 %v59
    %2553 = vmatpush.msra.mxu0 %v51
    %2554 = vmatpush.msra.mxu0 %v43
    %2555 = vmatpush.msra.mxu0 %v35
    %2556 = vmatpush.msra.mxu0 %v27
    %2557 = vmatmul.f32.gmra.mxu0 %v2539
    %v2558 = vpop.f32.mrf.mxu0
    %v2559 = vadd.f32 %v408, %v2558
    %2560 = vdwg.mxu0
    %2561 = vmatpush.msra.mxu0 %v275
    %2562 = vmatpush.msra.mxu0 %v267
    %2563 = vmatpush.msra.mxu0 %v259
    %2564 = vmatpush.msra.mxu0 %v251
    %2565 = vmatpush.msra.mxu0 %v243
    %2566 = vmatpush.msra.mxu0 %v235
    %2567 = vmatpush.msra.mxu0 %v227
    %2568 = vmatpush.msra.mxu0 %v219
    %2569 = vmatpush.msra.mxu0 %v211
    %2570 = vmatpush.msra.mxu0 %v203
    %2571 = vmatpush.msra.mxu0 %v195
    %2572 = vmatpush.msra.mxu0 %v187
    %2573 = vmatpush.msra.mxu0 %v179
    %2574 = vmatpush.msra.mxu0 %v171
    %2575 = vmatpush.msra.mxu0 %v163
    %2576 = vmatpush.msra.mxu0 %v155
    %2577 = vmatmul.f32.gmra.mxu0 %v2540
    %v2578 = vpop.f32.mrf.mxu0
    %v2579 = vadd.f32 %v2559, %v2578
    %2580 = vdwg.mxu0
    %2581 = vmatpush.msra.mxu0 %v148
    %2582 = vmatpush.msra.mxu0 %v140
    %2583 = vmatpush.msra.mxu0 %v132
    %2584 = vmatpush.msra.mxu0 %v124
    %2585 = vmatpush.msra.mxu0 %v116
    %2586 = vmatpush.msra.mxu0 %v108
    %2587 = vmatpush.msra.mxu0 %v100
    %2588 = vmatpush.msra.mxu0 %v92
    %2589 = vmatpush.msra.mxu0 %v84
    %2590 = vmatpush.msra.mxu0 %v76
    %2591 = vmatpush.msra.mxu0 %v68
    %2592 = vmatpush.msra.mxu0 %v60
    %2593 = vmatpush.msra.mxu0 %v52
    %2594 = vmatpush.msra.mxu0 %v44
    %2595 = vmatpush.msra.mxu0 %v36
    %2596 = vmatpush.msra.mxu0 %v28
    %2597 = vmatmul.f32.gmra.mxu0 %v2539
    %v2598 = vpop.f32.mrf.mxu0
    %v2599 = vadd.f32 %v449, %v2598
    %2600 = vdwg.mxu0
    %2601 = vmatpush.msra.mxu0 %v276
    %2602 = vmatpush.msra.mxu0 %v268
    %2603 = vmatpush.msra.mxu0 %v260
    %2604 = vmatpush.msra.mxu0 %v252
    %2605 = vmatpush.msra.mxu0 %v244
    %2606 = vmatpush.msra.mxu0 %v236
    %2607 = vmatpush.msra.mxu0 %v228
    %2608 = vmatpush.msra.mxu0 %v220
    %2609 = vmatpush.msra.mxu0 %v212
    %2610 = vmatpush.msra.mxu0 %v204
    %2611 = vmatpush.msra.mxu0 %v196
    %2612 = vmatpush.msra.mxu0 %v188
    %2613 = vmatpush.msra.mxu0 %v180
    %2614 = vmatpush.msra.mxu0 %v172
    %2615 = vmatpush.msra.mxu0 %v164
    %2616 = vmatpush.msra.mxu0 %v156
    %2617 = vmatmul.f32.gmra.mxu0 %v2540
    %v2618 = vpop.f32.mrf.mxu0
    %v2619 = vadd.f32 %v2599, %v2618
    %2620 = vdwg.mxu0
    %2621 = vmatpush.msra.mxu0 %v149
    %2622 = vmatpush.msra.mxu0 %v141
    %2623 = vmatpush.msra.mxu0 %v133
    %2624 = vmatpush.msra.mxu0 %v125
    %2625 = vmatpush.msra.mxu0 %v117
    %2626 = vmatpush.msra.mxu0 %v109
    %2627 = vmatpush.msra.mxu0 %v101
    %2628 = vmatpush.msra.mxu0 %v93
    %2629 = vmatpush.msra.mxu0 %v85
    %2630 = vmatpush.msra.mxu0 %v77
    %2631 = vmatpush.msra.mxu0 %v69
    %2632 = vmatpush.msra.mxu0 %v61
    %2633 = vmatpush.msra.mxu0 %v53
    %2634 = vmatpush.msra.mxu0 %v45
    %2635 = vmatpush.msra.mxu0 %v37
    %2636 = vmatpush.msra.mxu0 %v29
    %2637 = vmatmul.f32.gmra.mxu0 %v2539
    %v2638 = vpop.f32.mrf.mxu0
    %v2639 = vadd.f32 %v490, %v2638
    %2640 = vdwg.mxu0
    %2641 = vmatpush.msra.mxu0 %v277
    %2642 = vmatpush.msra.mxu0 %v269
    %2643 = vmatpush.msra.mxu0 %v261
    %2644 = vmatpush.msra.mxu0 %v253
    %2645 = vmatpush.msra.mxu0 %v245
    %2646 = vmatpush.msra.mxu0 %v237
    %2647 = vmatpush.msra.mxu0 %v229
    %2648 = vmatpush.msra.mxu0 %v221
    %2649 = vmatpush.msra.mxu0 %v213
    %2650 = vmatpush.msra.mxu0 %v205
    %2651 = vmatpush.msra.mxu0 %v197
    %2652 = vmatpush.msra.mxu0 %v189
    %2653 = vmatpush.msra.mxu0 %v181
    %2654 = vmatpush.msra.mxu0 %v173
    %2655 = vmatpush.msra.mxu0 %v165
    %2656 = vmatpush.msra.mxu0 %v157
    %2657 = vmatmul.f32.gmra.mxu0 %v2540
    %v2658 = vpop.f32.mrf.mxu0
    %v2659 = vadd.f32 %v2639, %v2658
    %2660 = vdwg.mxu0
    %2661 = vmatpush.msra.mxu0 %v150
    %2662 = vmatpush.msra.mxu0 %v142
    %2663 = vmatpush.msra.mxu0 %v134
    %2664 = vmatpush.msra.mxu0 %v126
    %2665 = vmatpush.msra.mxu0 %v118
    %2666 = vmatpush.msra.mxu0 %v110
    %2667 = vmatpush.msra.mxu0 %v102
    %2668 = vmatpush.msra.mxu0 %v94
    %2669 = vmatpush.msra.mxu0 %v86
    %2670 = vmatpush.msra.mxu0 %v78
    %2671 = vmatpush.msra.mxu0 %v70
    %2672 = vmatpush.msra.mxu0 %v62
    %2673 = vmatpush.msra.mxu0 %v54
    %2674 = vmatpush.msra.mxu0 %v46
    %2675 = vmatpush.msra.mxu0 %v38
    %2676 = vmatpush.msra.mxu0 %v30
    %2677 = vmatmul.f32.gmra.mxu0 %v2539
    %v2678 = vpop.f32.mrf.mxu0
    %v2679 = vadd.f32 %v531, %v2678
    %2680 = vdwg.mxu0
    %2681 = vmatpush.msra.mxu0 %v278
    %2682 = vmatpush.msra.mxu0 %v270
    %2683 = vmatpush.msra.mxu0 %v262
    %2684 = vmatpush.msra.mxu0 %v254
    %2685 = vmatpush.msra.mxu0 %v246
    %2686 = vmatpush.msra.mxu0 %v238
    %2687 = vmatpush.msra.mxu0 %v230
    %2688 = vmatpush.msra.mxu0 %v222
    %2689 = vmatpush.msra.mxu0 %v214
    %2690 = vmatpush.msra.mxu0 %v206
    %2691 = vmatpush.msra.mxu0 %v198
    %2692 = vmatpush.msra.mxu0 %v190
    %2693 = vmatpush.msra.mxu0 %v182
    %2694 = vmatpush.msra.mxu0 %v174
    %2695 = vmatpush.msra.mxu0 %v166
    %2696 = vmatpush.msra.mxu0 %v158
    %2697 = vmatmul.f32.gmra.mxu0 %v2540
    %v2698 = vpop.f32.mrf.mxu0
    %v2699 = vadd.f32 %v2679, %v2698
    %2700 = vdwg.mxu0
    %2701 = vmatpush.msra.mxu0 %v151
    %2702 = vmatpush.msra.mxu0 %v143
    %2703 = vmatpush.msra.mxu0 %v135
    %2704 = vmatpush.msra.mxu0 %v127
    %2705 = vmatpush.msra.mxu0 %v119
    %2706 = vmatpush.msra.mxu0 %v111
    %2707 = vmatpush.msra.mxu0 %v103
    %2708 = vmatpush.msra.mxu0 %v95
    %2709 = vmatpush.msra.mxu0 %v87
    %2710 = vmatpush.msra.mxu0 %v79
    %2711 = vmatpush.msra.mxu0 %v71
    %2712 = vmatpush.msra.mxu0 %v63
    %2713 = vmatpush.msra.mxu0 %v55
    %2714 = vmatpush.msra.mxu0 %v47
    %2715 = vmatpush.msra.mxu0 %v39
    %2716 = vmatpush.msra.mxu0 %v31
    %2717 = vmatmul.f32.gmra.mxu0 %v2539
    %v2718 = vpop.f32.mrf.mxu0
    %v2719 = vadd.f32 %v572, %v2718
    %2720 = vdwg.mxu0
    %2721 = vmatpush.msra.mxu0 %v279
    %2722 = vmatpush.msra.mxu0 %v271
    %2723 = vmatpush.msra.mxu0 %v263
    %2724 = vmatpush.msra.mxu0 %v255
    %2725 = vmatpush.msra.mxu0 %v247
    %2726 = vmatpush.msra.mxu0 %v239
    %2727 = vmatpush.msra.mxu0 %v231
    %2728 = vmatpush.msra.mxu0 %v223
    %2729 = vmatpush.msra.mxu0 %v215
    %2730 = vmatpush.msra.mxu0 %v207
    %2731 = vmatpush.msra.mxu0 %v199
    %2732 = vmatpush.msra.mxu0 %v191
    %2733 = vmatpush.msra.mxu0 %v183
    %2734 = vmatpush.msra.mxu0 %v175
    %2735 = vmatpush.msra.mxu0 %v167
    %2736 = vmatpush.msra.mxu0 %v159
    %2737 = vmatmul.f32.gmra.mxu0 %v2540
    %v2738 = vpop.f32.mrf.mxu0
    %v2739 = vadd.f32 %v2719, %v2738
    %2740 = vdwg.mxu0
    %2741 = vmatpush.msra.mxu0 %v152
    %2742 = vmatpush.msra.mxu0 %v144
    %2743 = vmatpush.msra.mxu0 %v136
    %2744 = vmatpush.msra.mxu0 %v128
    %2745 = vmatpush.msra.mxu0 %v120
    %2746 = vmatpush.msra.mxu0 %v112
    %2747 = vmatpush.msra.mxu0 %v104
    %2748 = vmatpush.msra.mxu0 %v96
    %2749 = vmatpush.msra.mxu0 %v88
    %2750 = vmatpush.msra.mxu0 %v80
    %2751 = vmatpush.msra.mxu0 %v72
    %2752 = vmatpush.msra.mxu0 %v64
    %2753 = vmatpush.msra.mxu0 %v56
    %2754 = vmatpush.msra.mxu0 %v48
    %2755 = vmatpush.msra.mxu0 %v40
    %2756 = vmatpush.msra.mxu0 %v32
    %2757 = vmatmul.f32.gmra.mxu0 %v2539
    %v2758 = vpop.f32.mrf.mxu0
    %v2759 = vadd.f32 %v613, %v2758
    %2760 = vdwg.mxu0
    %2761 = vmatpush.msra.mxu0 %v280
    %2762 = vmatpush.msra.mxu0 %v272
    %2763 = vmatpush.msra.mxu0 %v264
    %2764 = vmatpush.msra.mxu0 %v256
    %2765 = vmatpush.msra.mxu0 %v248
    %2766 = vmatpush.msra.mxu0 %v240
    %2767 = vmatpush.msra.mxu0 %v232
    %2768 = vmatpush.msra.mxu0 %v224
    %2769 = vmatpush.msra.mxu0 %v216
    %2770 = vmatpush.msra.mxu0 %v208
    %2771 = vmatpush.msra.mxu0 %v200
    %2772 = vmatpush.msra.mxu0 %v192
    %2773 = vmatpush.msra.mxu0 %v184
    %2774 = vmatpush.msra.mxu0 %v176
    %2775 = vmatpush.msra.mxu0 %v168
    %2776 = vmatpush.msra.mxu0 %v160
    %2777 = vmatmul.f32.gmra.mxu0 %v2540
    %v2778 = vpop.f32.mrf.mxu0
    %v2779 = vadd.f32 %v2759, %v2778
    %2780 = vdwg.mxu0
    %2781 = vmatpush.msra.mxu0 %v153
    %2782 = vmatpush.msra.mxu0 %v145
    %2783 = vmatpush.msra.mxu0 %v137
    %2784 = vmatpush.msra.mxu0 %v129
    %2785 = vmatpush.msra.mxu0 %v121
    %2786 = vmatpush.msra.mxu0 %v113
    %2787 = vmatpush.msra.mxu0 %v105
    %2788 = vmatpush.msra.mxu0 %v97
    %2789 = vmatpush.msra.mxu0 %v89
    %2790 = vmatpush.msra.mxu0 %v81
    %2791 = vmatpush.msra.mxu0 %v73
    %2792 = vmatpush.msra.mxu0 %v65
    %2793 = vmatpush.msra.mxu0 %v57
    %2794 = vmatpush.msra.mxu0 %v49
    %2795 = vmatpush.msra.mxu0 %v41
    %2796 = vmatpush.msra.mxu0 %v33
    %2797 = vmatmul.f32.gmra.mxu0 %v2539
    %v2798 = vpop.f32.mrf.mxu0
    %v2799 = vadd.f32 %v654, %v2798
    %2800 = vdwg.mxu0
    %2801 = vmatpush.msra.mxu0 %v281
    %2802 = vmatpush.msra.mxu0 %v273
    %2803 = vmatpush.msra.mxu0 %v265
    %2804 = vmatpush.msra.mxu0 %v257
    %2805 = vmatpush.msra.mxu0 %v249
    %2806 = vmatpush.msra.mxu0 %v241
    %2807 = vmatpush.msra.mxu0 %v233
    %2808 = vmatpush.msra.mxu0 %v225
    %2809 = vmatpush.msra.mxu0 %v217
    %2810 = vmatpush.msra.mxu0 %v209
    %2811 = vmatpush.msra.mxu0 %v201
    %2812 = vmatpush.msra.mxu0 %v193
    %2813 = vmatpush.msra.mxu0 %v185
    %2814 = vmatpush.msra.mxu0 %v177
    %2815 = vmatpush.msra.mxu0 %v169
    %2816 = vmatpush.msra.mxu0 %v161
    %2817 = vmatmul.f32.gmra.mxu0 %v2540
    %v2818 = vpop.f32.mrf.mxu0
    %v2819 = vadd.f32 %v2799, %v2818
    %2820 = vdwg.mxu0
    %2821 = vmatpush.msra.mxu0 %v154
    %2822 = vmatpush.msra.mxu0 %v146
    %2823 = vmatpush.msra.mxu0 %v138
    %2824 = vmatpush.msra.mxu0 %v130
    %2825 = vmatpush.msra.mxu0 %v122
    %2826 = vmatpush.msra.mxu0 %v114
    %2827 = vmatpush.msra.mxu0 %v106
    %2828 = vmatpush.msra.mxu0 %v98
    %2829 = vmatpush.msra.mxu0 %v90
    %2830 = vmatpush.msra.mxu0 %v82
    %2831 = vmatpush.msra.mxu0 %v74
    %2832 = vmatpush.msra.mxu0 %v66
    %2833 = vmatpush.msra.mxu0 %v58
    %2834 = vmatpush.msra.mxu0 %v50
    %2835 = vmatpush.msra.mxu0 %v42
    %2836 = vmatpush.msra.mxu0 %v34
    %2837 = vmatmul.f32.gmra.mxu0 %v2539
    %v2838 = vpop.f32.mrf.mxu0
    %v2839 = vadd.f32 %v695, %v2838
    %2840 = vdwg.mxu0
    %2841 = vmatpush.msra.mxu0 %v282
    %2842 = vmatpush.msra.mxu0 %v274
    %2843 = vmatpush.msra.mxu0 %v266
    %2844 = vmatpush.msra.mxu0 %v258
    %2845 = vmatpush.msra.mxu0 %v250
    %2846 = vmatpush.msra.mxu0 %v242
    %2847 = vmatpush.msra.mxu0 %v234
    %2848 = vmatpush.msra.mxu0 %v226
    %2849 = vmatpush.msra.mxu0 %v218
    %2850 = vmatpush.msra.mxu0 %v210
    %2851 = vmatpush.msra.mxu0 %v202
    %2852 = vmatpush.msra.mxu0 %v194
    %2853 = vmatpush.msra.mxu0 %v186
    %2854 = vmatpush.msra.mxu0 %v178
    %2855 = vmatpush.msra.mxu0 %v170
    %2856 = vmatpush.msra.mxu0 %v162
    %2857 = vmatmul.f32.gmra.mxu0 %v2540
    %v2858 = vpop.f32.mrf.mxu0
    %v2859 = vadd.f32 %v2839, %v2858
    %2860 = vdwg.mxu0
    %v2861 = vmul.f32 %v2579, 0.5
    %v2862 = vmul.f32 %v2619, 0.5
    %v2863 = vmul.f32 %v2659, 0.5
    %v2864 = vmul.f32 %v2699, 0.5
    %v2865 = vmul.f32 %v2739, 0.5
    %v2866 = vmul.f32 %v2779, 0.5
    %v2867 = vmul.f32 %v2819, 0.5
    %v2868 = vmul.f32 %v2859, 0.5
    %v2869 = vtanh.pop %v2861
    %v2870 = vtanh.pop %v2862
    %v2871 = vtanh.pop %v2863
    %v2872 = vtanh.pop %v2864
    %v2873 = vtanh.pop %v2865
    %v2874 = vtanh.pop %v2866
    %v2875 = vtanh.pop %v2867
    %v2876 = vtanh.pop %v2868
    %v2877 = vmul.f32 %v2869, 0.5
    %v2878 = vmul.f32 %v2870, 0.5
    %v2879 = vadd.f32 %v2877, 0.5
    %v2880 = vadd.f32 %v2878, 0.5
    %v2881 = vmul.f32 %v2871, 0.5
    %v2882 = vmul.f32 %v2872, 0.5
    %v2883 = vadd.f32 %v2881, 0.5
    %v2884 = vadd.f32 %v2882, 0.5
    %v2885 = vmul.f32 %v2875, 0.5
    %v2886 = vmul.f32 %v2876, 0.5
    %v2887 = vadd.f32 %v2885, 0.5
    %v2888 = vadd.f32 %v2886, 0.5
    %v2889 = vmul.f32 %v2883, %v2535
    %v2890 = vmul.f32 %v2884, %v2536
    %v2891 = vmul.f32 %v2879, %v2873
    %v2892 = vmul.f32 %v2880, %v2874
    %v2893 = vadd.f32 %v2889, %v2891
    %v2894 = vadd.f32 %v2890, %v2892
    %v2895 = vtanh.pop %v2893
    %v2896 = vtanh.pop %v2894
    %v2897 = vmul.f32 %v2887, %v2895
    %v2898 = vmul.f32 %v2888, %v2896
    %2899 = vmatpush.msra.mxu0 %v147
    %2900 = vmatpush.msra.mxu0 %v139
    %2901 = vmatpush.msra.mxu0 %v131
    %2902 = vmatpush.msra.mxu0 %v123
    %2903 = vmatpush.msra.mxu0 %v115
    %2904 = vmatpush.msra.mxu0 %v107
    %2905 = vmatpush.msra.mxu0 %v99
    %2906 = vmatpush.msra.mxu0 %v91
    %2907 = vmatpush.msra.mxu0 %v83
    %2908 = vmatpush.msra.mxu0 %v75
    %2909 = vmatpush.msra.mxu0 %v67
    %2910 = vmatpush.msra.mxu0 %v59
    %2911 = vmatpush.msra.mxu0 %v51
    %2912 = vmatpush.msra.mxu0 %v43
    %2913 = vmatpush.msra.mxu0 %v35
    %2914 = vmatpush.msra.mxu0 %v27
    %2915 = vmatmul.f32.gmra.mxu0 %v2897
    %v2916 = vpop.f32.mrf.mxu0
    %v2917 = vadd.f32 %v411, %v2916
    %2918 = vdwg.mxu0
    %2919 = vmatpush.msra.mxu0 %v275
    %2920 = vmatpush.msra.mxu0 %v267
    %2921 = vmatpush.msra.mxu0 %v259
    %2922 = vmatpush.msra.mxu0 %v251
    %2923 = vmatpush.msra.mxu0 %v243
    %2924 = vmatpush.msra.mxu0 %v235
    %2925 = vmatpush.msra.mxu0 %v227
    %2926 = vmatpush.msra.mxu0 %v219
    %2927 = vmatpush.msra.mxu0 %v211
    %2928 = vmatpush.msra.mxu0 %v203
    %2929 = vmatpush.msra.mxu0 %v195
    %2930 = vmatpush.msra.mxu0 %v187
    %2931 = vmatpush.msra.mxu0 %v179
    %2932 = vmatpush.msra.mxu0 %v171
    %2933 = vmatpush.msra.mxu0 %v163
    %2934 = vmatpush.msra.mxu0 %v155
    %2935 = vmatmul.f32.gmra.mxu0 %v2898
    %v2936 = vpop.f32.mrf.mxu0
    %v2937 = vadd.f32 %v2917, %v2936
    %2938 = vdwg.mxu0
    %2939 = vmatpush.msra.mxu0 %v148
    %2940 = vmatpush.msra.mxu0 %v140
    %2941 = vmatpush.msra.mxu0 %v132
    %2942 = vmatpush.msra.mxu0 %v124
    %2943 = vmatpush.msra.mxu0 %v116
    %2944 = vmatpush.msra.mxu0 %v108
    %2945 = vmatpush.msra.mxu0 %v100
    %2946 = vmatpush.msra.mxu0 %v92
    %2947 = vmatpush.msra.mxu0 %v84
    %2948 = vmatpush.msra.mxu0 %v76
    %2949 = vmatpush.msra.mxu0 %v68
    %2950 = vmatpush.msra.mxu0 %v60
    %2951 = vmatpush.msra.mxu0 %v52
    %2952 = vmatpush.msra.mxu0 %v44
    %2953 = vmatpush.msra.mxu0 %v36
    %2954 = vmatpush.msra.mxu0 %v28
    %2955 = vmatmul.f32.gmra.mxu0 %v2897
    %v2956 = vpop.f32.mrf.mxu0
    %v2957 = vadd.f32 %v452, %v2956
    %2958 = vdwg.mxu0
    %2959 = vmatpush.msra.mxu0 %v276
    %2960 = vmatpush.msra.mxu0 %v268
    %2961 = vmatpush.msra.mxu0 %v260
    %2962 = vmatpush.msra.mxu0 %v252
    %2963 = vmatpush.msra.mxu0 %v244
    %2964 = vmatpush.msra.mxu0 %v236
    %2965 = vmatpush.msra.mxu0 %v228
    %2966 = vmatpush.msra.mxu0 %v220
    %2967 = vmatpush.msra.mxu0 %v212
    %2968 = vmatpush.msra.mxu0 %v204
    %2969 = vmatpush.msra.mxu0 %v196
    %2970 = vmatpush.msra.mxu0 %v188
    %2971 = vmatpush.msra.mxu0 %v180
    %2972 = vmatpush.msra.mxu0 %v172
    %2973 = vmatpush.msra.mxu0 %v164
    %2974 = vmatpush.msra.mxu0 %v156
    %2975 = vmatmul.f32.gmra.mxu0 %v2898
    %v2976 = vpop.f32.mrf.mxu0
    %v2977 = vadd.f32 %v2957, %v2976
    %2978 = vdwg.mxu0
    %2979 = vmatpush.msra.mxu0 %v149
    %2980 = vmatpush.msra.mxu0 %v141
    %2981 = vmatpush.msra.mxu0 %v133
    %2982 = vmatpush.msra.mxu0 %v125
    %2983 = vmatpush.msra.mxu0 %v117
    %2984 = vmatpush.msra.mxu0 %v109
    %2985 = vmatpush.msra.mxu0 %v101
    %2986 = vmatpush.msra.mxu0 %v93
    %2987 = vmatpush.msra.mxu0 %v85
    %2988 = vmatpush.msra.mxu0 %v77
    %2989 = vmatpush.msra.mxu0 %v69
    %2990 = vmatpush.msra.mxu0 %v61
    %2991 = vmatpush.msra.mxu0 %v53
    %2992 = vmatpush.msra.mxu0 %v45
    %2993 = vmatpush.msra.mxu0 %v37
    %2994 = vmatpush.msra.mxu0 %v29
    %2995 = vmatmul.f32.gmra.mxu0 %v2897
    %v2996 = vpop.f32.mrf.mxu0
    %v2997 = vadd.f32 %v493, %v2996
    %2998 = vdwg.mxu0
    %2999 = vmatpush.msra.mxu0 %v277
    %3000 = vmatpush.msra.mxu0 %v269
    %3001 = vmatpush.msra.mxu0 %v261
    %3002 = vmatpush.msra.mxu0 %v253
    %3003 = vmatpush.msra.mxu0 %v245
    %3004 = vmatpush.msra.mxu0 %v237
    %3005 = vmatpush.msra.mxu0 %v229
    %3006 = vmatpush.msra.mxu0 %v221
    %3007 = vmatpush.msra.mxu0 %v213
    %3008 = vmatpush.msra.mxu0 %v205
    %3009 = vmatpush.msra.mxu0 %v197
    %3010 = vmatpush.msra.mxu0 %v189
    %3011 = vmatpush.msra.mxu0 %v181
    %3012 = vmatpush.msra.mxu0 %v173
    %3013 = vmatpush.msra.mxu0 %v165
    %3014 = vmatpush.msra.mxu0 %v157
    %3015 = vmatmul.f32.gmra.mxu0 %v2898
    %v3016 = vpop.f32.mrf.mxu0
    %v3017 = vadd.f32 %v2997, %v3016
    %3018 = vdwg.mxu0
    %3019 = vmatpush.msra.mxu0 %v150
    %3020 = vmatpush.msra.mxu0 %v142
    %3021 = vmatpush.msra.mxu0 %v134
    %3022 = vmatpush.msra.mxu0 %v126
    %3023 = vmatpush.msra.mxu0 %v118
    %3024 = vmatpush.msra.mxu0 %v110
    %3025 = vmatpush.msra.mxu0 %v102
    %3026 = vmatpush.msra.mxu0 %v94
    %3027 = vmatpush.msra.mxu0 %v86
    %3028 = vmatpush.msra.mxu0 %v78
    %3029 = vmatpush.msra.mxu0 %v70
    %3030 = vmatpush.msra.mxu0 %v62
    %3031 = vmatpush.msra.mxu0 %v54
    %3032 = vmatpush.msra.mxu0 %v46
    %3033 = vmatpush.msra.mxu0 %v38
    %3034 = vmatpush.msra.mxu0 %v30
    %3035 = vmatmul.f32.gmra.mxu0 %v2897
    %v3036 = vpop.f32.mrf.mxu0
    %v3037 = vadd.f32 %v534, %v3036
    %3038 = vdwg.mxu0
    %3039 = vmatpush.msra.mxu0 %v278
    %3040 = vmatpush.msra.mxu0 %v270
    %3041 = vmatpush.msra.mxu0 %v262
    %3042 = vmatpush.msra.mxu0 %v254
    %3043 = vmatpush.msra.mxu0 %v246
    %3044 = vmatpush.msra.mxu0 %v238
    %3045 = vmatpush.msra.mxu0 %v230
    %3046 = vmatpush.msra.mxu0 %v222
    %3047 = vmatpush.msra.mxu0 %v214
    %3048 = vmatpush.msra.mxu0 %v206
    %3049 = vmatpush.msra.mxu0 %v198
    %3050 = vmatpush.msra.mxu0 %v190
    %3051 = vmatpush.msra.mxu0 %v182
    %3052 = vmatpush.msra.mxu0 %v174
    %3053 = vmatpush.msra.mxu0 %v166
    %3054 = vmatpush.msra.mxu0 %v158
    %3055 = vmatmul.f32.gmra.mxu0 %v2898
    %v3056 = vpop.f32.mrf.mxu0
    %v3057 = vadd.f32 %v3037, %v3056
    %3058 = vdwg.mxu0
    %3059 = vmatpush.msra.mxu0 %v151
    %3060 = vmatpush.msra.mxu0 %v143
    %3061 = vmatpush.msra.mxu0 %v135
    %3062 = vmatpush.msra.mxu0 %v127
    %3063 = vmatpush.msra.mxu0 %v119
    %3064 = vmatpush.msra.mxu0 %v111
    %3065 = vmatpush.msra.mxu0 %v103
    %3066 = vmatpush.msra.mxu0 %v95
    %3067 = vmatpush.msra.mxu0 %v87
    %3068 = vmatpush.msra.mxu0 %v79
    %3069 = vmatpush.msra.mxu0 %v71
    %3070 = vmatpush.msra.mxu0 %v63
    %3071 = vmatpush.msra.mxu0 %v55
    %3072 = vmatpush.msra.mxu0 %v47
    %3073 = vmatpush.msra.mxu0 %v39
    %3074 = vmatpush.msra.mxu0 %v31
    %3075 = vmatmul.f32.gmra.mxu0 %v2897
    %v3076 = vpop.f32.mrf.mxu0
    %v3077 = vadd.f32 %v575, %v3076
    %3078 = vdwg.mxu0
    %3079 = vmatpush.msra.mxu0 %v279
    %3080 = vmatpush.msra.mxu0 %v271
    %3081 = vmatpush.msra.mxu0 %v263
    %3082 = vmatpush.msra.mxu0 %v255
    %3083 = vmatpush.msra.mxu0 %v247
    %3084 = vmatpush.msra.mxu0 %v239
    %3085 = vmatpush.msra.mxu0 %v231
    %3086 = vmatpush.msra.mxu0 %v223
    %3087 = vmatpush.msra.mxu0 %v215
    %3088 = vmatpush.msra.mxu0 %v207
    %3089 = vmatpush.msra.mxu0 %v199
    %3090 = vmatpush.msra.mxu0 %v191
    %3091 = vmatpush.msra.mxu0 %v183
    %3092 = vmatpush.msra.mxu0 %v175
    %3093 = vmatpush.msra.mxu0 %v167
    %3094 = vmatpush.msra.mxu0 %v159
    %3095 = vmatmul.f32.gmra.mxu0 %v2898
    %v3096 = vpop.f32.mrf.mxu0
    %v3097 = vadd.f32 %v3077, %v3096
    %3098 = vdwg.mxu0
    %3099 = vmatpush.msra.mxu0 %v152
    %3100 = vmatpush.msra.mxu0 %v144
    %3101 = vmatpush.msra.mxu0 %v136
    %3102 = vmatpush.msra.mxu0 %v128
    %3103 = vmatpush.msra.mxu0 %v120
    %3104 = vmatpush.msra.mxu0 %v112
    %3105 = vmatpush.msra.mxu0 %v104
    %3106 = vmatpush.msra.mxu0 %v96
    %3107 = vmatpush.msra.mxu0 %v88
    %3108 = vmatpush.msra.mxu0 %v80
    %3109 = vmatpush.msra.mxu0 %v72
    %3110 = vmatpush.msra.mxu0 %v64
    %3111 = vmatpush.msra.mxu0 %v56
    %3112 = vmatpush.msra.mxu0 %v48
    %3113 = vmatpush.msra.mxu0 %v40
    %3114 = vmatpush.msra.mxu0 %v32
    %3115 = vmatmul.f32.gmra.mxu0 %v2897
    %v3116 = vpop.f32.mrf.mxu0
    %v3117 = vadd.f32 %v616, %v3116
    %3118 = vdwg.mxu0
    %3119 = vmatpush.msra.mxu0 %v280
    %3120 = vmatpush.msra.mxu0 %v272
    %3121 = vmatpush.msra.mxu0 %v264
    %3122 = vmatpush.msra.mxu0 %v256
    %3123 = vmatpush.msra.mxu0 %v248
    %3124 = vmatpush.msra.mxu0 %v240
    %3125 = vmatpush.msra.mxu0 %v232
    %3126 = vmatpush.msra.mxu0 %v224
    %3127 = vmatpush.msra.mxu0 %v216
    %3128 = vmatpush.msra.mxu0 %v208
    %3129 = vmatpush.msra.mxu0 %v200
    %3130 = vmatpush.msra.mxu0 %v192
    %3131 = vmatpush.msra.mxu0 %v184
    %3132 = vmatpush.msra.mxu0 %v176
    %3133 = vmatpush.msra.mxu0 %v168
    %3134 = vmatpush.msra.mxu0 %v160
    %3135 = vmatmul.f32.gmra.mxu0 %v2898
    %v3136 = vpop.f32.mrf.mxu0
    %v3137 = vadd.f32 %v3117, %v3136
    %3138 = vdwg.mxu0
    %3139 = vmatpush.msra.mxu0 %v153
    %3140 = vmatpush.msra.mxu0 %v145
    %3141 = vmatpush.msra.mxu0 %v137
    %3142 = vmatpush.msra.mxu0 %v129
    %3143 = vmatpush.msra.mxu0 %v121
    %3144 = vmatpush.msra.mxu0 %v113
    %3145 = vmatpush.msra.mxu0 %v105
    %3146 = vmatpush.msra.mxu0 %v97
    %3147 = vmatpush.msra.mxu0 %v89
    %3148 = vmatpush.msra.mxu0 %v81
    %3149 = vmatpush.msra.mxu0 %v73
    %3150 = vmatpush.msra.mxu0 %v65
    %3151 = vmatpush.msra.mxu0 %v57
    %3152 = vmatpush.msra.mxu0 %v49
    %3153 = vmatpush.msra.mxu0 %v41
    %3154 = vmatpush.msra.mxu0 %v33
    %3155 = vmatmul.f32.gmra.mxu0 %v2897
    %v3156 = vpop.f32.mrf.mxu0
    %v3157 = vadd.f32 %v657, %v3156
    %3158 = vdwg.mxu0
    %3159 = vmatpush.msra.mxu0 %v281
    %3160 = vmatpush.msra.mxu0 %v273
    %3161 = vmatpush.msra.mxu0 %v265
    %3162 = vmatpush.msra.mxu0 %v257
    %3163 = vmatpush.msra.mxu0 %v249
    %3164 = vmatpush.msra.mxu0 %v241
    %3165 = vmatpush.msra.mxu0 %v233
    %3166 = vmatpush.msra.mxu0 %v225
    %3167 = vmatpush.msra.mxu0 %v217
    %3168 = vmatpush.msra.mxu0 %v209
    %3169 = vmatpush.msra.mxu0 %v201
    %3170 = vmatpush.msra.mxu0 %v193
    %3171 = vmatpush.msra.mxu0 %v185
    %3172 = vmatpush.msra.mxu0 %v177
    %3173 = vmatpush.msra.mxu0 %v169
    %3174 = vmatpush.msra.mxu0 %v161
    %3175 = vmatmul.f32.gmra.mxu0 %v2898
    %v3176 = vpop.f32.mrf.mxu0
    %v3177 = vadd.f32 %v3157, %v3176
    %3178 = vdwg.mxu0
    %3179 = vmatpush.msra.mxu0 %v154
    %3180 = vmatpush.msra.mxu0 %v146
    %3181 = vmatpush.msra.mxu0 %v138
    %3182 = vmatpush.msra.mxu0 %v130
    %3183 = vmatpush.msra.mxu0 %v122
    %3184 = vmatpush.msra.mxu0 %v114
    %3185 = vmatpush.msra.mxu0 %v106
    %3186 = vmatpush.msra.mxu0 %v98
    %3187 = vmatpush.msra.mxu0 %v90
    %3188 = vmatpush.msra.mxu0 %v82
    %3189 = vmatpush.msra.mxu0 %v74
    %3190 = vmatpush.msra.mxu0 %v66
    %3191 = vmatpush.msra.mxu0 %v58
    %3192 = vmatpush.msra.mxu0 %v50
    %3193 = vmatpush.msra.mxu0 %v42
    %3194 = vmatpush.msra.mxu0 %v34
    %3195 = vmatmul.f32.gmra.mxu0 %v2897
    %v3196 = vpop.f32.mrf.mxu0
    %v3197 = vadd.f32 %v698, %v3196
    %3198 = vdwg.mxu0
    %3199 = vmatpush.msra.mxu0 %v282
    %3200 = vmatpush.msra.mxu0 %v274
    %3201 = vmatpush.msra.mxu0 %v266
    %3202 = vmatpush.msra.mxu0 %v258
    %3203 = vmatpush.msra.mxu0 %v250
    %3204 = vmatpush.msra.mxu0 %v242
    %3205 = vmatpush.msra.mxu0 %v234
    %3206 = vmatpush.msra.mxu0 %v226
    %3207 = vmatpush.msra.mxu0 %v218
    %3208 = vmatpush.msra.mxu0 %v210
    %3209 = vmatpush.msra.mxu0 %v202
    %3210 = vmatpush.msra.mxu0 %v194
    %3211 = vmatpush.msra.mxu0 %v186
    %3212 = vmatpush.msra.mxu0 %v178
    %3213 = vmatpush.msra.mxu0 %v170
    %3214 = vmatpush.msra.mxu0 %v162
    %3215 = vmatmul.f32.gmra.mxu0 %v2898
    %v3216 = vpop.f32.mrf.mxu0
    %v3217 = vadd.f32 %v3197, %v3216
    %3218 = vdwg.mxu0
    %v3219 = vmul.f32 %v2937, 0.5
    %v3220 = vmul.f32 %v2977, 0.5
    %v3221 = vmul.f32 %v3017, 0.5
    %v3222 = vmul.f32 %v3057, 0.5
    %v3223 = vmul.f32 %v3097, 0.5
    %v3224 = vmul.f32 %v3137, 0.5
    %v3225 = vmul.f32 %v3177, 0.5
    %v3226 = vmul.f32 %v3217, 0.5
    %v3227 = vtanh.pop %v3219
    %v3228 = vtanh.pop %v3220
    %v3229 = vtanh.pop %v3221
    %v3230 = vtanh.pop %v3222
    %v3231 = vtanh.pop %v3223
    %v3232 = vtanh.pop %v3224
    %v3233 = vtanh.pop %v3225
    %v3234 = vtanh.pop %v3226
    %v3235 = vmul.f32 %v3227, 0.5
    %v3236 = vmul.f32 %v3228, 0.5
    %v3237 = vadd.f32 %v3235, 0.5
    %v3238 = vadd.f32 %v3236, 0.5
    %v3239 = vmul.f32 %v3229, 0.5
    %v3240 = vmul.f32 %v3230, 0.5
    %v3241 = vadd.f32 %v3239, 0.5
    %v3242 = vadd.f32 %v3240, 0.5
    %v3243 = vmul.f32 %v3233, 0.5
    %v3244 = vmul.f32 %v3234, 0.5
    %v3245 = vadd.f32 %v3243, 0.5
    %v3246 = vadd.f32 %v3244, 0.5
    %v3247 = vmul.f32 %v3241, %v2893
    %v3248 = vmul.f32 %v3242, %v2894
    %v3249 = vmul.f32 %v3237, %v3231
    %v3250 = vmul.f32 %v3238, %v3232
    %v3251 = vadd.f32 %v3247, %v3249
    %v3252 = vadd.f32 %v3248, %v3250
    %v3253 = vtanh.pop %v3251
    %v3254 = vtanh.pop %v3252
    %v3255 = vmul.f32 %v3245, %v3253
    %v3256 = vmul.f32 %v3246, %v3254
    %3257 = vmatpush.msra.mxu0 %v147
    %3258 = vmatpush.msra.mxu0 %v139
    %3259 = vmatpush.msra.mxu0 %v131
    %3260 = vmatpush.msra.mxu0 %v123
    %3261 = vmatpush.msra.mxu0 %v115
    %3262 = vmatpush.msra.mxu0 %v107
    %3263 = vmatpush.msra.mxu0 %v99
    %3264 = vmatpush.msra.mxu0 %v91
    %3265 = vmatpush.msra.mxu0 %v83
    %3266 = vmatpush.msra.mxu0 %v75
    %3267 = vmatpush.msra.mxu0 %v67
    %3268 = vmatpush.msra.mxu0 %v59
    %3269 = vmatpush.msra.mxu0 %v51
    %3270 = vmatpush.msra.mxu0 %v43
    %3271 = vmatpush.msra.mxu0 %v35
    %3272 = vmatpush.msra.mxu0 %v27
    %3273 = vmatmul.f32.gmra.mxu0 %v3255
    %v3274 = vpop.f32.mrf.mxu0
    %v3275 = vadd.f32 %v331, %v3274
    %3276 = vdwg.mxu0
    %3277 = vmatpush.msra.mxu0 %v275
    %3278 = vmatpush.msra.mxu0 %v267
    %3279 = vmatpush.msra.mxu0 %v259
    %3280 = vmatpush.msra.mxu0 %v251
    %3281 = vmatpush.msra.mxu0 %v243
    %3282 = vmatpush.msra.mxu0 %v235
    %3283 = vmatpush.msra.mxu0 %v227
    %3284 = vmatpush.msra.mxu0 %v219
    %3285 = vmatpush.msra.mxu0 %v211
    %3286 = vmatpush.msra.mxu0 %v203
    %3287 = vmatpush.msra.mxu0 %v195
    %3288 = vmatpush.msra.mxu0 %v187
    %3289 = vmatpush.msra.mxu0 %v179
    %3290 = vmatpush.msra.mxu0 %v171
    %3291 = vmatpush.msra.mxu0 %v163
    %3292 = vmatpush.msra.mxu0 %v155
    %3293 = vmatmul.f32.gmra.mxu0 %v3256
    %v3294 = vpop.f32.mrf.mxu0
    %v3295 = vadd.f32 %v3275, %v3294
    %3296 = vdwg.mxu0
    %3297 = vmatpush.msra.mxu0 %v148
    %3298 = vmatpush.msra.mxu0 %v140
    %3299 = vmatpush.msra.mxu0 %v132
    %3300 = vmatpush.msra.mxu0 %v124
    %3301 = vmatpush.msra.mxu0 %v116
    %3302 = vmatpush.msra.mxu0 %v108
    %3303 = vmatpush.msra.mxu0 %v100
    %3304 = vmatpush.msra.mxu0 %v92
    %3305 = vmatpush.msra.mxu0 %v84
    %3306 = vmatpush.msra.mxu0 %v76
    %3307 = vmatpush.msra.mxu0 %v68
    %3308 = vmatpush.msra.mxu0 %v60
    %3309 = vmatpush.msra.mxu0 %v52
    %3310 = vmatpush.msra.mxu0 %v44
    %3311 = vmatpush.msra.mxu0 %v36
    %3312 = vmatpush.msra.mxu0 %v28
    %3313 = vmatmul.f32.gmra.mxu0 %v3255
    %v3314 = vpop.f32.mrf.mxu0
    %v3315 = vadd.f32 %v332, %v3314
    %3316 = vdwg.mxu0
    %3317 = vmatpush.msra.mxu0 %v276
    %3318 = vmatpush.msra.mxu0 %v268
    %3319 = vmatpush.msra.mxu0 %v260
    %3320 = vmatpush.msra.mxu0 %v252
    %3321 = vmatpush.msra.mxu0 %v244
    %3322 = vmatpush.msra.mxu0 %v236
    %3323 = vmatpush.msra.mxu0 %v228
    %3324 = vmatpush.msra.mxu0 %v220
    %3325 = vmatpush.msra.mxu0 %v212
    %3326 = vmatpush.msra.mxu0 %v204
    %3327 = vmatpush.msra.mxu0 %v196
    %3328 = vmatpush.msra.mxu0 %v188
    %3329 = vmatpush.msra.mxu0 %v180
    %3330 = vmatpush.msra.mxu0 %v172
    %3331 = vmatpush.msra.mxu0 %v164
    %3332 = vmatpush.msra.mxu0 %v156
    %3333 = vmatmul.f32.gmra.mxu0 %v3256
    %v3334 = vpop.f32.mrf.mxu0
    %v3335 = vadd.f32 %v3315, %v3334
    %3336 = vdwg.mxu0
    %3337 = vmatpush.msra.mxu0 %v149
    %3338 = vmatpush.msra.mxu0 %v141
    %3339 = vmatpush.msra.mxu0 %v133
    %3340 = vmatpush.msra.mxu0 %v125
    %3341 = vmatpush.msra.mxu0 %v117
    %3342 = vmatpush.msra.mxu0 %v109
    %3343 = vmatpush.msra.mxu0 %v101
    %3344 = vmatpush.msra.mxu0 %v93
    %3345 = vmatpush.msra.mxu0 %v85
    %3346 = vmatpush.msra.mxu0 %v77
    %3347 = vmatpush.msra.mxu0 %v69
    %3348 = vmatpush.msra.mxu0 %v61
    %3349 = vmatpush.msra.mxu0 %v53
    %3350 = vmatpush.msra.mxu0 %v45
    %3351 = vmatpush.msra.mxu0 %v37
    %3352 = vmatpush.msra.mxu0 %v29
    %3353 = vmatmul.f32.gmra.mxu0 %v3255
    %v3354 = vpop.f32.mrf.mxu0
    %v3355 = vadd.f32 %v333, %v3354
    %3356 = vdwg.mxu0
    %3357 = vmatpush.msra.mxu0 %v277
    %3358 = vmatpush.msra.mxu0 %v269
    %3359 = vmatpush.msra.mxu0 %v261
    %3360 = vmatpush.msra.mxu0 %v253
    %3361 = vmatpush.msra.mxu0 %v245
    %3362 = vmatpush.msra.mxu0 %v237
    %3363 = vmatpush.msra.mxu0 %v229
    %3364 = vmatpush.msra.mxu0 %v221
    %3365 = vmatpush.msra.mxu0 %v213
    %3366 = vmatpush.msra.mxu0 %v205
    %3367 = vmatpush.msra.mxu0 %v197
    %3368 = vmatpush.msra.mxu0 %v189
    %3369 = vmatpush.msra.mxu0 %v181
    %3370 = vmatpush.msra.mxu0 %v173
    %3371 = vmatpush.msra.mxu0 %v165
    %3372 = vmatpush.msra.mxu0 %v157
    %3373 = vmatmul.f32.gmra.mxu0 %v3256
    %v3374 = vpop.f32.mrf.mxu0
    %v3375 = vadd.f32 %v3355, %v3374
    %3376 = vdwg.mxu0
    %3377 = vmatpush.msra.mxu0 %v150
    %3378 = vmatpush.msra.mxu0 %v142
    %3379 = vmatpush.msra.mxu0 %v134
    %3380 = vmatpush.msra.mxu0 %v126
    %3381 = vmatpush.msra.mxu0 %v118
    %3382 = vmatpush.msra.mxu0 %v110
    %3383 = vmatpush.msra.mxu0 %v102
    %3384 = vmatpush.msra.mxu0 %v94
    %3385 = vmatpush.msra.mxu0 %v86
    %3386 = vmatpush.msra.mxu0 %v78
    %3387 = vmatpush.msra.mxu0 %v70
    %3388 = vmatpush.msra.mxu0 %v62
    %3389 = vmatpush.msra.mxu0 %v54
    %3390 = vmatpush.msra.mxu0 %v46
    %3391 = vmatpush.msra.mxu0 %v38
    %3392 = vmatpush.msra.mxu0 %v30
    %3393 = vmatmul.f32.gmra.mxu0 %v3255
    %v3394 = vpop.f32.mrf.mxu0
    %v3395 = vadd.f32 %v334, %v3394
    %3396 = vdwg.mxu0
    %3397 = vmatpush.msra.mxu0 %v278
    %3398 = vmatpush.msra.mxu0 %v270
    %3399 = vmatpush.msra.mxu0 %v262
    %3400 = vmatpush.msra.mxu0 %v254
    %3401 = vmatpush.msra.mxu0 %v246
    %3402 = vmatpush.msra.mxu0 %v238
    %3403 = vmatpush.msra.mxu0 %v230
    %3404 = vmatpush.msra.mxu0 %v222
    %3405 = vmatpush.msra.mxu0 %v214
    %3406 = vmatpush.msra.mxu0 %v206
    %3407 = vmatpush.msra.mxu0 %v198
    %3408 = vmatpush.msra.mxu0 %v190
    %3409 = vmatpush.msra.mxu0 %v182
    %3410 = vmatpush.msra.mxu0 %v174
    %3411 = vmatpush.msra.mxu0 %v166
    %3412 = vmatpush.msra.mxu0 %v158
    %3413 = vmatmul.f32.gmra.mxu0 %v3256
    %v3414 = vpop.f32.mrf.mxu0
    %v3415 = vadd.f32 %v3395, %v3414
    %3416 = vdwg.mxu0
    %3417 = vmatpush.msra.mxu0 %v151
    %3418 = vmatpush.msra.mxu0 %v143
    %3419 = vmatpush.msra.mxu0 %v135
    %3420 = vmatpush.msra.mxu0 %v127
    %3421 = vmatpush.msra.mxu0 %v119
    %3422 = vmatpush.msra.mxu0 %v111
    %3423 = vmatpush.msra.mxu0 %v103
    %3424 = vmatpush.msra.mxu0 %v95
    %3425 = vmatpush.msra.mxu0 %v87
    %3426 = vmatpush.msra.mxu0 %v79
    %3427 = vmatpush.msra.mxu0 %v71
    %3428 = vmatpush.msra.mxu0 %v63
    %3429 = vmatpush.msra.mxu0 %v55
    %3430 = vmatpush.msra.mxu0 %v47
    %3431 = vmatpush.msra.mxu0 %v39
    %3432 = vmatpush.msra.mxu0 %v31
    %3433 = vmatmul.f32.gmra.mxu0 %v3255
    %v3434 = vpop.f32.mrf.mxu0
    %v3435 = vadd.f32 %v335, %v3434
    %3436 = vdwg.mxu0
    %3437 = vmatpush.msra.mxu0 %v279
    %3438 = vmatpush.msra.mxu0 %v271
    %3439 = vmatpush.msra.mxu0 %v263
    %3440 = vmatpush.msra.mxu0 %v255
    %3441 = vmatpush.msra.mxu0 %v247
    %3442 = vmatpush.msra.mxu0 %v239
    %3443 = vmatpush.msra.mxu0 %v231
    %3444 = vmatpush.msra.mxu0 %v223
    %3445 = vmatpush.msra.mxu0 %v215
    %3446 = vmatpush.msra.mxu0 %v207
    %3447 = vmatpush.msra.mxu0 %v199
    %3448 = vmatpush.msra.mxu0 %v191
    %3449 = vmatpush.msra.mxu0 %v183
    %3450 = vmatpush.msra.mxu0 %v175
    %3451 = vmatpush.msra.mxu0 %v167
    %3452 = vmatpush.msra.mxu0 %v159
    %3453 = vmatmul.f32.gmra.mxu0 %v3256
    %v3454 = vpop.f32.mrf.mxu0
    %v3455 = vadd.f32 %v3435, %v3454
    %3456 = vdwg.mxu0
    %3457 = vmatpush.msra.mxu0 %v152
    %3458 = vmatpush.msra.mxu0 %v144
    %3459 = vmatpush.msra.mxu0 %v136
    %3460 = vmatpush.msra.mxu0 %v128
    %3461 = vmatpush.msra.mxu0 %v120
    %3462 = vmatpush.msra.mxu0 %v112
    %3463 = vmatpush.msra.mxu0 %v104
    %3464 = vmatpush.msra.mxu0 %v96
    %3465 = vmatpush.msra.mxu0 %v88
    %3466 = vmatpush.msra.mxu0 %v80
    %3467 = vmatpush.msra.mxu0 %v72
    %3468 = vmatpush.msra.mxu0 %v64
    %3469 = vmatpush.msra.mxu0 %v56
    %3470 = vmatpush.msra.mxu0 %v48
    %3471 = vmatpush.msra.mxu0 %v40
    %3472 = vmatpush.msra.mxu0 %v32
    %3473 = vmatmul.f32.gmra.mxu0 %v3255
    %v3474 = vpop.f32.mrf.mxu0
    %v3475 = vadd.f32 %v336, %v3474
    %3476 = vdwg.mxu0
    %3477 = vmatpush.msra.mxu0 %v280
    %3478 = vmatpush.msra.mxu0 %v272
    %3479 = vmatpush.msra.mxu0 %v264
    %3480 = vmatpush.msra.mxu0 %v256
    %3481 = vmatpush.msra.mxu0 %v248
    %3482 = vmatpush.msra.mxu0 %v240
    %3483 = vmatpush.msra.mxu0 %v232
    %3484 = vmatpush.msra.mxu0 %v224
    %3485 = vmatpush.msra.mxu0 %v216
    %3486 = vmatpush.msra.mxu0 %v208
    %3487 = vmatpush.msra.mxu0 %v200
    %3488 = vmatpush.msra.mxu0 %v192
    %3489 = vmatpush.msra.mxu0 %v184
    %3490 = vmatpush.msra.mxu0 %v176
    %3491 = vmatpush.msra.mxu0 %v168
    %3492 = vmatpush.msra.mxu0 %v160
    %3493 = vmatmul.f32.gmra.mxu0 %v3256
    %v3494 = vpop.f32.mrf.mxu0
    %v3495 = vadd.f32 %v3475, %v3494
    %3496 = vdwg.mxu0
    %3497 = vmatpush.msra.mxu0 %v153
    %3498 = vmatpush.msra.mxu0 %v145
    %3499 = vmatpush.msra.mxu0 %v137
    %3500 = vmatpush.msra.mxu0 %v129
    %3501 = vmatpush.msra.mxu0 %v121
    %3502 = vmatpush.msra.mxu0 %v113
    %3503 = vmatpush.msra.mxu0 %v105
    %3504 = vmatpush.msra.mxu0 %v97
    %3505 = vmatpush.msra.mxu0 %v89
    %3506 = vmatpush.msra.mxu0 %v81
    %3507 = vmatpush.msra.mxu0 %v73
    %3508 = vmatpush.msra.mxu0 %v65
    %3509 = vmatpush.msra.mxu0 %v57
    %3510 = vmatpush.msra.mxu0 %v49
    %3511 = vmatpush.msra.mxu0 %v41
    %3512 = vmatpush.msra.mxu0 %v33
    %3513 = vmatmul.f32.gmra.mxu0 %v3255
    %v3514 = vpop.f32.mrf.mxu0
    %v3515 = vadd.f32 %v337, %v3514
    %3516 = vdwg.mxu0
    %3517 = vmatpush.msra.mxu0 %v281
    %3518 = vmatpush.msra.mxu0 %v273
    %3519 = vmatpush.msra.mxu0 %v265
    %3520 = vmatpush.msra.mxu0 %v257
    %3521 = vmatpush.msra.mxu0 %v249
    %3522 = vmatpush.msra.mxu0 %v241
    %3523 = vmatpush.msra.mxu0 %v233
    %3524 = vmatpush.msra.mxu0 %v225
    %3525 = vmatpush.msra.mxu0 %v217
    %3526 = vmatpush.msra.mxu0 %v209
    %3527 = vmatpush.msra.mxu0 %v201
    %3528 = vmatpush.msra.mxu0 %v193
    %3529 = vmatpush.msra.mxu0 %v185
    %3530 = vmatpush.msra.mxu0 %v177
    %3531 = vmatpush.msra.mxu0 %v169
    %3532 = vmatpush.msra.mxu0 %v161
    %3533 = vmatmul.f32.gmra.mxu0 %v3256
    %v3534 = vpop.f32.mrf.mxu0
    %v3535 = vadd.f32 %v3515, %v3534
    %3536 = vdwg.mxu0
    %3537 = vmatpush.msra.mxu0 %v154
    %3538 = vmatpush.msra.mxu0 %v146
    %3539 = vmatpush.msra.mxu0 %v138
    %3540 = vmatpush.msra.mxu0 %v130
    %3541 = vmatpush.msra.mxu0 %v122
    %3542 = vmatpush.msra.mxu0 %v114
    %3543 = vmatpush.msra.mxu0 %v106
    %3544 = vmatpush.msra.mxu0 %v98
    %3545 = vmatpush.msra.mxu0 %v90
    %3546 = vmatpush.msra.mxu0 %v82
    %3547 = vmatpush.msra.mxu0 %v74
    %3548 = vmatpush.msra.mxu0 %v66
    %3549 = vmatpush.msra.mxu0 %v58
    %3550 = vmatpush.msra.mxu0 %v50
    %3551 = vmatpush.msra.mxu0 %v42
    %3552 = vmatpush.msra.mxu0 %v34
    %3553 = vmatmul.f32.gmra.mxu0 %v3255
    %v3554 = vpop.f32.mrf.mxu0
    %v3555 = vadd.f32 %v338, %v3554
    %3556 = vdwg.mxu0
    %3557 = vmatpush.msra.mxu0 %v282
    %3558 = vmatpush.msra.mxu0 %v274
    %3559 = vmatpush.msra.mxu0 %v266
    %3560 = vmatpush.msra.mxu0 %v258
    %3561 = vmatpush.msra.mxu0 %v250
    %3562 = vmatpush.msra.mxu0 %v242
    %3563 = vmatpush.msra.mxu0 %v234
    %3564 = vmatpush.msra.mxu0 %v226
    %3565 = vmatpush.msra.mxu0 %v218
    %3566 = vmatpush.msra.mxu0 %v210
    %3567 = vmatpush.msra.mxu0 %v202
    %3568 = vmatpush.msra.mxu0 %v194
    %3569 = vmatpush.msra.mxu0 %v186
    %3570 = vmatpush.msra.mxu0 %v178
    %3571 = vmatpush.msra.mxu0 %v170
    %3572 = vmatpush.msra.mxu0 %v162
    %3573 = vmatmul.f32.gmra.mxu0 %v3256
    %v3574 = vpop.f32.mrf.mxu0
    %v3575 = vadd.f32 %v3555, %v3574
    %3576 = vdwg.mxu0
    %v3577 = vmul.f32 %v3295, 0.5
    %v3578 = vmul.f32 %v3335, 0.5
    %v3579 = vmul.f32 %v3375, 0.5
    %v3580 = vmul.f32 %v3415, 0.5
    %v3581 = vmul.f32 %v3455, 0.5
    %v3582 = vmul.f32 %v3495, 0.5
    %v3583 = vmul.f32 %v3535, 0.5
    %v3584 = vmul.f32 %v3575, 0.5
    %v3585 = vtanh.pop %v3577
    %v3586 = vtanh.pop %v3578
    %v3587 = vtanh.pop %v3579
    %v3588 = vtanh.pop %v3580
    %v3589 = vtanh.pop %v3581
    %v3590 = vtanh.pop %v3582
    %v3591 = vtanh.pop %v3583
    %v3592 = vtanh.pop %v3584
    %v3593 = vmul.f32 %v3585, 0.5
    %v3594 = vmul.f32 %v3586, 0.5
    %v3595 = vadd.f32 %v3593, 0.5
    %v3596 = vadd.f32 %v3594, 0.5
    %v3597 = vmul.f32 %v3587, 0.5
    %v3598 = vmul.f32 %v3588, 0.5
    %v3599 = vadd.f32 %v3597, 0.5
    %v3600 = vadd.f32 %v3598, 0.5
    %v3601 = vmul.f32 %v3591, 0.5
    %v3602 = vmul.f32 %v3592, 0.5
    %v3603 = vadd.f32 %v3601, 0.5
    %v3604 = vadd.f32 %v3602, 0.5
    %v3605 = vmul.f32 %v3599, %v3251
    %v3606 = vmul.f32 %v3600, %v3252
    %v3607 = vmul.f32 %v3595, %v3589
    %v3608 = vmul.f32 %v3596, %v3590
    %v3609 = vadd.f32 %v3605, %v3607
    %v3610 = vadd.f32 %v3606, %v3608
    %v3611 = vtanh.pop %v3609
    %v3612 = vtanh.pop %v3610
    %v3613 = vmul.f32 %v3603, %v3611
    %v3614 = vmul.f32 %v3604, %v3612
    %v3616 = vperm.slane %v320, 0
    %v3617 = vperm.slane %v320, 1
    %v3620 = vmul.f32 %v3613, %v3616
    %v3621 = vmul.f32 %v3614, %v3617
    %v3622 = vadd.f32 %v3620, %v3621
    %3623 = vadd.xlane.f32.xlu0 %v3622
    %v3624 = vpop.xlane.xlu0 %3623
    %v3625 = vadd.f32 %v3624, %v321
    %vm3626 = vcmask 7168
    %3627 = vst.msk [vmem:[%s2] sm:$0xff] %vm3626, %v3625
    // Predicated region
    $region14: #{lstm_model_forward.1} parent=1 // pred_check
      _
    $region15: #{lstm_model_forward.1} parent=1 // pred_check_branch
      %3629 = sbr.rel (0) target = $region17
    $region16: #{lstm_model_forward.1} parent=1 // pred_region
      _
    $region17: #{lstm_model_forward.1} parent=1 // pred_fallthru
      _
    // Predicated region
    $region18: #{lstm_model_forward.1} parent=1 // pred_check
      _
    $region19: #{lstm_model_forward.1} parent=1 // pred_check_branch
      %3631 = sbr.rel (0) target = $region21
    $region20: #{lstm_model_forward.1} parent=1 // pred_region
      _
    $region21: #{lstm_model_forward.1} parent=1 // pred_fallthru
      _
    %3632 = vsyncpa [#allocation3], 1

</llo_original>
